<compile_context>
chip_gen: v6e
topology: v6e:2x2x1
jax: 0.10.0
libtpu: 0.0.40
codegen_flags: <defaults>
</compile_context>

<pallas_src>
import math

import jax
import jax.numpy as jnp
from jax.experimental import pallas as pl
from jax.experimental.pallas import tpu as pltpu

# ---- small, BERT-like config (synthetic stand-in for bert-base) ----
VOCAB = 50
MAX_POS = 16
TYPE_VOCAB = 2
HIDDEN = 32          # stands in for 768
NUM_HEADS = 4
HEAD_DIM = HIDDEN // NUM_HEADS
INTERMEDIATE = 64    # stands in for 3072
NUM_LAYERS = 2       # stands in for 12
NUM_CLASSES = 2
LN_EPS = 1e-12

VMEM_LIMIT = 32 * 1024 * 1024   # explicit budget; safe on v5e/v6e/v7x


def _cp(dims=None):
    return pltpu.CompilerParams(dimension_semantics=dims,
                                vmem_limit_bytes=VMEM_LIMIT)


def _full_spec(shape):
    # whole-array VMEM block, block index constant across any grid axes
    return pl.BlockSpec(shape, lambda *_: (0,) * len(shape))


def _ln_f32(y, g, b):
    mu = jnp.mean(y, axis=-1, keepdims=True)
    yc = y - mu
    var = jnp.mean(yc * yc, axis=-1, keepdims=True)
    return (yc * jax.lax.rsqrt(var + LN_EPS)) * g + b


# ---------------- single fused kernel: emb-LN -> encoder layers -> pooler -> classifier ----------------
def _bert_fused_kernel(emb_ref, bias_ref, eg_ref, eb_ref,
                       wqkv_ref, bqkv_ref, wo_ref, bo_ref, g1_ref, b1_ref,
                       wi_ref, bi_ref, wo2_ref, bo2_ref, g2_ref, b2_ref,
                       pw_ref, pb_ref, cw_ref, cb_ref, o_ref):
    s_len = emb_ref.shape[1]
    scale = 1.0 / math.sqrt(HEAD_DIM)
    bias = bias_ref[0]                                           # (1, S) f32 additive mask

    # embedding LayerNorm (input already f32)
    x = _ln_f32(emb_ref[0].astype(jnp.float32), eg_ref[...], eb_ref[...])   # (S, H) f32

    for l in range(NUM_LAYERS):                                  # static unroll over layers
        # ---- self-attention: fused QKV matmul, per-head attention, fused out-proj ----
        xb = x.astype(jnp.bfloat16)
        qkv = jnp.dot(xb, wqkv_ref[l],
                      preferred_element_type=jnp.float32) + bqkv_ref[l]     # (S, 3H) f32

        acc = jnp.zeros((s_len, HIDDEN), jnp.float32)
        for h in range(NUM_HEADS):                               # static unroll, slices are free
            lo = h * HEAD_DIM
            qh = qkv[:, lo:lo + HEAD_DIM].astype(jnp.bfloat16)
            kh = qkv[:, HIDDEN + lo:HIDDEN + lo + HEAD_DIM].astype(jnp.bfloat16)
            vh = qkv[:, 2 * HIDDEN + lo:2 * HIDDEN + lo + HEAD_DIM].astype(jnp.bfloat16)
            # q @ k^T without an explicit transpose (NT dot_general)
            sc = jax.lax.dot_general(qh, kh, (((1,), (1,)), ((), ())),
                                     preferred_element_type=jnp.float32) * scale
            sc = sc + bias                                       # mask bias (f32)
            sc = sc - jnp.max(sc, axis=-1, keepdims=True)
            p = jnp.exp(sc)
            p = p * pl.reciprocal(jnp.sum(p, axis=-1, keepdims=True), approx=True)
            ctx_h = jnp.dot(p.astype(jnp.bfloat16), vh,
                            preferred_element_type=jnp.float32)  # (S, DH)
            # per-head slice of the output projection: sum_h ctx_h @ Wo[h] == ctx @ Wo
            acc = acc + jnp.dot(ctx_h.astype(jnp.bfloat16), wo_ref[l * NUM_HEADS + h],
                                preferred_element_type=jnp.float32)

        y = acc + bo_ref[l] + x                                  # attn out + residual (f32)
        x = _ln_f32(y, g1_ref[l], b1_ref[l])

        # ---- FFN: x@Wi -> GELU -> @Wo2 -> +residual -> LN2 (intermediate stays in VMEM) ----
        xb = x.astype(jnp.bfloat16)
        h1 = jnp.dot(xb, wi_ref[l], preferred_element_type=jnp.float32) + bi_ref[l]
        # TODO(synk): HF BERT default is exact (erf) GELU; tanh approximation used
        # here for guaranteed Mosaic lowering.
        h1 = jax.nn.gelu(h1, approximate=True)
        h2 = jnp.dot(h1.astype(jnp.bfloat16), wo2_ref[l],
                     preferred_element_type=jnp.float32) + bo2_ref[l]
        y = h2 + x
        x = _ln_f32(y, g2_ref[l], b2_ref[l])

    # ---- [CLS] token -> pooler (tanh) -> classifier Linear(H, 2) ----
    cls = x[0:1, :].astype(jnp.bfloat16)                         # (1, H)
    pooled = jnp.tanh(jnp.dot(cls, pw_ref[...],
                              preferred_element_type=jnp.float32) + pb_ref[...])
    logits = jnp.dot(pooled.astype(jnp.bfloat16), cw_ref[...],
                     preferred_element_type=jnp.float32) + cb_ref[...]      # (1, 2) f32
    o_ref[0] = logits


def bert_fused_call(emb, bias, p):
    b, s, h = emb.shape
    return pl.pallas_call(
        _bert_fused_kernel,
        out_shape=jax.ShapeDtypeStruct((b, 1, NUM_CLASSES), jnp.float32),
        grid=(b,),
        in_specs=[
            pl.BlockSpec((1, s, h), lambda i: (i, 0, 0)),        # embeddings (per batch)
            pl.BlockSpec((1, 1, s), lambda i: (i, 0, 0)),        # mask bias  (per batch)
            _full_spec((1, h)), _full_spec((1, h)),              # emb LN
            _full_spec((NUM_LAYERS, h, 3 * h)),                  # wqkv
            _full_spec((NUM_LAYERS, 1, 3 * h)),                  # bqkv
            _full_spec((NUM_LAYERS * NUM_HEADS, HEAD_DIM, h)),   # wo (per-head slices)
            _full_spec((NUM_LAYERS, 1, h)),                      # bo
            _full_spec((NUM_LAYERS, 1, h)), _full_spec((NUM_LAYERS, 1, h)),  # LN1
            _full_spec((NUM_LAYERS, h, INTERMEDIATE)),           # wi
            _full_spec((NUM_LAYERS, 1, INTERMEDIATE)),           # bi
            _full_spec((NUM_LAYERS, INTERMEDIATE, h)),           # wo2
            _full_spec((NUM_LAYERS, 1, h)),                      # bo2
            _full_spec((NUM_LAYERS, 1, h)), _full_spec((NUM_LAYERS, 1, h)),  # LN2
            _full_spec((h, h)), _full_spec((1, h)),              # pooler
            _full_spec((h, NUM_CLASSES)), _full_spec((1, NUM_CLASSES)),      # classifier
        ],
        out_specs=pl.BlockSpec((1, 1, NUM_CLASSES), lambda i: (i, 0, 0)),
        compiler_params=_cp(("parallel",)),
    )(emb, bias,
      p["emb_ln_g"], p["emb_ln_b"],
      p["wqkv"], p["bqkv"], p["wo"], p["bo"], p["ln1_g"], p["ln1_b"],
      p["wi"], p["bi"], p["wo2"], p["bo2"], p["ln2_g"], p["ln2_b"],
      p["pool_w"], p["pool_b"], p["cls_w"], p["cls_b"])


# ---------------- full forward: BertModel -> pooled -> dropout -> Linear(H,2) ----------------
@jax.jit
def bert_text_classification_forward(packed, ids, mask):
    b, s = ids.shape
    # embedding lookup / sum left to XLA (tiny gather); token_type_ids default to 0
    # exactly as in the HF forward used by the PyTorch module.
    emb = (packed["word_emb"][ids]
           + packed["pos_emb"][:s][None, :, :]
           + packed["type_emb"][0][None, None, :])               # (B, S, H) f32

    # additive attention-mask bias, precomputed once (f32, kept f32 in-kernel)
    bias = ((1.0 - mask.astype(jnp.float32)) * (-1e9)).reshape(b, 1, s)

    # nn.Dropout(p=0.3) is the identity at inference time (model.eval()).
    logits = bert_fused_call(emb, bias, packed)                  # (B, 1, 2)
    return logits.reshape(b, NUM_CLASSES)


# ---------------- deterministic synthetic parameters ----------------
def init_params(key):
    def normal(k, shape):
        return 0.02 * jax.random.normal(k, shape, jnp.float32)

    n_keys = 8 + NUM_LAYERS * 8
    keys = iter(jax.random.split(key, n_keys))
    params = {
        "word_emb": normal(next(keys), (VOCAB, HIDDEN)),
        "pos_emb": normal(next(keys), (MAX_POS, HIDDEN)),
        "type_emb": normal(next(keys), (TYPE_VOCAB, HIDDEN)),
        "emb_ln_g": jnp.ones((HIDDEN,), jnp.float32),
        "emb_ln_b": jnp.zeros((HIDDEN,), jnp.float32),
        "pool_w": normal(next(keys), (HIDDEN, HIDDEN)),
        "pool_b": jnp.zeros((HIDDEN,), jnp.float32),
        "cls_w": normal(next(keys), (HIDDEN, NUM_CLASSES)),
        "cls_b": jnp.zeros((NUM_CLASSES,), jnp.float32),
        "layers": [],
    }
    for _ in range(NUM_LAYERS):
        layer = {
            "wq": normal(next(keys), (HIDDEN, HIDDEN)), "bq": jnp.zeros((HIDDEN,), jnp.float32),
            "wk": normal(next(keys), (HIDDEN, HIDDEN)), "bk": jnp.zeros((HIDDEN,), jnp.float32),
            "wv": normal(next(keys), (HIDDEN, HIDDEN)), "bv": jnp.zeros((HIDDEN,), jnp.float32),
            "wo": normal(next(keys), (HIDDEN, HIDDEN)), "bo": jnp.zeros((HIDDEN,), jnp.float32),
            "ln1_g": jnp.ones((HIDDEN,), jnp.float32), "ln1_b": jnp.zeros((HIDDEN,), jnp.float32),
            "wi": normal(next(keys), (HIDDEN, INTERMEDIATE)), "bi": jnp.zeros((INTERMEDIATE,), jnp.float32),
            "wo2": normal(next(keys), (INTERMEDIATE, HIDDEN)), "bo2": jnp.zeros((HIDDEN,), jnp.float32),
            "ln2_g": jnp.ones((HIDDEN,), jnp.float32), "ln2_b": jnp.zeros((HIDDEN,), jnp.float32),
        }
        params["layers"].append(layer)
    return params


def pack_params(p):
    """Fuse QKV, cast matmul weights to bf16, stack layer params on a leading axis."""
    bf = lambda a: a.astype(jnp.bfloat16)
    row = lambda a: a.reshape(1, -1).astype(jnp.float32)
    L = p["layers"]
    stack = lambda f, name: jnp.stack([f(lp[name]) for lp in L], axis=0)
    return {
        "word_emb": p["word_emb"],
        "pos_emb": p["pos_emb"],
        "type_emb": p["type_emb"],
        "emb_ln_g": row(p["emb_ln_g"]), "emb_ln_b": row(p["emb_ln_b"]),
        "pool_w": bf(p["pool_w"]), "pool_b": row(p["pool_b"]),
        "cls_w": bf(p["cls_w"]), "cls_b": row(p["cls_b"]),
        # (L, H, 3H) fused QKV weights / (L, 1, 3H) biases
        "wqkv": jnp.stack([bf(jnp.concatenate([lp["wq"], lp["wk"], lp["wv"]], axis=1)) for lp in L]),
        "bqkv": jnp.stack([jnp.concatenate([lp["bq"], lp["bk"], lp["bv"]]).reshape(1, -1).astype(jnp.float32)
                           for lp in L]),
        # (L*NUM_HEADS, HEAD_DIM, H): per-head slices of the output projection
        "wo": jnp.concatenate([bf(lp["wo"]).reshape(NUM_HEADS, HEAD_DIM, HIDDEN) for lp in L], axis=0),
        "bo": stack(row, "bo"),
        "ln1_g": stack(row, "ln1_g"), "ln1_b": stack(row, "ln1_b"),
        "wi": stack(bf, "wi"), "bi": stack(row, "bi"),
        "wo2": stack(bf, "wo2"), "bo2": stack(row, "bo2"),
        "ln2_g": stack(row, "ln2_g"), "ln2_b": stack(row, "ln2_b"),
    }


if __name__ == "__main__":
    B, S = 2, 8
    key = jax.random.PRNGKey(0)
    k_param, k_ids = jax.random.split(key)
    params = pack_params(init_params(k_param))

    ids = jax.random.randint(k_ids, (B, S), 0, VOCAB, dtype=jnp.int32)
    # attention_mask: 1 = real token, 0 = padding (second example padded to 6 tokens)
    lengths = jnp.array([[S], [6]], dtype=jnp.int32)
    mask = (jnp.arange(S, dtype=jnp.int32)[None, :] < lengths).astype(jnp.int32)

    logits = bert_text_classification_forward(params, ids, mask)
    logits = jax.block_until_ready(logits)
    assert logits.shape == (B, NUM_CLASSES)
    assert bool(jnp.all(jnp.isfinite(logits)))
    print("KERNEL_OK")
</pallas_src>

<mosaic_0001>
module attributes {stable_mosaic.version = 11 : i64} {
  func.func @_bert_fused_kernel(%arg0: i32, %arg1: memref<1x8x32xf32, #tpu.memory_space<vmem>>, %arg2: memref<1x1x8xf32, #tpu.memory_space<vmem>>, %arg3: memref<1x32xf32, #tpu.memory_space<vmem>>, %arg4: memref<1x32xf32, #tpu.memory_space<vmem>>, %arg5: memref<2x32x96xbf16, #tpu.memory_space<vmem>>, %arg6: memref<2x1x96xf32, #tpu.memory_space<vmem>>, %arg7: memref<8x8x32xbf16, #tpu.memory_space<vmem>>, %arg8: memref<2x1x32xf32, #tpu.memory_space<vmem>>, %arg9: memref<2x1x32xf32, #tpu.memory_space<vmem>>, %arg10: memref<2x1x32xf32, #tpu.memory_space<vmem>>, %arg11: memref<2x32x64xbf16, #tpu.memory_space<vmem>>, %arg12: memref<2x1x64xf32, #tpu.memory_space<vmem>>, %arg13: memref<2x64x32xbf16, #tpu.memory_space<vmem>>, %arg14: memref<2x1x32xf32, #tpu.memory_space<vmem>>, %arg15: memref<2x1x32xf32, #tpu.memory_space<vmem>>, %arg16: memref<2x1x32xf32, #tpu.memory_space<vmem>>, %arg17: memref<32x32xbf16, #tpu.memory_space<vmem>>, %arg18: memref<1x32xf32, #tpu.memory_space<vmem>>, %arg19: memref<32x2xbf16, #tpu.memory_space<vmem>>, %arg20: memref<1x2xf32, #tpu.memory_space<vmem>>, %arg21: memref<1x1x2xf32, #tpu.memory_space<vmem>>) attributes {dimension_semantics = [#tpu.dimension_semantics<parallel>], iteration_bounds = array<i64: 2>, scalar_prefetch = 0 : i64, scratch_operands = 0 : i64, tpu.core_type = #tpu.core_type<tc>, window_params = [{transform_indices = @transform_0, window_bounds = array<i64: 1, 8, 32>}, {transform_indices = @transform_1, window_bounds = array<i64: 1, 1, 8>}, {pipeline_mode = #tpu.pipeline_mode<synchronous>, transform_indices = @transform_2, window_bounds = array<i64: 1, 32>}, {pipeline_mode = #tpu.pipeline_mode<synchronous>, transform_indices = @transform_3, window_bounds = array<i64: 1, 32>}, {pipeline_mode = #tpu.pipeline_mode<synchronous>, transform_indices = @transform_4, window_bounds = array<i64: 2, 32, 96>}, {pipeline_mode = #tpu.pipeline_mode<synchronous>, transform_indices = @transform_5, window_bounds = array<i64: 2, 1, 96>}, {pipeline_mode = #tpu.pipeline_mode<synchronous>, transform_indices = @transform_6, window_bounds = array<i64: 8, 8, 32>}, {pipeline_mode = #tpu.pipeline_mode<synchronous>, transform_indices = @transform_7, window_bounds = array<i64: 2, 1, 32>}, {pipeline_mode = #tpu.pipeline_mode<synchronous>, transform_indices = @transform_8, window_bounds = array<i64: 2, 1, 32>}, {pipeline_mode = #tpu.pipeline_mode<synchronous>, transform_indices = @transform_9, window_bounds = array<i64: 2, 1, 32>}, {pipeline_mode = #tpu.pipeline_mode<synchronous>, transform_indices = @transform_10, window_bounds = array<i64: 2, 32, 64>}, {pipeline_mode = #tpu.pipeline_mode<synchronous>, transform_indices = @transform_11, window_bounds = array<i64: 2, 1, 64>}, {pipeline_mode = #tpu.pipeline_mode<synchronous>, transform_indices = @transform_12, window_bounds = array<i64: 2, 64, 32>}, {pipeline_mode = #tpu.pipeline_mode<synchronous>, transform_indices = @transform_13, window_bounds = array<i64: 2, 1, 32>}, {pipeline_mode = #tpu.pipeline_mode<synchronous>, transform_indices = @transform_14, window_bounds = array<i64: 2, 1, 32>}, {pipeline_mode = #tpu.pipeline_mode<synchronous>, transform_indices = @transform_15, window_bounds = array<i64: 2, 1, 32>}, {pipeline_mode = #tpu.pipeline_mode<synchronous>, transform_indices = @transform_16, window_bounds = array<i64: 32, 32>}, {pipeline_mode = #tpu.pipeline_mode<synchronous>, transform_indices = @transform_17, window_bounds = array<i64: 1, 32>}, {pipeline_mode = #tpu.pipeline_mode<synchronous>, transform_indices = @transform_18, window_bounds = array<i64: 32, 2>}, {pipeline_mode = #tpu.pipeline_mode<synchronous>, transform_indices = @transform_19, window_bounds = array<i64: 1, 2>}, {transform_indices = @transform_20, window_bounds = array<i64: 1, 1, 2>}]} {
    %c0 = arith.constant 0 : index
    %c0_0 = arith.constant 0 : index
    %c0_1 = arith.constant 0 : index
    %0 = vector.load %arg2[%c0, %c0_0, %c0_1] : memref<1x1x8xf32, #tpu.memory_space<vmem>>, vector<1x1x8xf32>
    %1 = vector.shape_cast %0 : vector<1x1x8xf32> to vector<1x8xf32>
    %c0_2 = arith.constant 0 : index
    %c0_3 = arith.constant 0 : index
    %c0_4 = arith.constant 0 : index
    %2 = vector.load %arg1[%c0_2, %c0_3, %c0_4] : memref<1x8x32xf32, #tpu.memory_space<vmem>>, vector<1x8x32xf32>
    %3 = vector.shape_cast %2 : vector<1x8x32xf32> to vector<8x32xf32>
    %c0_5 = arith.constant 0 : index
    %c0_6 = arith.constant 0 : index
    %4 = vector.load %arg3[%c0_5, %c0_6] : memref<1x32xf32, #tpu.memory_space<vmem>>, vector<1x32xf32>
    %c0_7 = arith.constant 0 : index
    %c0_8 = arith.constant 0 : index
    %5 = vector.load %arg4[%c0_7, %c0_8] : memref<1x32xf32, #tpu.memory_space<vmem>>, vector<1x32xf32>
    %cst = arith.constant dense<0.000000e+00> : vector<8xf32>
    %6 = vector.multi_reduction <add>, %3, %cst [1] : vector<8x32xf32> to vector<8xf32>
    %7 = vector.shape_cast %6 : vector<8xf32> to vector<8x1xf32>
    %cst_9 = arith.constant 3.200000e+01 : f32
    %8 = vector.broadcast %cst_9 : f32 to vector<8x1xf32>
    %9 = arith.divf %7, %8 : vector<8x1xf32>
    %10 = vector.broadcast %9 : vector<8x1xf32> to vector<8x32xf32>
    %11 = arith.subf %3, %10 : vector<8x32xf32>
    %12 = arith.mulf %11, %11 : vector<8x32xf32>
    %cst_10 = arith.constant dense<0.000000e+00> : vector<8xf32>
    %13 = vector.multi_reduction <add>, %12, %cst_10 [1] : vector<8x32xf32> to vector<8xf32>
    %14 = vector.shape_cast %13 : vector<8xf32> to vector<8x1xf32>
    %cst_11 = arith.constant 3.200000e+01 : f32
    %15 = vector.broadcast %cst_11 : f32 to vector<8x1xf32>
    %16 = arith.divf %14, %15 : vector<8x1xf32>
    %cst_12 = arith.constant 9.99999996E-13 : f32
    %17 = vector.broadcast %cst_12 : f32 to vector<8x1xf32>
    %18 = arith.addf %16, %17 : vector<8x1xf32>
    %19 = math.rsqrt %18 : vector<8x1xf32>
    %20 = vector.broadcast %19 : vector<8x1xf32> to vector<8x32xf32>
    %21 = arith.mulf %11, %20 : vector<8x32xf32>
    %22 = vector.broadcast %4 : vector<1x32xf32> to vector<8x32xf32>
    %23 = arith.mulf %21, %22 : vector<8x32xf32>
    %24 = vector.broadcast %5 : vector<1x32xf32> to vector<8x32xf32>
    %25 = arith.addf %23, %24 : vector<8x32xf32>
    %26 = arith.truncf %25 : vector<8x32xf32> to vector<8x32xbf16>
    %c0_13 = arith.constant 0 : index
    %c0_14 = arith.constant 0 : index
    %c0_15 = arith.constant 0 : index
    %27 = vector.load %arg5[%c0_13, %c0_14, %c0_15] : memref<2x32x96xbf16, #tpu.memory_space<vmem>>, vector<1x32x96xbf16>
    %28 = vector.shape_cast %27 : vector<1x32x96xbf16> to vector<32x96xbf16>
    %cst_16 = arith.constant dense<0.000000e+00> : vector<8x96xf32>
    %29 = tpu.matmul %26, %28, %cst_16 {dimension_numbers = #tpu.dot_dimension_numbers<[1], [0], [0], [1], [0, 0, 1, 1], [], []>} : vector<8x32xbf16>, vector<32x96xbf16>, vector<8x96xf32> -> vector<8x96xf32>
    %c0_17 = arith.constant 0 : index
    %c0_18 = arith.constant 0 : index
    %c0_19 = arith.constant 0 : index
    %30 = vector.load %arg6[%c0_17, %c0_18, %c0_19] : memref<2x1x96xf32, #tpu.memory_space<vmem>>, vector<1x1x96xf32>
    %31 = vector.shape_cast %30 : vector<1x1x96xf32> to vector<1x96xf32>
    %32 = vector.broadcast %31 : vector<1x96xf32> to vector<8x96xf32>
    %33 = arith.addf %29, %32 : vector<8x96xf32>
    %cst_20 = arith.constant 0.000000e+00 : f32
    %34 = vector.broadcast %cst_20 : f32 to vector<8x32xf32>
    %35 = vector.extract_strided_slice %33 {offsets = [0, 0], sizes = [8, 8], strides = [1, 1]} : vector<8x96xf32> to vector<8x8xf32>
    %36 = arith.truncf %35 : vector<8x8xf32> to vector<8x8xbf16>
    %37 = vector.extract_strided_slice %33 {offsets = [0, 32], sizes = [8, 8], strides = [1, 1]} : vector<8x96xf32> to vector<8x8xf32>
    %38 = arith.truncf %37 : vector<8x8xf32> to vector<8x8xbf16>
    %39 = vector.extract_strided_slice %33 {offsets = [0, 64], sizes = [8, 8], strides = [1, 1]} : vector<8x96xf32> to vector<8x8xf32>
    %40 = arith.truncf %39 : vector<8x8xf32> to vector<8x8xbf16>
    %cst_21 = arith.constant dense<0.000000e+00> : vector<8x8xf32>
    %41 = tpu.matmul %36, %38, %cst_21 {dimension_numbers = #tpu.dot_dimension_numbers<[1], [1], [0], [0], [0, 0, 1, 0], [], []>} : vector<8x8xbf16>, vector<8x8xbf16>, vector<8x8xf32> -> vector<8x8xf32>
    %cst_22 = arith.constant 0.353553385 : f32
    %42 = vector.broadcast %cst_22 : f32 to vector<8x8xf32>
    %43 = arith.mulf %41, %42 : vector<8x8xf32>
    %44 = vector.broadcast %1 : vector<1x8xf32> to vector<8x8xf32>
    %45 = arith.addf %43, %44 : vector<8x8xf32>
    %cst_23 = arith.constant dense<0xFF800000> : vector<8xf32>
    %46 = vector.multi_reduction <maximumf>, %45, %cst_23 [1] : vector<8x8xf32> to vector<8xf32>
    %47 = vector.shape_cast %46 : vector<8xf32> to vector<8x1xf32>
    %48 = vector.broadcast %47 : vector<8x1xf32> to vector<8x8xf32>
    %49 = arith.subf %45, %48 : vector<8x8xf32>
    %50 = math.exp %49 : vector<8x8xf32>
    %cst_24 = arith.constant dense<0.000000e+00> : vector<8xf32>
    %51 = vector.multi_reduction <add>, %50, %cst_24 [1] : vector<8x8xf32> to vector<8xf32>
    %52 = vector.shape_cast %51 : vector<8xf32> to vector<8x1xf32>
    %53 = tpu.reciprocal %52 {approx = true} : vector<8x1xf32> -> vector<8x1xf32>
    %54 = vector.broadcast %53 : vector<8x1xf32> to vector<8x8xf32>
    %55 = arith.mulf %50, %54 : vector<8x8xf32>
    %56 = arith.truncf %55 : vector<8x8xf32> to vector<8x8xbf16>
    %cst_25 = arith.constant dense<0.000000e+00> : vector<8x8xf32>
    %57 = tpu.matmul %56, %40, %cst_25 {dimension_numbers = #tpu.dot_dimension_numbers<[1], [0], [0], [1], [0, 0, 1, 1], [], []>} : vector<8x8xbf16>, vector<8x8xbf16>, vector<8x8xf32> -> vector<8x8xf32>
    %58 = arith.truncf %57 : vector<8x8xf32> to vector<8x8xbf16>
    %c0_26 = arith.constant 0 : index
    %c0_27 = arith.constant 0 : index
    %c0_28 = arith.constant 0 : index
    %59 = vector.load %arg7[%c0_26, %c0_27, %c0_28] : memref<8x8x32xbf16, #tpu.memory_space<vmem>>, vector<1x8x32xbf16>
    %60 = vector.shape_cast %59 : vector<1x8x32xbf16> to vector<8x32xbf16>
    %cst_29 = arith.constant dense<0.000000e+00> : vector<8x32xf32>
    %61 = tpu.matmul %58, %60, %cst_29 {dimension_numbers = #tpu.dot_dimension_numbers<[1], [0], [0], [1], [0, 0, 1, 1], [], []>} : vector<8x8xbf16>, vector<8x32xbf16>, vector<8x32xf32> -> vector<8x32xf32>
    %62 = arith.addf %34, %61 : vector<8x32xf32>
    %63 = vector.extract_strided_slice %33 {offsets = [0, 8], sizes = [8, 8], strides = [1, 1]} : vector<8x96xf32> to vector<8x8xf32>
    %64 = arith.truncf %63 : vector<8x8xf32> to vector<8x8xbf16>
    %65 = vector.extract_strided_slice %33 {offsets = [0, 40], sizes = [8, 8], strides = [1, 1]} : vector<8x96xf32> to vector<8x8xf32>
    %66 = arith.truncf %65 : vector<8x8xf32> to vector<8x8xbf16>
    %67 = vector.extract_strided_slice %33 {offsets = [0, 72], sizes = [8, 8], strides = [1, 1]} : vector<8x96xf32> to vector<8x8xf32>
    %68 = arith.truncf %67 : vector<8x8xf32> to vector<8x8xbf16>
    %cst_30 = arith.constant dense<0.000000e+00> : vector<8x8xf32>
    %69 = tpu.matmul %64, %66, %cst_30 {dimension_numbers = #tpu.dot_dimension_numbers<[1], [1], [0], [0], [0, 0, 1, 0], [], []>} : vector<8x8xbf16>, vector<8x8xbf16>, vector<8x8xf32> -> vector<8x8xf32>
    %cst_31 = arith.constant 0.353553385 : f32
    %70 = vector.broadcast %cst_31 : f32 to vector<8x8xf32>
    %71 = arith.mulf %69, %70 : vector<8x8xf32>
    %72 = vector.broadcast %1 : vector<1x8xf32> to vector<8x8xf32>
    %73 = arith.addf %71, %72 : vector<8x8xf32>
    %cst_32 = arith.constant dense<0xFF800000> : vector<8xf32>
    %74 = vector.multi_reduction <maximumf>, %73, %cst_32 [1] : vector<8x8xf32> to vector<8xf32>
    %75 = vector.shape_cast %74 : vector<8xf32> to vector<8x1xf32>
    %76 = vector.broadcast %75 : vector<8x1xf32> to vector<8x8xf32>
    %77 = arith.subf %73, %76 : vector<8x8xf32>
    %78 = math.exp %77 : vector<8x8xf32>
    %cst_33 = arith.constant dense<0.000000e+00> : vector<8xf32>
    %79 = vector.multi_reduction <add>, %78, %cst_33 [1] : vector<8x8xf32> to vector<8xf32>
    %80 = vector.shape_cast %79 : vector<8xf32> to vector<8x1xf32>
    %81 = tpu.reciprocal %80 {approx = true} : vector<8x1xf32> -> vector<8x1xf32>
    %82 = vector.broadcast %81 : vector<8x1xf32> to vector<8x8xf32>
    %83 = arith.mulf %78, %82 : vector<8x8xf32>
    %84 = arith.truncf %83 : vector<8x8xf32> to vector<8x8xbf16>
    %cst_34 = arith.constant dense<0.000000e+00> : vector<8x8xf32>
    %85 = tpu.matmul %84, %68, %cst_34 {dimension_numbers = #tpu.dot_dimension_numbers<[1], [0], [0], [1], [0, 0, 1, 1], [], []>} : vector<8x8xbf16>, vector<8x8xbf16>, vector<8x8xf32> -> vector<8x8xf32>
    %86 = arith.truncf %85 : vector<8x8xf32> to vector<8x8xbf16>
    %c1 = arith.constant 1 : index
    %c0_35 = arith.constant 0 : index
    %c0_36 = arith.constant 0 : index
    %87 = vector.load %arg7[%c1, %c0_35, %c0_36] : memref<8x8x32xbf16, #tpu.memory_space<vmem>>, vector<1x8x32xbf16>
    %88 = vector.shape_cast %87 : vector<1x8x32xbf16> to vector<8x32xbf16>
    %cst_37 = arith.constant dense<0.000000e+00> : vector<8x32xf32>
    %89 = tpu.matmul %86, %88, %cst_37 {dimension_numbers = #tpu.dot_dimension_numbers<[1], [0], [0], [1], [0, 0, 1, 1], [], []>} : vector<8x8xbf16>, vector<8x32xbf16>, vector<8x32xf32> -> vector<8x32xf32>
    %90 = arith.addf %62, %89 : vector<8x32xf32>
    %91 = vector.extract_strided_slice %33 {offsets = [0, 16], sizes = [8, 8], strides = [1, 1]} : vector<8x96xf32> to vector<8x8xf32>
    %92 = arith.truncf %91 : vector<8x8xf32> to vector<8x8xbf16>
    %93 = vector.extract_strided_slice %33 {offsets = [0, 48], sizes = [8, 8], strides = [1, 1]} : vector<8x96xf32> to vector<8x8xf32>
    %94 = arith.truncf %93 : vector<8x8xf32> to vector<8x8xbf16>
    %95 = vector.extract_strided_slice %33 {offsets = [0, 80], sizes = [8, 8], strides = [1, 1]} : vector<8x96xf32> to vector<8x8xf32>
    %96 = arith.truncf %95 : vector<8x8xf32> to vector<8x8xbf16>
    %cst_38 = arith.constant dense<0.000000e+00> : vector<8x8xf32>
    %97 = tpu.matmul %92, %94, %cst_38 {dimension_numbers = #tpu.dot_dimension_numbers<[1], [1], [0], [0], [0, 0, 1, 0], [], []>} : vector<8x8xbf16>, vector<8x8xbf16>, vector<8x8xf32> -> vector<8x8xf32>
    %cst_39 = arith.constant 0.353553385 : f32
    %98 = vector.broadcast %cst_39 : f32 to vector<8x8xf32>
    %99 = arith.mulf %97, %98 : vector<8x8xf32>
    %100 = vector.broadcast %1 : vector<1x8xf32> to vector<8x8xf32>
    %101 = arith.addf %99, %100 : vector<8x8xf32>
    %cst_40 = arith.constant dense<0xFF800000> : vector<8xf32>
    %102 = vector.multi_reduction <maximumf>, %101, %cst_40 [1] : vector<8x8xf32> to vector<8xf32>
    %103 = vector.shape_cast %102 : vector<8xf32> to vector<8x1xf32>
    %104 = vector.broadcast %103 : vector<8x1xf32> to vector<8x8xf32>
    %105 = arith.subf %101, %104 : vector<8x8xf32>
    %106 = math.exp %105 : vector<8x8xf32>
    %cst_41 = arith.constant dense<0.000000e+00> : vector<8xf32>
    %107 = vector.multi_reduction <add>, %106, %cst_41 [1] : vector<8x8xf32> to vector<8xf32>
    %108 = vector.shape_cast %107 : vector<8xf32> to vector<8x1xf32>
    %109 = tpu.reciprocal %108 {approx = true} : vector<8x1xf32> -> vector<8x1xf32>
    %110 = vector.broadcast %109 : vector<8x1xf32> to vector<8x8xf32>
    %111 = arith.mulf %106, %110 : vector<8x8xf32>
    %112 = arith.truncf %111 : vector<8x8xf32> to vector<8x8xbf16>
    %cst_42 = arith.constant dense<0.000000e+00> : vector<8x8xf32>
    %113 = tpu.matmul %112, %96, %cst_42 {dimension_numbers = #tpu.dot_dimension_numbers<[1], [0], [0], [1], [0, 0, 1, 1], [], []>} : vector<8x8xbf16>, vector<8x8xbf16>, vector<8x8xf32> -> vector<8x8xf32>
    %114 = arith.truncf %113 : vector<8x8xf32> to vector<8x8xbf16>
    %c2 = arith.constant 2 : index
    %c0_43 = arith.constant 0 : index
    %c0_44 = arith.constant 0 : index
    %115 = vector.load %arg7[%c2, %c0_43, %c0_44] : memref<8x8x32xbf16, #tpu.memory_space<vmem>>, vector<1x8x32xbf16>
    %116 = vector.shape_cast %115 : vector<1x8x32xbf16> to vector<8x32xbf16>
    %cst_45 = arith.constant dense<0.000000e+00> : vector<8x32xf32>
    %117 = tpu.matmul %114, %116, %cst_45 {dimension_numbers = #tpu.dot_dimension_numbers<[1], [0], [0], [1], [0, 0, 1, 1], [], []>} : vector<8x8xbf16>, vector<8x32xbf16>, vector<8x32xf32> -> vector<8x32xf32>
    %118 = arith.addf %90, %117 : vector<8x32xf32>
    %119 = vector.extract_strided_slice %33 {offsets = [0, 24], sizes = [8, 8], strides = [1, 1]} : vector<8x96xf32> to vector<8x8xf32>
    %120 = arith.truncf %119 : vector<8x8xf32> to vector<8x8xbf16>
    %121 = vector.extract_strided_slice %33 {offsets = [0, 56], sizes = [8, 8], strides = [1, 1]} : vector<8x96xf32> to vector<8x8xf32>
    %122 = arith.truncf %121 : vector<8x8xf32> to vector<8x8xbf16>
    %123 = vector.extract_strided_slice %33 {offsets = [0, 88], sizes = [8, 8], strides = [1, 1]} : vector<8x96xf32> to vector<8x8xf32>
    %124 = arith.truncf %123 : vector<8x8xf32> to vector<8x8xbf16>
    %cst_46 = arith.constant dense<0.000000e+00> : vector<8x8xf32>
    %125 = tpu.matmul %120, %122, %cst_46 {dimension_numbers = #tpu.dot_dimension_numbers<[1], [1], [0], [0], [0, 0, 1, 0], [], []>} : vector<8x8xbf16>, vector<8x8xbf16>, vector<8x8xf32> -> vector<8x8xf32>
    %cst_47 = arith.constant 0.353553385 : f32
    %126 = vector.broadcast %cst_47 : f32 to vector<8x8xf32>
    %127 = arith.mulf %125, %126 : vector<8x8xf32>
    %128 = vector.broadcast %1 : vector<1x8xf32> to vector<8x8xf32>
    %129 = arith.addf %127, %128 : vector<8x8xf32>
    %cst_48 = arith.constant dense<0xFF800000> : vector<8xf32>
    %130 = vector.multi_reduction <maximumf>, %129, %cst_48 [1] : vector<8x8xf32> to vector<8xf32>
    %131 = vector.shape_cast %130 : vector<8xf32> to vector<8x1xf32>
    %132 = vector.broadcast %131 : vector<8x1xf32> to vector<8x8xf32>
    %133 = arith.subf %129, %132 : vector<8x8xf32>
    %134 = math.exp %133 : vector<8x8xf32>
    %cst_49 = arith.constant dense<0.000000e+00> : vector<8xf32>
    %135 = vector.multi_reduction <add>, %134, %cst_49 [1] : vector<8x8xf32> to vector<8xf32>
    %136 = vector.shape_cast %135 : vector<8xf32> to vector<8x1xf32>
    %137 = tpu.reciprocal %136 {approx = true} : vector<8x1xf32> -> vector<8x1xf32>
    %138 = vector.broadcast %137 : vector<8x1xf32> to vector<8x8xf32>
    %139 = arith.mulf %134, %138 : vector<8x8xf32>
    %140 = arith.truncf %139 : vector<8x8xf32> to vector<8x8xbf16>
    %cst_50 = arith.constant dense<0.000000e+00> : vector<8x8xf32>
    %141 = tpu.matmul %140, %124, %cst_50 {dimension_numbers = #tpu.dot_dimension_numbers<[1], [0], [0], [1], [0, 0, 1, 1], [], []>} : vector<8x8xbf16>, vector<8x8xbf16>, vector<8x8xf32> -> vector<8x8xf32>
    %142 = arith.truncf %141 : vector<8x8xf32> to vector<8x8xbf16>
    %c3 = arith.constant 3 : index
    %c0_51 = arith.constant 0 : index
    %c0_52 = arith.constant 0 : index
    %143 = vector.load %arg7[%c3, %c0_51, %c0_52] : memref<8x8x32xbf16, #tpu.memory_space<vmem>>, vector<1x8x32xbf16>
    %144 = vector.shape_cast %143 : vector<1x8x32xbf16> to vector<8x32xbf16>
    %cst_53 = arith.constant dense<0.000000e+00> : vector<8x32xf32>
    %145 = tpu.matmul %142, %144, %cst_53 {dimension_numbers = #tpu.dot_dimension_numbers<[1], [0], [0], [1], [0, 0, 1, 1], [], []>} : vector<8x8xbf16>, vector<8x32xbf16>, vector<8x32xf32> -> vector<8x32xf32>
    %146 = arith.addf %118, %145 : vector<8x32xf32>
    %c0_54 = arith.constant 0 : index
    %c0_55 = arith.constant 0 : index
    %c0_56 = arith.constant 0 : index
    %147 = vector.load %arg8[%c0_54, %c0_55, %c0_56] : memref<2x1x32xf32, #tpu.memory_space<vmem>>, vector<1x1x32xf32>
    %148 = vector.shape_cast %147 : vector<1x1x32xf32> to vector<1x32xf32>
    %149 = vector.broadcast %148 : vector<1x32xf32> to vector<8x32xf32>
    %150 = arith.addf %146, %149 : vector<8x32xf32>
    %151 = arith.addf %150, %25 : vector<8x32xf32>
    %c0_57 = arith.constant 0 : index
    %c0_58 = arith.constant 0 : index
    %c0_59 = arith.constant 0 : index
    %152 = vector.load %arg9[%c0_57, %c0_58, %c0_59] : memref<2x1x32xf32, #tpu.memory_space<vmem>>, vector<1x1x32xf32>
    %153 = vector.shape_cast %152 : vector<1x1x32xf32> to vector<1x32xf32>
    %c0_60 = arith.constant 0 : index
    %c0_61 = arith.constant 0 : index
    %c0_62 = arith.constant 0 : index
    %154 = vector.load %arg10[%c0_60, %c0_61, %c0_62] : memref<2x1x32xf32, #tpu.memory_space<vmem>>, vector<1x1x32xf32>
    %155 = vector.shape_cast %154 : vector<1x1x32xf32> to vector<1x32xf32>
    %cst_63 = arith.constant dense<0.000000e+00> : vector<8xf32>
    %156 = vector.multi_reduction <add>, %151, %cst_63 [1] : vector<8x32xf32> to vector<8xf32>
    %157 = vector.shape_cast %156 : vector<8xf32> to vector<8x1xf32>
    %cst_64 = arith.constant 3.200000e+01 : f32
    %158 = vector.broadcast %cst_64 : f32 to vector<8x1xf32>
    %159 = arith.divf %157, %158 : vector<8x1xf32>
    %160 = vector.broadcast %159 : vector<8x1xf32> to vector<8x32xf32>
    %161 = arith.subf %151, %160 : vector<8x32xf32>
    %162 = arith.mulf %161, %161 : vector<8x32xf32>
    %cst_65 = arith.constant dense<0.000000e+00> : vector<8xf32>
    %163 = vector.multi_reduction <add>, %162, %cst_65 [1] : vector<8x32xf32> to vector<8xf32>
    %164 = vector.shape_cast %163 : vector<8xf32> to vector<8x1xf32>
    %cst_66 = arith.constant 3.200000e+01 : f32
    %165 = vector.broadcast %cst_66 : f32 to vector<8x1xf32>
    %166 = arith.divf %164, %165 : vector<8x1xf32>
    %cst_67 = arith.constant 9.99999996E-13 : f32
    %167 = vector.broadcast %cst_67 : f32 to vector<8x1xf32>
    %168 = arith.addf %166, %167 : vector<8x1xf32>
    %169 = math.rsqrt %168 : vector<8x1xf32>
    %170 = vector.broadcast %169 : vector<8x1xf32> to vector<8x32xf32>
    %171 = arith.mulf %161, %170 : vector<8x32xf32>
    %172 = vector.broadcast %153 : vector<1x32xf32> to vector<8x32xf32>
    %173 = arith.mulf %171, %172 : vector<8x32xf32>
    %174 = vector.broadcast %155 : vector<1x32xf32> to vector<8x32xf32>
    %175 = arith.addf %173, %174 : vector<8x32xf32>
    %176 = arith.truncf %175 : vector<8x32xf32> to vector<8x32xbf16>
    %c0_68 = arith.constant 0 : index
    %c0_69 = arith.constant 0 : index
    %c0_70 = arith.constant 0 : index
    %177 = vector.load %arg11[%c0_68, %c0_69, %c0_70] : memref<2x32x64xbf16, #tpu.memory_space<vmem>>, vector<1x32x64xbf16>
    %178 = vector.shape_cast %177 : vector<1x32x64xbf16> to vector<32x64xbf16>
    %cst_71 = arith.constant dense<0.000000e+00> : vector<8x64xf32>
    %179 = tpu.matmul %176, %178, %cst_71 {dimension_numbers = #tpu.dot_dimension_numbers<[1], [0], [0], [1], [0, 0, 1, 1], [], []>} : vector<8x32xbf16>, vector<32x64xbf16>, vector<8x64xf32> -> vector<8x64xf32>
    %c0_72 = arith.constant 0 : index
    %c0_73 = arith.constant 0 : index
    %c0_74 = arith.constant 0 : index
    %180 = vector.load %arg12[%c0_72, %c0_73, %c0_74] : memref<2x1x64xf32, #tpu.memory_space<vmem>>, vector<1x1x64xf32>
    %181 = vector.shape_cast %180 : vector<1x1x64xf32> to vector<1x64xf32>
    %182 = vector.broadcast %181 : vector<1x64xf32> to vector<8x64xf32>
    %183 = arith.addf %179, %182 : vector<8x64xf32>
    %184 = arith.mulf %183, %183 : vector<8x64xf32>
    %185 = arith.mulf %183, %184 : vector<8x64xf32>
    %cst_75 = arith.constant 4.471500e-02 : f32
    %186 = vector.broadcast %cst_75 : f32 to vector<8x64xf32>
    %187 = arith.mulf %186, %185 : vector<8x64xf32>
    %188 = arith.addf %183, %187 : vector<8x64xf32>
    %cst_76 = arith.constant 0.797884583 : f32
    %189 = vector.broadcast %cst_76 : f32 to vector<8x64xf32>
    %190 = arith.mulf %189, %188 : vector<8x64xf32>
    %191 = math.tanh %190 : vector<8x64xf32>
    %cst_77 = arith.constant 1.000000e+00 : f32
    %192 = vector.broadcast %cst_77 : f32 to vector<8x64xf32>
    %193 = arith.addf %192, %191 : vector<8x64xf32>
    %cst_78 = arith.constant 5.000000e-01 : f32
    %194 = vector.broadcast %cst_78 : f32 to vector<8x64xf32>
    %195 = arith.mulf %194, %193 : vector<8x64xf32>
    %196 = arith.mulf %183, %195 : vector<8x64xf32>
    %197 = arith.truncf %196 : vector<8x64xf32> to vector<8x64xbf16>
    %c0_79 = arith.constant 0 : index
    %c0_80 = arith.constant 0 : index
    %c0_81 = arith.constant 0 : index
    %198 = vector.load %arg13[%c0_79, %c0_80, %c0_81] : memref<2x64x32xbf16, #tpu.memory_space<vmem>>, vector<1x64x32xbf16>
    %199 = vector.shape_cast %198 : vector<1x64x32xbf16> to vector<64x32xbf16>
    %cst_82 = arith.constant dense<0.000000e+00> : vector<8x32xf32>
    %200 = tpu.matmul %197, %199, %cst_82 {dimension_numbers = #tpu.dot_dimension_numbers<[1], [0], [0], [1], [0, 0, 1, 1], [], []>} : vector<8x64xbf16>, vector<64x32xbf16>, vector<8x32xf32> -> vector<8x32xf32>
    %c0_83 = arith.constant 0 : index
    %c0_84 = arith.constant 0 : index
    %c0_85 = arith.constant 0 : index
    %201 = vector.load %arg14[%c0_83, %c0_84, %c0_85] : memref<2x1x32xf32, #tpu.memory_space<vmem>>, vector<1x1x32xf32>
    %202 = vector.shape_cast %201 : vector<1x1x32xf32> to vector<1x32xf32>
    %203 = vector.broadcast %202 : vector<1x32xf32> to vector<8x32xf32>
    %204 = arith.addf %200, %203 : vector<8x32xf32>
    %205 = arith.addf %204, %175 : vector<8x32xf32>
    %c0_86 = arith.constant 0 : index
    %c0_87 = arith.constant 0 : index
    %c0_88 = arith.constant 0 : index
    %206 = vector.load %arg15[%c0_86, %c0_87, %c0_88] : memref<2x1x32xf32, #tpu.memory_space<vmem>>, vector<1x1x32xf32>
    %207 = vector.shape_cast %206 : vector<1x1x32xf32> to vector<1x32xf32>
    %c0_89 = arith.constant 0 : index
    %c0_90 = arith.constant 0 : index
    %c0_91 = arith.constant 0 : index
    %208 = vector.load %arg16[%c0_89, %c0_90, %c0_91] : memref<2x1x32xf32, #tpu.memory_space<vmem>>, vector<1x1x32xf32>
    %209 = vector.shape_cast %208 : vector<1x1x32xf32> to vector<1x32xf32>
    %cst_92 = arith.constant dense<0.000000e+00> : vector<8xf32>
    %210 = vector.multi_reduction <add>, %205, %cst_92 [1] : vector<8x32xf32> to vector<8xf32>
    %211 = vector.shape_cast %210 : vector<8xf32> to vector<8x1xf32>
    %cst_93 = arith.constant 3.200000e+01 : f32
    %212 = vector.broadcast %cst_93 : f32 to vector<8x1xf32>
    %213 = arith.divf %211, %212 : vector<8x1xf32>
    %214 = vector.broadcast %213 : vector<8x1xf32> to vector<8x32xf32>
    %215 = arith.subf %205, %214 : vector<8x32xf32>
    %216 = arith.mulf %215, %215 : vector<8x32xf32>
    %cst_94 = arith.constant dense<0.000000e+00> : vector<8xf32>
    %217 = vector.multi_reduction <add>, %216, %cst_94 [1] : vector<8x32xf32> to vector<8xf32>
    %218 = vector.shape_cast %217 : vector<8xf32> to vector<8x1xf32>
    %cst_95 = arith.constant 3.200000e+01 : f32
    %219 = vector.broadcast %cst_95 : f32 to vector<8x1xf32>
    %220 = arith.divf %218, %219 : vector<8x1xf32>
    %cst_96 = arith.constant 9.99999996E-13 : f32
    %221 = vector.broadcast %cst_96 : f32 to vector<8x1xf32>
    %222 = arith.addf %220, %221 : vector<8x1xf32>
    %223 = math.rsqrt %222 : vector<8x1xf32>
    %224 = vector.broadcast %223 : vector<8x1xf32> to vector<8x32xf32>
    %225 = arith.mulf %215, %224 : vector<8x32xf32>
    %226 = vector.broadcast %207 : vector<1x32xf32> to vector<8x32xf32>
    %227 = arith.mulf %225, %226 : vector<8x32xf32>
    %228 = vector.broadcast %209 : vector<1x32xf32> to vector<8x32xf32>
    %229 = arith.addf %227, %228 : vector<8x32xf32>
    %230 = arith.truncf %229 : vector<8x32xf32> to vector<8x32xbf16>
    %c1_97 = arith.constant 1 : index
    %c0_98 = arith.constant 0 : index
    %c0_99 = arith.constant 0 : index
    %231 = vector.load %arg5[%c1_97, %c0_98, %c0_99] : memref<2x32x96xbf16, #tpu.memory_space<vmem>>, vector<1x32x96xbf16>
    %232 = vector.shape_cast %231 : vector<1x32x96xbf16> to vector<32x96xbf16>
    %cst_100 = arith.constant dense<0.000000e+00> : vector<8x96xf32>
    %233 = tpu.matmul %230, %232, %cst_100 {dimension_numbers = #tpu.dot_dimension_numbers<[1], [0], [0], [1], [0, 0, 1, 1], [], []>} : vector<8x32xbf16>, vector<32x96xbf16>, vector<8x96xf32> -> vector<8x96xf32>
    %c1_101 = arith.constant 1 : index
    %c0_102 = arith.constant 0 : index
    %c0_103 = arith.constant 0 : index
    %234 = vector.load %arg6[%c1_101, %c0_102, %c0_103] : memref<2x1x96xf32, #tpu.memory_space<vmem>>, vector<1x1x96xf32>
    %235 = vector.shape_cast %234 : vector<1x1x96xf32> to vector<1x96xf32>
    %236 = vector.broadcast %235 : vector<1x96xf32> to vector<8x96xf32>
    %237 = arith.addf %233, %236 : vector<8x96xf32>
    %cst_104 = arith.constant 0.000000e+00 : f32
    %238 = vector.broadcast %cst_104 : f32 to vector<8x32xf32>
    %239 = vector.extract_strided_slice %237 {offsets = [0, 0], sizes = [8, 8], strides = [1, 1]} : vector<8x96xf32> to vector<8x8xf32>
    %240 = arith.truncf %239 : vector<8x8xf32> to vector<8x8xbf16>
    %241 = vector.extract_strided_slice %237 {offsets = [0, 32], sizes = [8, 8], strides = [1, 1]} : vector<8x96xf32> to vector<8x8xf32>
    %242 = arith.truncf %241 : vector<8x8xf32> to vector<8x8xbf16>
    %243 = vector.extract_strided_slice %237 {offsets = [0, 64], sizes = [8, 8], strides = [1, 1]} : vector<8x96xf32> to vector<8x8xf32>
    %244 = arith.truncf %243 : vector<8x8xf32> to vector<8x8xbf16>
    %cst_105 = arith.constant dense<0.000000e+00> : vector<8x8xf32>
    %245 = tpu.matmul %240, %242, %cst_105 {dimension_numbers = #tpu.dot_dimension_numbers<[1], [1], [0], [0], [0, 0, 1, 0], [], []>} : vector<8x8xbf16>, vector<8x8xbf16>, vector<8x8xf32> -> vector<8x8xf32>
    %cst_106 = arith.constant 0.353553385 : f32
    %246 = vector.broadcast %cst_106 : f32 to vector<8x8xf32>
    %247 = arith.mulf %245, %246 : vector<8x8xf32>
    %248 = vector.broadcast %1 : vector<1x8xf32> to vector<8x8xf32>
    %249 = arith.addf %247, %248 : vector<8x8xf32>
    %cst_107 = arith.constant dense<0xFF800000> : vector<8xf32>
    %250 = vector.multi_reduction <maximumf>, %249, %cst_107 [1] : vector<8x8xf32> to vector<8xf32>
    %251 = vector.shape_cast %250 : vector<8xf32> to vector<8x1xf32>
    %252 = vector.broadcast %251 : vector<8x1xf32> to vector<8x8xf32>
    %253 = arith.subf %249, %252 : vector<8x8xf32>
    %254 = math.exp %253 : vector<8x8xf32>
    %cst_108 = arith.constant dense<0.000000e+00> : vector<8xf32>
    %255 = vector.multi_reduction <add>, %254, %cst_108 [1] : vector<8x8xf32> to vector<8xf32>
    %256 = vector.shape_cast %255 : vector<8xf32> to vector<8x1xf32>
    %257 = tpu.reciprocal %256 {approx = true} : vector<8x1xf32> -> vector<8x1xf32>
    %258 = vector.broadcast %257 : vector<8x1xf32> to vector<8x8xf32>
    %259 = arith.mulf %254, %258 : vector<8x8xf32>
    %260 = arith.truncf %259 : vector<8x8xf32> to vector<8x8xbf16>
    %cst_109 = arith.constant dense<0.000000e+00> : vector<8x8xf32>
    %261 = tpu.matmul %260, %244, %cst_109 {dimension_numbers = #tpu.dot_dimension_numbers<[1], [0], [0], [1], [0, 0, 1, 1], [], []>} : vector<8x8xbf16>, vector<8x8xbf16>, vector<8x8xf32> -> vector<8x8xf32>
    %262 = arith.truncf %261 : vector<8x8xf32> to vector<8x8xbf16>
    %c4 = arith.constant 4 : index
    %c0_110 = arith.constant 0 : index
    %c0_111 = arith.constant 0 : index
    %263 = vector.load %arg7[%c4, %c0_110, %c0_111] : memref<8x8x32xbf16, #tpu.memory_space<vmem>>, vector<1x8x32xbf16>
    %264 = vector.shape_cast %263 : vector<1x8x32xbf16> to vector<8x32xbf16>
    %cst_112 = arith.constant dense<0.000000e+00> : vector<8x32xf32>
    %265 = tpu.matmul %262, %264, %cst_112 {dimension_numbers = #tpu.dot_dimension_numbers<[1], [0], [0], [1], [0, 0, 1, 1], [], []>} : vector<8x8xbf16>, vector<8x32xbf16>, vector<8x32xf32> -> vector<8x32xf32>
    %266 = arith.addf %238, %265 : vector<8x32xf32>
    %267 = vector.extract_strided_slice %237 {offsets = [0, 8], sizes = [8, 8], strides = [1, 1]} : vector<8x96xf32> to vector<8x8xf32>
    %268 = arith.truncf %267 : vector<8x8xf32> to vector<8x8xbf16>
    %269 = vector.extract_strided_slice %237 {offsets = [0, 40], sizes = [8, 8], strides = [1, 1]} : vector<8x96xf32> to vector<8x8xf32>
    %270 = arith.truncf %269 : vector<8x8xf32> to vector<8x8xbf16>
    %271 = vector.extract_strided_slice %237 {offsets = [0, 72], sizes = [8, 8], strides = [1, 1]} : vector<8x96xf32> to vector<8x8xf32>
    %272 = arith.truncf %271 : vector<8x8xf32> to vector<8x8xbf16>
    %cst_113 = arith.constant dense<0.000000e+00> : vector<8x8xf32>
    %273 = tpu.matmul %268, %270, %cst_113 {dimension_numbers = #tpu.dot_dimension_numbers<[1], [1], [0], [0], [0, 0, 1, 0], [], []>} : vector<8x8xbf16>, vector<8x8xbf16>, vector<8x8xf32> -> vector<8x8xf32>
    %cst_114 = arith.constant 0.353553385 : f32
    %274 = vector.broadcast %cst_114 : f32 to vector<8x8xf32>
    %275 = arith.mulf %273, %274 : vector<8x8xf32>
    %276 = vector.broadcast %1 : vector<1x8xf32> to vector<8x8xf32>
    %277 = arith.addf %275, %276 : vector<8x8xf32>
    %cst_115 = arith.constant dense<0xFF800000> : vector<8xf32>
    %278 = vector.multi_reduction <maximumf>, %277, %cst_115 [1] : vector<8x8xf32> to vector<8xf32>
    %279 = vector.shape_cast %278 : vector<8xf32> to vector<8x1xf32>
    %280 = vector.broadcast %279 : vector<8x1xf32> to vector<8x8xf32>
    %281 = arith.subf %277, %280 : vector<8x8xf32>
    %282 = math.exp %281 : vector<8x8xf32>
    %cst_116 = arith.constant dense<0.000000e+00> : vector<8xf32>
    %283 = vector.multi_reduction <add>, %282, %cst_116 [1] : vector<8x8xf32> to vector<8xf32>
    %284 = vector.shape_cast %283 : vector<8xf32> to vector<8x1xf32>
    %285 = tpu.reciprocal %284 {approx = true} : vector<8x1xf32> -> vector<8x1xf32>
    %286 = vector.broadcast %285 : vector<8x1xf32> to vector<8x8xf32>
    %287 = arith.mulf %282, %286 : vector<8x8xf32>
    %288 = arith.truncf %287 : vector<8x8xf32> to vector<8x8xbf16>
    %cst_117 = arith.constant dense<0.000000e+00> : vector<8x8xf32>
    %289 = tpu.matmul %288, %272, %cst_117 {dimension_numbers = #tpu.dot_dimension_numbers<[1], [0], [0], [1], [0, 0, 1, 1], [], []>} : vector<8x8xbf16>, vector<8x8xbf16>, vector<8x8xf32> -> vector<8x8xf32>
    %290 = arith.truncf %289 : vector<8x8xf32> to vector<8x8xbf16>
    %c5 = arith.constant 5 : index
    %c0_118 = arith.constant 0 : index
    %c0_119 = arith.constant 0 : index
    %291 = vector.load %arg7[%c5, %c0_118, %c0_119] : memref<8x8x32xbf16, #tpu.memory_space<vmem>>, vector<1x8x32xbf16>
    %292 = vector.shape_cast %291 : vector<1x8x32xbf16> to vector<8x32xbf16>
    %cst_120 = arith.constant dense<0.000000e+00> : vector<8x32xf32>
    %293 = tpu.matmul %290, %292, %cst_120 {dimension_numbers = #tpu.dot_dimension_numbers<[1], [0], [0], [1], [0, 0, 1, 1], [], []>} : vector<8x8xbf16>, vector<8x32xbf16>, vector<8x32xf32> -> vector<8x32xf32>
    %294 = arith.addf %266, %293 : vector<8x32xf32>
    %295 = vector.extract_strided_slice %237 {offsets = [0, 16], sizes = [8, 8], strides = [1, 1]} : vector<8x96xf32> to vector<8x8xf32>
    %296 = arith.truncf %295 : vector<8x8xf32> to vector<8x8xbf16>
    %297 = vector.extract_strided_slice %237 {offsets = [0, 48], sizes = [8, 8], strides = [1, 1]} : vector<8x96xf32> to vector<8x8xf32>
    %298 = arith.truncf %297 : vector<8x8xf32> to vector<8x8xbf16>
    %299 = vector.extract_strided_slice %237 {offsets = [0, 80], sizes = [8, 8], strides = [1, 1]} : vector<8x96xf32> to vector<8x8xf32>
    %300 = arith.truncf %299 : vector<8x8xf32> to vector<8x8xbf16>
    %cst_121 = arith.constant dense<0.000000e+00> : vector<8x8xf32>
    %301 = tpu.matmul %296, %298, %cst_121 {dimension_numbers = #tpu.dot_dimension_numbers<[1], [1], [0], [0], [0, 0, 1, 0], [], []>} : vector<8x8xbf16>, vector<8x8xbf16>, vector<8x8xf32> -> vector<8x8xf32>
    %cst_122 = arith.constant 0.353553385 : f32
    %302 = vector.broadcast %cst_122 : f32 to vector<8x8xf32>
    %303 = arith.mulf %301, %302 : vector<8x8xf32>
    %304 = vector.broadcast %1 : vector<1x8xf32> to vector<8x8xf32>
    %305 = arith.addf %303, %304 : vector<8x8xf32>
    %cst_123 = arith.constant dense<0xFF800000> : vector<8xf32>
    %306 = vector.multi_reduction <maximumf>, %305, %cst_123 [1] : vector<8x8xf32> to vector<8xf32>
    %307 = vector.shape_cast %306 : vector<8xf32> to vector<8x1xf32>
    %308 = vector.broadcast %307 : vector<8x1xf32> to vector<8x8xf32>
    %309 = arith.subf %305, %308 : vector<8x8xf32>
    %310 = math.exp %309 : vector<8x8xf32>
    %cst_124 = arith.constant dense<0.000000e+00> : vector<8xf32>
    %311 = vector.multi_reduction <add>, %310, %cst_124 [1] : vector<8x8xf32> to vector<8xf32>
    %312 = vector.shape_cast %311 : vector<8xf32> to vector<8x1xf32>
    %313 = tpu.reciprocal %312 {approx = true} : vector<8x1xf32> -> vector<8x1xf32>
    %314 = vector.broadcast %313 : vector<8x1xf32> to vector<8x8xf32>
    %315 = arith.mulf %310, %314 : vector<8x8xf32>
    %316 = arith.truncf %315 : vector<8x8xf32> to vector<8x8xbf16>
    %cst_125 = arith.constant dense<0.000000e+00> : vector<8x8xf32>
    %317 = tpu.matmul %316, %300, %cst_125 {dimension_numbers = #tpu.dot_dimension_numbers<[1], [0], [0], [1], [0, 0, 1, 1], [], []>} : vector<8x8xbf16>, vector<8x8xbf16>, vector<8x8xf32> -> vector<8x8xf32>
    %318 = arith.truncf %317 : vector<8x8xf32> to vector<8x8xbf16>
    %c6 = arith.constant 6 : index
    %c0_126 = arith.constant 0 : index
    %c0_127 = arith.constant 0 : index
    %319 = vector.load %arg7[%c6, %c0_126, %c0_127] : memref<8x8x32xbf16, #tpu.memory_space<vmem>>, vector<1x8x32xbf16>
    %320 = vector.shape_cast %319 : vector<1x8x32xbf16> to vector<8x32xbf16>
    %cst_128 = arith.constant dense<0.000000e+00> : vector<8x32xf32>
    %321 = tpu.matmul %318, %320, %cst_128 {dimension_numbers = #tpu.dot_dimension_numbers<[1], [0], [0], [1], [0, 0, 1, 1], [], []>} : vector<8x8xbf16>, vector<8x32xbf16>, vector<8x32xf32> -> vector<8x32xf32>
    %322 = arith.addf %294, %321 : vector<8x32xf32>
    %323 = vector.extract_strided_slice %237 {offsets = [0, 24], sizes = [8, 8], strides = [1, 1]} : vector<8x96xf32> to vector<8x8xf32>
    %324 = arith.truncf %323 : vector<8x8xf32> to vector<8x8xbf16>
    %325 = vector.extract_strided_slice %237 {offsets = [0, 56], sizes = [8, 8], strides = [1, 1]} : vector<8x96xf32> to vector<8x8xf32>
    %326 = arith.truncf %325 : vector<8x8xf32> to vector<8x8xbf16>
    %327 = vector.extract_strided_slice %237 {offsets = [0, 88], sizes = [8, 8], strides = [1, 1]} : vector<8x96xf32> to vector<8x8xf32>
    %328 = arith.truncf %327 : vector<8x8xf32> to vector<8x8xbf16>
    %cst_129 = arith.constant dense<0.000000e+00> : vector<8x8xf32>
    %329 = tpu.matmul %324, %326, %cst_129 {dimension_numbers = #tpu.dot_dimension_numbers<[1], [1], [0], [0], [0, 0, 1, 0], [], []>} : vector<8x8xbf16>, vector<8x8xbf16>, vector<8x8xf32> -> vector<8x8xf32>
    %cst_130 = arith.constant 0.353553385 : f32
    %330 = vector.broadcast %cst_130 : f32 to vector<8x8xf32>
    %331 = arith.mulf %329, %330 : vector<8x8xf32>
    %332 = vector.broadcast %1 : vector<1x8xf32> to vector<8x8xf32>
    %333 = arith.addf %331, %332 : vector<8x8xf32>
    %cst_131 = arith.constant dense<0xFF800000> : vector<8xf32>
    %334 = vector.multi_reduction <maximumf>, %333, %cst_131 [1] : vector<8x8xf32> to vector<8xf32>
    %335 = vector.shape_cast %334 : vector<8xf32> to vector<8x1xf32>
    %336 = vector.broadcast %335 : vector<8x1xf32> to vector<8x8xf32>
    %337 = arith.subf %333, %336 : vector<8x8xf32>
    %338 = math.exp %337 : vector<8x8xf32>
    %cst_132 = arith.constant dense<0.000000e+00> : vector<8xf32>
    %339 = vector.multi_reduction <add>, %338, %cst_132 [1] : vector<8x8xf32> to vector<8xf32>
    %340 = vector.shape_cast %339 : vector<8xf32> to vector<8x1xf32>
    %341 = tpu.reciprocal %340 {approx = true} : vector<8x1xf32> -> vector<8x1xf32>
    %342 = vector.broadcast %341 : vector<8x1xf32> to vector<8x8xf32>
    %343 = arith.mulf %338, %342 : vector<8x8xf32>
    %344 = arith.truncf %343 : vector<8x8xf32> to vector<8x8xbf16>
    %cst_133 = arith.constant dense<0.000000e+00> : vector<8x8xf32>
    %345 = tpu.matmul %344, %328, %cst_133 {dimension_numbers = #tpu.dot_dimension_numbers<[1], [0], [0], [1], [0, 0, 1, 1], [], []>} : vector<8x8xbf16>, vector<8x8xbf16>, vector<8x8xf32> -> vector<8x8xf32>
    %346 = arith.truncf %345 : vector<8x8xf32> to vector<8x8xbf16>
    %c7 = arith.constant 7 : index
    %c0_134 = arith.constant 0 : index
    %c0_135 = arith.constant 0 : index
    %347 = vector.load %arg7[%c7, %c0_134, %c0_135] : memref<8x8x32xbf16, #tpu.memory_space<vmem>>, vector<1x8x32xbf16>
    %348 = vector.shape_cast %347 : vector<1x8x32xbf16> to vector<8x32xbf16>
    %cst_136 = arith.constant dense<0.000000e+00> : vector<8x32xf32>
    %349 = tpu.matmul %346, %348, %cst_136 {dimension_numbers = #tpu.dot_dimension_numbers<[1], [0], [0], [1], [0, 0, 1, 1], [], []>} : vector<8x8xbf16>, vector<8x32xbf16>, vector<8x32xf32> -> vector<8x32xf32>
    %350 = arith.addf %322, %349 : vector<8x32xf32>
    %c1_137 = arith.constant 1 : index
    %c0_138 = arith.constant 0 : index
    %c0_139 = arith.constant 0 : index
    %351 = vector.load %arg8[%c1_137, %c0_138, %c0_139] : memref<2x1x32xf32, #tpu.memory_space<vmem>>, vector<1x1x32xf32>
    %352 = vector.shape_cast %351 : vector<1x1x32xf32> to vector<1x32xf32>
    %353 = vector.broadcast %352 : vector<1x32xf32> to vector<8x32xf32>
    %354 = arith.addf %350, %353 : vector<8x32xf32>
    %355 = arith.addf %354, %229 : vector<8x32xf32>
    %c1_140 = arith.constant 1 : index
    %c0_141 = arith.constant 0 : index
    %c0_142 = arith.constant 0 : index
    %356 = vector.load %arg9[%c1_140, %c0_141, %c0_142] : memref<2x1x32xf32, #tpu.memory_space<vmem>>, vector<1x1x32xf32>
    %357 = vector.shape_cast %356 : vector<1x1x32xf32> to vector<1x32xf32>
    %c1_143 = arith.constant 1 : index
    %c0_144 = arith.constant 0 : index
    %c0_145 = arith.constant 0 : index
    %358 = vector.load %arg10[%c1_143, %c0_144, %c0_145] : memref<2x1x32xf32, #tpu.memory_space<vmem>>, vector<1x1x32xf32>
    %359 = vector.shape_cast %358 : vector<1x1x32xf32> to vector<1x32xf32>
    %cst_146 = arith.constant dense<0.000000e+00> : vector<8xf32>
    %360 = vector.multi_reduction <add>, %355, %cst_146 [1] : vector<8x32xf32> to vector<8xf32>
    %361 = vector.shape_cast %360 : vector<8xf32> to vector<8x1xf32>
    %cst_147 = arith.constant 3.200000e+01 : f32
    %362 = vector.broadcast %cst_147 : f32 to vector<8x1xf32>
    %363 = arith.divf %361, %362 : vector<8x1xf32>
    %364 = vector.broadcast %363 : vector<8x1xf32> to vector<8x32xf32>
    %365 = arith.subf %355, %364 : vector<8x32xf32>
    %366 = arith.mulf %365, %365 : vector<8x32xf32>
    %cst_148 = arith.constant dense<0.000000e+00> : vector<8xf32>
    %367 = vector.multi_reduction <add>, %366, %cst_148 [1] : vector<8x32xf32> to vector<8xf32>
    %368 = vector.shape_cast %367 : vector<8xf32> to vector<8x1xf32>
    %cst_149 = arith.constant 3.200000e+01 : f32
    %369 = vector.broadcast %cst_149 : f32 to vector<8x1xf32>
    %370 = arith.divf %368, %369 : vector<8x1xf32>
    %cst_150 = arith.constant 9.99999996E-13 : f32
    %371 = vector.broadcast %cst_150 : f32 to vector<8x1xf32>
    %372 = arith.addf %370, %371 : vector<8x1xf32>
    %373 = math.rsqrt %372 : vector<8x1xf32>
    %374 = vector.broadcast %373 : vector<8x1xf32> to vector<8x32xf32>
    %375 = arith.mulf %365, %374 : vector<8x32xf32>
    %376 = vector.broadcast %357 : vector<1x32xf32> to vector<8x32xf32>
    %377 = arith.mulf %375, %376 : vector<8x32xf32>
    %378 = vector.broadcast %359 : vector<1x32xf32> to vector<8x32xf32>
    %379 = arith.addf %377, %378 : vector<8x32xf32>
    %380 = arith.truncf %379 : vector<8x32xf32> to vector<8x32xbf16>
    %c1_151 = arith.constant 1 : index
    %c0_152 = arith.constant 0 : index
    %c0_153 = arith.constant 0 : index
    %381 = vector.load %arg11[%c1_151, %c0_152, %c0_153] : memref<2x32x64xbf16, #tpu.memory_space<vmem>>, vector<1x32x64xbf16>
    %382 = vector.shape_cast %381 : vector<1x32x64xbf16> to vector<32x64xbf16>
    %cst_154 = arith.constant dense<0.000000e+00> : vector<8x64xf32>
    %383 = tpu.matmul %380, %382, %cst_154 {dimension_numbers = #tpu.dot_dimension_numbers<[1], [0], [0], [1], [0, 0, 1, 1], [], []>} : vector<8x32xbf16>, vector<32x64xbf16>, vector<8x64xf32> -> vector<8x64xf32>
    %c1_155 = arith.constant 1 : index
    %c0_156 = arith.constant 0 : index
    %c0_157 = arith.constant 0 : index
    %384 = vector.load %arg12[%c1_155, %c0_156, %c0_157] : memref<2x1x64xf32, #tpu.memory_space<vmem>>, vector<1x1x64xf32>
    %385 = vector.shape_cast %384 : vector<1x1x64xf32> to vector<1x64xf32>
    %386 = vector.broadcast %385 : vector<1x64xf32> to vector<8x64xf32>
    %387 = arith.addf %383, %386 : vector<8x64xf32>
    %388 = arith.mulf %387, %387 : vector<8x64xf32>
    %389 = arith.mulf %387, %388 : vector<8x64xf32>
    %cst_158 = arith.constant 4.471500e-02 : f32
    %390 = vector.broadcast %cst_158 : f32 to vector<8x64xf32>
    %391 = arith.mulf %390, %389 : vector<8x64xf32>
    %392 = arith.addf %387, %391 : vector<8x64xf32>
    %cst_159 = arith.constant 0.797884583 : f32
    %393 = vector.broadcast %cst_159 : f32 to vector<8x64xf32>
    %394 = arith.mulf %393, %392 : vector<8x64xf32>
    %395 = math.tanh %394 : vector<8x64xf32>
    %cst_160 = arith.constant 1.000000e+00 : f32
    %396 = vector.broadcast %cst_160 : f32 to vector<8x64xf32>
    %397 = arith.addf %396, %395 : vector<8x64xf32>
    %cst_161 = arith.constant 5.000000e-01 : f32
    %398 = vector.broadcast %cst_161 : f32 to vector<8x64xf32>
    %399 = arith.mulf %398, %397 : vector<8x64xf32>
    %400 = arith.mulf %387, %399 : vector<8x64xf32>
    %401 = arith.truncf %400 : vector<8x64xf32> to vector<8x64xbf16>
    %c1_162 = arith.constant 1 : index
    %c0_163 = arith.constant 0 : index
    %c0_164 = arith.constant 0 : index
    %402 = vector.load %arg13[%c1_162, %c0_163, %c0_164] : memref<2x64x32xbf16, #tpu.memory_space<vmem>>, vector<1x64x32xbf16>
    %403 = vector.shape_cast %402 : vector<1x64x32xbf16> to vector<64x32xbf16>
    %cst_165 = arith.constant dense<0.000000e+00> : vector<8x32xf32>
    %404 = tpu.matmul %401, %403, %cst_165 {dimension_numbers = #tpu.dot_dimension_numbers<[1], [0], [0], [1], [0, 0, 1, 1], [], []>} : vector<8x64xbf16>, vector<64x32xbf16>, vector<8x32xf32> -> vector<8x32xf32>
    %c1_166 = arith.constant 1 : index
    %c0_167 = arith.constant 0 : index
    %c0_168 = arith.constant 0 : index
    %405 = vector.load %arg14[%c1_166, %c0_167, %c0_168] : memref<2x1x32xf32, #tpu.memory_space<vmem>>, vector<1x1x32xf32>
    %406 = vector.shape_cast %405 : vector<1x1x32xf32> to vector<1x32xf32>
    %407 = vector.broadcast %406 : vector<1x32xf32> to vector<8x32xf32>
    %408 = arith.addf %404, %407 : vector<8x32xf32>
    %409 = arith.addf %408, %379 : vector<8x32xf32>
    %c1_169 = arith.constant 1 : index
    %c0_170 = arith.constant 0 : index
    %c0_171 = arith.constant 0 : index
    %410 = vector.load %arg15[%c1_169, %c0_170, %c0_171] : memref<2x1x32xf32, #tpu.memory_space<vmem>>, vector<1x1x32xf32>
    %411 = vector.shape_cast %410 : vector<1x1x32xf32> to vector<1x32xf32>
    %c1_172 = arith.constant 1 : index
    %c0_173 = arith.constant 0 : index
    %c0_174 = arith.constant 0 : index
    %412 = vector.load %arg16[%c1_172, %c0_173, %c0_174] : memref<2x1x32xf32, #tpu.memory_space<vmem>>, vector<1x1x32xf32>
    %413 = vector.shape_cast %412 : vector<1x1x32xf32> to vector<1x32xf32>
    %cst_175 = arith.constant dense<0.000000e+00> : vector<8xf32>
    %414 = vector.multi_reduction <add>, %409, %cst_175 [1] : vector<8x32xf32> to vector<8xf32>
    %415 = vector.shape_cast %414 : vector<8xf32> to vector<8x1xf32>
    %cst_176 = arith.constant 3.200000e+01 : f32
    %416 = vector.broadcast %cst_176 : f32 to vector<8x1xf32>
    %417 = arith.divf %415, %416 : vector<8x1xf32>
    %418 = vector.broadcast %417 : vector<8x1xf32> to vector<8x32xf32>
    %419 = arith.subf %409, %418 : vector<8x32xf32>
    %420 = arith.mulf %419, %419 : vector<8x32xf32>
    %cst_177 = arith.constant dense<0.000000e+00> : vector<8xf32>
    %421 = vector.multi_reduction <add>, %420, %cst_177 [1] : vector<8x32xf32> to vector<8xf32>
    %422 = vector.shape_cast %421 : vector<8xf32> to vector<8x1xf32>
    %cst_178 = arith.constant 3.200000e+01 : f32
    %423 = vector.broadcast %cst_178 : f32 to vector<8x1xf32>
    %424 = arith.divf %422, %423 : vector<8x1xf32>
    %cst_179 = arith.constant 9.99999996E-13 : f32
    %425 = vector.broadcast %cst_179 : f32 to vector<8x1xf32>
    %426 = arith.addf %424, %425 : vector<8x1xf32>
    %427 = math.rsqrt %426 : vector<8x1xf32>
    %428 = vector.broadcast %427 : vector<8x1xf32> to vector<8x32xf32>
    %429 = arith.mulf %419, %428 : vector<8x32xf32>
    %430 = vector.broadcast %411 : vector<1x32xf32> to vector<8x32xf32>
    %431 = arith.mulf %429, %430 : vector<8x32xf32>
    %432 = vector.broadcast %413 : vector<1x32xf32> to vector<8x32xf32>
    %433 = arith.addf %431, %432 : vector<8x32xf32>
    %434 = vector.extract_strided_slice %433 {offsets = [0, 0], sizes = [1, 32], strides = [1, 1]} : vector<8x32xf32> to vector<1x32xf32>
    %435 = arith.truncf %434 : vector<1x32xf32> to vector<1x32xbf16>
    %c0_180 = arith.constant 0 : index
    %c0_181 = arith.constant 0 : index
    %436 = vector.load %arg17[%c0_180, %c0_181] : memref<32x32xbf16, #tpu.memory_space<vmem>>, vector<32x32xbf16>
    %cst_182 = arith.constant dense<0.000000e+00> : vector<1x32xf32>
    %437 = tpu.matmul %435, %436, %cst_182 {dimension_numbers = #tpu.dot_dimension_numbers<[1], [0], [0], [1], [0, 0, 1, 1], [], []>} : vector<1x32xbf16>, vector<32x32xbf16>, vector<1x32xf32> -> vector<1x32xf32>
    %c0_183 = arith.constant 0 : index
    %c0_184 = arith.constant 0 : index
    %438 = vector.load %arg18[%c0_183, %c0_184] : memref<1x32xf32, #tpu.memory_space<vmem>>, vector<1x32xf32>
    %439 = arith.addf %437, %438 : vector<1x32xf32>
    %440 = math.tanh %439 : vector<1x32xf32>
    %441 = arith.truncf %440 : vector<1x32xf32> to vector<1x32xbf16>
    %c0_185 = arith.constant 0 : index
    %c0_186 = arith.constant 0 : index
    %442 = vector.load %arg19[%c0_185, %c0_186] : memref<32x2xbf16, #tpu.memory_space<vmem>>, vector<32x2xbf16>
    %cst_187 = arith.constant dense<0.000000e+00> : vector<1x2xf32>
    %443 = tpu.matmul %441, %442, %cst_187 {dimension_numbers = #tpu.dot_dimension_numbers<[1], [0], [0], [1], [0, 0, 1, 1], [], []>} : vector<1x32xbf16>, vector<32x2xbf16>, vector<1x2xf32> -> vector<1x2xf32>
    %c0_188 = arith.constant 0 : index
    %c0_189 = arith.constant 0 : index
    %444 = vector.load %arg20[%c0_188, %c0_189] : memref<1x2xf32, #tpu.memory_space<vmem>>, vector<1x2xf32>
    %445 = arith.addf %443, %444 : vector<1x2xf32>
    %c0_190 = arith.constant 0 : index
    %c0_191 = arith.constant 0 : index
    %c0_192 = arith.constant 0 : index
    %446 = vector.load %arg21[%c0_190, %c0_191, %c0_192] : memref<1x1x2xf32, #tpu.memory_space<vmem>>, vector<1x1x2xf32>
    %447 = vector.shape_cast %446 : vector<1x1x2xf32> to vector<1x2xf32>
    %448 = vector.shape_cast %445 : vector<1x2xf32> to vector<1x1x2xf32>
    tpu.vector_store %arg21[%c0_190, %c0_191, %c0_192], %448 {strides = array<i32>} : memref<1x1x2xf32, #tpu.memory_space<vmem>>, vector<1x1x2xf32>,
    return
  }
  func.func @transform_0(%arg0: i32) -> (i32, i32, i32) {
    %c0_i32 = arith.constant 0 : i32
    %c0_i32_0 = arith.constant 0 : i32
    %c0_i32_1 = arith.constant 0 : i32
    return %arg0, %c0_i32, %c0_i32_0 : i32, i32, i32
  }
  func.func @transform_1(%arg0: i32) -> (i32, i32, i32) {
    %c0_i32 = arith.constant 0 : i32
    %c0_i32_0 = arith.constant 0 : i32
    %c0_i32_1 = arith.constant 0 : i32
    return %arg0, %c0_i32, %c0_i32_0 : i32, i32, i32
  }
  func.func @transform_2(%arg0: i32) -> (i32, i32) {
    %c0_i32 = arith.constant 0 : i32
    %c0_i32_0 = arith.constant 0 : i32
    %c0_i32_1 = arith.constant 0 : i32
    return %c0_i32, %c0_i32_0 : i32, i32
  }
  func.func @transform_3(%arg0: i32) -> (i32, i32) {
    %c0_i32 = arith.constant 0 : i32
    %c0_i32_0 = arith.constant 0 : i32
    %c0_i32_1 = arith.constant 0 : i32
    return %c0_i32, %c0_i32_0 : i32, i32
  }
  func.func @transform_4(%arg0: i32) -> (i32, i32, i32) {
    %c0_i32 = arith.constant 0 : i32
    %c0_i32_0 = arith.constant 0 : i32
    %c0_i32_1 = arith.constant 0 : i32
    %c0_i32_2 = arith.constant 0 : i32
    return %c0_i32, %c0_i32_0, %c0_i32_1 : i32, i32, i32
  }
  func.func @transform_5(%arg0: i32) -> (i32, i32, i32) {
    %c0_i32 = arith.constant 0 : i32
    %c0_i32_0 = arith.constant 0 : i32
    %c0_i32_1 = arith.constant 0 : i32
    %c0_i32_2 = arith.constant 0 : i32
    return %c0_i32, %c0_i32_0, %c0_i32_1 : i32, i32, i32
  }
  func.func @transform_6(%arg0: i32) -> (i32, i32, i32) {
    %c0_i32 = arith.constant 0 : i32
    %c0_i32_0 = arith.constant 0 : i32
    %c0_i32_1 = arith.constant 0 : i32
    %c0_i32_2 = arith.constant 0 : i32
    return %c0_i32, %c0_i32_0, %c0_i32_1 : i32, i32, i32
  }
  func.func @transform_7(%arg0: i32) -> (i32, i32, i32) {
    %c0_i32 = arith.constant 0 : i32
    %c0_i32_0 = arith.constant 0 : i32
    %c0_i32_1 = arith.constant 0 : i32
    %c0_i32_2 = arith.constant 0 : i32
    return %c0_i32, %c0_i32_0, %c0_i32_1 : i32, i32, i32
  }
  func.func @transform_8(%arg0: i32) -> (i32, i32, i32) {
    %c0_i32 = arith.constant 0 : i32
    %c0_i32_0 = arith.constant 0 : i32
    %c0_i32_1 = arith.constant 0 : i32
    %c0_i32_2 = arith.constant 0 : i32
    return %c0_i32, %c0_i32_0, %c0_i32_1 : i32, i32, i32
  }
  func.func @transform_9(%arg0: i32) -> (i32, i32, i32) {
    %c0_i32 = arith.constant 0 : i32
    %c0_i32_0 = arith.constant 0 : i32
    %c0_i32_1 = arith.constant 0 : i32
    %c0_i32_2 = arith.constant 0 : i32
    return %c0_i32, %c0_i32_0, %c0_i32_1 : i32, i32, i32
  }
  func.func @transform_10(%arg0: i32) -> (i32, i32, i32) {
    %c0_i32 = arith.constant 0 : i32
    %c0_i32_0 = arith.constant 0 : i32
    %c0_i32_1 = arith.constant 0 : i32
    %c0_i32_2 = arith.constant 0 : i32
    return %c0_i32, %c0_i32_0, %c0_i32_1 : i32, i32, i32
  }
  func.func @transform_11(%arg0: i32) -> (i32, i32, i32) {
    %c0_i32 = arith.constant 0 : i32
    %c0_i32_0 = arith.constant 0 : i32
    %c0_i32_1 = arith.constant 0 : i32
    %c0_i32_2 = arith.constant 0 : i32
    return %c0_i32, %c0_i32_0, %c0_i32_1 : i32, i32, i32
  }
  func.func @transform_12(%arg0: i32) -> (i32, i32, i32) {
    %c0_i32 = arith.constant 0 : i32
    %c0_i32_0 = arith.constant 0 : i32
    %c0_i32_1 = arith.constant 0 : i32
    %c0_i32_2 = arith.constant 0 : i32
    return %c0_i32, %c0_i32_0, %c0_i32_1 : i32, i32, i32
  }
  func.func @transform_13(%arg0: i32) -> (i32, i32, i32) {
    %c0_i32 = arith.constant 0 : i32
    %c0_i32_0 = arith.constant 0 : i32
    %c0_i32_1 = arith.constant 0 : i32
    %c0_i32_2 = arith.constant 0 : i32
    return %c0_i32, %c0_i32_0, %c0_i32_1 : i32, i32, i32
  }
  func.func @transform_14(%arg0: i32) -> (i32, i32, i32) {
    %c0_i32 = arith.constant 0 : i32
    %c0_i32_0 = arith.constant 0 : i32
    %c0_i32_1 = arith.constant 0 : i32
    %c0_i32_2 = arith.constant 0 : i32
    return %c0_i32, %c0_i32_0, %c0_i32_1 : i32, i32, i32
  }
  func.func @transform_15(%arg0: i32) -> (i32, i32, i32) {
    %c0_i32 = arith.constant 0 : i32
    %c0_i32_0 = arith.constant 0 : i32
    %c0_i32_1 = arith.constant 0 : i32
    %c0_i32_2 = arith.constant 0 : i32
    return %c0_i32, %c0_i32_0, %c0_i32_1 : i32, i32, i32
  }
  func.func @transform_16(%arg0: i32) -> (i32, i32) {
    %c0_i32 = arith.constant 0 : i32
    %c0_i32_0 = arith.constant 0 : i32
    %c0_i32_1 = arith.constant 0 : i32
    return %c0_i32, %c0_i32_0 : i32, i32
  }
  func.func @transform_17(%arg0: i32) -> (i32, i32) {
    %c0_i32 = arith.constant 0 : i32
    %c0_i32_0 = arith.constant 0 : i32
    %c0_i32_1 = arith.constant 0 : i32
    return %c0_i32, %c0_i32_0 : i32, i32
  }
  func.func @transform_18(%arg0: i32) -> (i32, i32) {
    %c0_i32 = arith.constant 0 : i32
    %c0_i32_0 = arith.constant 0 : i32
    %c0_i32_1 = arith.constant 0 : i32
    return %c0_i32, %c0_i32_0 : i32, i32
  }
  func.func @transform_19(%arg0: i32) -> (i32, i32) {
    %c0_i32 = arith.constant 0 : i32
    %c0_i32_0 = arith.constant 0 : i32
    %c0_i32_1 = arith.constant 0 : i32
    return %c0_i32, %c0_i32_0 : i32, i32
  }
  func.func @transform_20(%arg0: i32) -> (i32, i32, i32) {
    %c0_i32 = arith.constant 0 : i32
    %c0_i32_0 = arith.constant 0 : i32
    %c0_i32_1 = arith.constant 0 : i32
    return %arg0, %c0_i32, %c0_i32_0 : i32, i32, i32
  }
}

</mosaic_0001>

<llo_original>
// kernel: bert_text_classification_forward.1
$region0: #{bert_text_classification_forward.1}
  #allocation0 [shape = 'u32[]', space=smem, size = 0x4, offset = 0x4, fixed_abs, tag = 'smem constant byte address 0x4 - core index']
  #allocation1 [shape = 'u32[144,128]{1,0:T(1,128)}', space=vmem, size = 0x12000, scoped, tag = 'internal scratch']
  %s0 = inlined_call_operand.vmem [shape: f32[2,8,32], index: 0, kind: input, shape index: {}]
  %s1 = inlined_call_operand.vmem [shape: f32[2,1,8], index: 1, kind: input, shape index: {}]
  %s2 = inlined_call_operand.vmem [shape: f32[1,32], index: 2, kind: input, shape index: {}]
  %s3 = inlined_call_operand.vmem [shape: f32[1,32], index: 3, kind: input, shape index: {}]
  %s4 = inlined_call_operand.vmem [shape: bf16[2,32,96], index: 4, kind: input, shape index: {}]
  %s5 = inlined_call_operand.vmem [shape: f32[2,1,96], index: 5, kind: input, shape index: {}]
  %s6 = inlined_call_operand.vmem [shape: bf16[8,8,32], index: 6, kind: input, shape index: {}]
  %s7 = inlined_call_operand.vmem [shape: f32[2,1,32], index: 7, kind: input, shape index: {}]
  %s8 = inlined_call_operand.vmem [shape: f32[2,1,32], index: 8, kind: input, shape index: {}]
  %s9 = inlined_call_operand.vmem [shape: f32[2,1,32], index: 9, kind: input, shape index: {}]
  %s10 = inlined_call_operand.vmem [shape: bf16[2,32,64], index: 10, kind: input, shape index: {}]
  %s11 = inlined_call_operand.vmem [shape: f32[2,1,64], index: 11, kind: input, shape index: {}]
  %s12 = inlined_call_operand.vmem [shape: bf16[2,64,32], index: 12, kind: input, shape index: {}]
  %s13 = inlined_call_operand.vmem [shape: f32[2,1,32], index: 13, kind: input, shape index: {}]
  %s14 = inlined_call_operand.vmem [shape: f32[2,1,32], index: 14, kind: input, shape index: {}]
  %s15 = inlined_call_operand.vmem [shape: f32[2,1,32], index: 15, kind: input, shape index: {}]
  %s16 = inlined_call_operand.vmem [shape: bf16[32,32], index: 16, kind: input, shape index: {}]
  %s17 = inlined_call_operand.vmem [shape: f32[1,32], index: 17, kind: input, shape index: {}]
  %s18 = inlined_call_operand.vmem [shape: bf16[32,2], index: 18, kind: input, shape index: {}]
  %s19 = inlined_call_operand.vmem [shape: f32[1,2], index: 19, kind: input, shape index: {}]
  %s20 = inlined_call_operand.hbm [shape: f32[2,1,2], index: 20, kind: output, shape index: {}]
  %s21 = sld [smem:[#allocation0]]
  $region113: #{bert_text_classification_forward.1} parent=0
    _
  %s23 = ssub.s32 1, %s21
  %s24 = scalar_select 0, %s23, %s21
  $region1: #{bert_text_classification_forward.1} parent=0
    #allocation2 [shape = 'u8[1024]{0}', space=vmem, size = 0x400, scoped, tag = 'output window, operand 0']
    #allocation3 [shape = 's32[2]{0}', space=sflag, size = 0x8, scoped, tag = 'scoped memory for bert_text_classification_forward.1']
    %25 = vsyncpa [#allocation3], 0
    %s26 = scalar_lea.sflag [#allocation3], 1
    %27 = vsyncpa %s26, 0
    loop: start=0, step=1, limit=4
    $region2: #{bert_text_classification_forward.1} parent=1 // loop_pre_header
      _
    $region3: #{bert_text_classification_forward.1} parent=1 // loop_header
      %s29 = sphi 0, %s33
      %p30 = scmp.ge.s32.totalorder %s29, 4
      %s39 = sphi 0, %s41
      %s42 = sphi 0, %s39
      %s43 = sphi 0, %s42
      %s59 = sphi 0, %s43
      %s65 = sphi 0, %s67
      %s68 = sphi 0, %s65
      %s69 = sphi 0, %s68
      %s85 = sphi 0, %s69
      %s89 = sphi 0, %s89
      %s91 = sphi 0, %s89
      %s92 = sphi 0, %s91
      %s106 = sphi 0, %s92
      %s110 = sphi 0, %s110
      %s112 = sphi 0, %s110
      %s113 = sphi 0, %s112
      %s127 = sphi 0, %s113
      %s131 = sphi 0, %s131
      %s133 = sphi 0, %s131
      %s134 = sphi 0, %s133
      %s148 = sphi 0, %s134
      %s152 = sphi 0, %s152
      %s154 = sphi 0, %s152
      %s155 = sphi 0, %s154
      %s169 = sphi 0, %s155
      %s173 = sphi 0, %s173
      %s175 = sphi 0, %s173
      %s176 = sphi 0, %s175
      %s190 = sphi 0, %s176
      %s194 = sphi 0, %s194
      %s196 = sphi 0, %s194
      %s197 = sphi 0, %s196
      %s211 = sphi 0, %s197
      %s215 = sphi 0, %s215
      %s217 = sphi 0, %s215
      %s218 = sphi 0, %s217
      %s232 = sphi 0, %s218
      %s236 = sphi 0, %s236
      %s238 = sphi 0, %s236
      %s239 = sphi 0, %s238
      %s253 = sphi 0, %s239
      %s257 = sphi 0, %s257
      %s259 = sphi 0, %s257
      %s260 = sphi 0, %s259
      %s274 = sphi 0, %s260
      %s278 = sphi 0, %s278
      %s280 = sphi 0, %s278
      %s281 = sphi 0, %s280
      %s295 = sphi 0, %s281
      %s299 = sphi 0, %s299
      %s301 = sphi 0, %s299
      %s302 = sphi 0, %s301
      %s316 = sphi 0, %s302
      %s320 = sphi 0, %s320
      %s322 = sphi 0, %s320
      %s323 = sphi 0, %s322
      %s337 = sphi 0, %s323
      %s341 = sphi 0, %s341
      %s343 = sphi 0, %s341
      %s344 = sphi 0, %s343
      %s358 = sphi 0, %s344
      %s362 = sphi 0, %s362
      %s364 = sphi 0, %s362
      %s365 = sphi 0, %s364
      %s379 = sphi 0, %s365
      %s383 = sphi 0, %s383
      %s385 = sphi 0, %s383
      %s386 = sphi 0, %s385
      %s400 = sphi 0, %s386
      %s404 = sphi 0, %s404
      %s406 = sphi 0, %s404
      %s407 = sphi 0, %s406
      %s421 = sphi 0, %s407
      %s425 = sphi 0, %s425
      %s427 = sphi 0, %s425
      %s428 = sphi 0, %s427
      %s442 = sphi 0, %s428
      %s446 = sphi 0, %s446
      %s448 = sphi 0, %s446
      %s449 = sphi 0, %s448
      %s463 = sphi 0, %s449
      %s469 = sphi 0, %s471
      %s472 = sphi 0, %s469
      %s473 = sphi 0, %s472
      %s489 = sphi 0, %s473
    $region4: #{bert_text_classification_forward.1} parent=1 // loop_header_branch
      %32 = sbr.rel (%p30) target = $region8
    $region5: #{bert_text_classification_forward.1} parent=1 // loop_body
      %s34 = ssub.s32 %s29, 1
      %s35 = ssub.s32 %s29, 2
      %s36 = sadd.s32 %s29, 1
      %s37 = ssub.s32 %s29, %s36
      %p38 = scmp.eq.s32.totalorder %s37, 0
      %s40 = sadd.s32 %s39, 1
      %s41 = scalar_select %p38, %s39, %s40
      %p44 = pneg %p38
      %p45 = scmp.eq.s32.totalorder %s29, 1
      %p46 = por %p44, %p45
      %p47 = scmp.ne.s32.totalorder %s39, %s42
      %p48 = scmp.eq.s32.totalorder %s29, 0
      %p49 = por %p47, %p48
      %p50 = scmp.ne.s32.totalorder %s39, %s42
      %p51 = scmp.eq.s32.totalorder %s34, 1
      %p52 = por %p50, %p51
      %p53 = scmp.ne.s32.totalorder %s42, %s43
      %p54 = scmp.eq.s32.totalorder %s34, 0
      %p55 = por %p53, %p54
      %p56 = scmp.ne.s32.totalorder %s42, %s43
      %p57 = scmp.eq.s32.totalorder %s35, 1
      %p58 = por %p56, %p57
      %p60 = scmp.ne.s32.totalorder %s43, %s59
      %p61 = scmp.eq.s32.totalorder %s35, 0
      %p62 = por %p60, %p61
      %s63 = ssub.s32 %s29, %s36
      %p64 = scmp.eq.s32.totalorder %s63, 0
      %s66 = sadd.s32 %s65, 1
      %s67 = scalar_select %p64, %s65, %s66
      %p70 = pneg %p64
      %p71 = scmp.eq.s32.totalorder %s29, 1
      %p72 = por %p70, %p71
      %p73 = scmp.ne.s32.totalorder %s65, %s68
      %p74 = scmp.eq.s32.totalorder %s29, 0
      %p75 = por %p73, %p74
      %p76 = scmp.ne.s32.totalorder %s65, %s68
      %p77 = scmp.eq.s32.totalorder %s34, 1
      %p78 = por %p76, %p77
      %p79 = scmp.ne.s32.totalorder %s68, %s69
      %p80 = scmp.eq.s32.totalorder %s34, 0
      %p81 = por %p79, %p80
      %p82 = scmp.ne.s32.totalorder %s68, %s69
      %p83 = scmp.eq.s32.totalorder %s35, 1
      %p84 = por %p82, %p83
      %p86 = scmp.ne.s32.totalorder %s69, %s85
      %p87 = scmp.eq.s32.totalorder %s35, 0
      %p88 = por %p86, %p87
      %s90 = sadd.s32 %s89, 1
      %p93 = scmp.eq.s32.totalorder %s29, 1
      %p94 = scmp.ne.s32.totalorder %s89, %s91
      %p95 = scmp.eq.s32.totalorder %s29, 0
      %p96 = por %p94, %p95
      %p97 = scmp.ne.s32.totalorder %s89, %s91
      %p98 = scmp.eq.s32.totalorder %s34, 1
      %p99 = por %p97, %p98
      %p100 = scmp.ne.s32.totalorder %s91, %s92
      %p101 = scmp.eq.s32.totalorder %s34, 0
      %p102 = por %p100, %p101
      %p103 = scmp.ne.s32.totalorder %s91, %s92
      %p104 = scmp.eq.s32.totalorder %s35, 1
      %p105 = por %p103, %p104
      %p107 = scmp.ne.s32.totalorder %s92, %s106
      %p108 = scmp.eq.s32.totalorder %s35, 0
      %p109 = por %p107, %p108
      %s111 = sadd.s32 %s110, 1
      %p114 = scmp.eq.s32.totalorder %s29, 1
      %p115 = scmp.ne.s32.totalorder %s110, %s112
      %p116 = scmp.eq.s32.totalorder %s29, 0
      %p117 = por %p115, %p116
      %p118 = scmp.ne.s32.totalorder %s110, %s112
      %p119 = scmp.eq.s32.totalorder %s34, 1
      %p120 = por %p118, %p119
      %p121 = scmp.ne.s32.totalorder %s112, %s113
      %p122 = scmp.eq.s32.totalorder %s34, 0
      %p123 = por %p121, %p122
      %p124 = scmp.ne.s32.totalorder %s112, %s113
      %p125 = scmp.eq.s32.totalorder %s35, 1
      %p126 = por %p124, %p125
      %p128 = scmp.ne.s32.totalorder %s113, %s127
      %p129 = scmp.eq.s32.totalorder %s35, 0
      %p130 = por %p128, %p129
      %s132 = sadd.s32 %s131, 1
      %p135 = scmp.eq.s32.totalorder %s29, 1
      %p136 = scmp.ne.s32.totalorder %s131, %s133
      %p137 = scmp.eq.s32.totalorder %s29, 0
      %p138 = por %p136, %p137
      %p139 = scmp.ne.s32.totalorder %s131, %s133
      %p140 = scmp.eq.s32.totalorder %s34, 1
      %p141 = por %p139, %p140
      %p142 = scmp.ne.s32.totalorder %s133, %s134
      %p143 = scmp.eq.s32.totalorder %s34, 0
      %p144 = por %p142, %p143
      %p145 = scmp.ne.s32.totalorder %s133, %s134
      %p146 = scmp.eq.s32.totalorder %s35, 1
      %p147 = por %p145, %p146
      %p149 = scmp.ne.s32.totalorder %s134, %s148
      %p150 = scmp.eq.s32.totalorder %s35, 0
      %p151 = por %p149, %p150
      %s153 = sadd.s32 %s152, 1
      %p156 = scmp.eq.s32.totalorder %s29, 1
      %p157 = scmp.ne.s32.totalorder %s152, %s154
      %p158 = scmp.eq.s32.totalorder %s29, 0
      %p159 = por %p157, %p158
      %p160 = scmp.ne.s32.totalorder %s152, %s154
      %p161 = scmp.eq.s32.totalorder %s34, 1
      %p162 = por %p160, %p161
      %p163 = scmp.ne.s32.totalorder %s154, %s155
      %p164 = scmp.eq.s32.totalorder %s34, 0
      %p165 = por %p163, %p164
      %p166 = scmp.ne.s32.totalorder %s154, %s155
      %p167 = scmp.eq.s32.totalorder %s35, 1
      %p168 = por %p166, %p167
      %p170 = scmp.ne.s32.totalorder %s155, %s169
      %p171 = scmp.eq.s32.totalorder %s35, 0
      %p172 = por %p170, %p171
      %s174 = sadd.s32 %s173, 1
      %p177 = scmp.eq.s32.totalorder %s29, 1
      %p178 = scmp.ne.s32.totalorder %s173, %s175
      %p179 = scmp.eq.s32.totalorder %s29, 0
      %p180 = por %p178, %p179
      %p181 = scmp.ne.s32.totalorder %s173, %s175
      %p182 = scmp.eq.s32.totalorder %s34, 1
      %p183 = por %p181, %p182
      %p184 = scmp.ne.s32.totalorder %s175, %s176
      %p185 = scmp.eq.s32.totalorder %s34, 0
      %p186 = por %p184, %p185
      %p187 = scmp.ne.s32.totalorder %s175, %s176
      %p188 = scmp.eq.s32.totalorder %s35, 1
      %p189 = por %p187, %p188
      %p191 = scmp.ne.s32.totalorder %s176, %s190
      %p192 = scmp.eq.s32.totalorder %s35, 0
      %p193 = por %p191, %p192
      %s195 = sadd.s32 %s194, 1
      %p198 = scmp.eq.s32.totalorder %s29, 1
      %p199 = scmp.ne.s32.totalorder %s194, %s196
      %p200 = scmp.eq.s32.totalorder %s29, 0
      %p201 = por %p199, %p200
      %p202 = scmp.ne.s32.totalorder %s194, %s196
      %p203 = scmp.eq.s32.totalorder %s34, 1
      %p204 = por %p202, %p203
      %p205 = scmp.ne.s32.totalorder %s196, %s197
      %p206 = scmp.eq.s32.totalorder %s34, 0
      %p207 = por %p205, %p206
      %p208 = scmp.ne.s32.totalorder %s196, %s197
      %p209 = scmp.eq.s32.totalorder %s35, 1
      %p210 = por %p208, %p209
      %p212 = scmp.ne.s32.totalorder %s197, %s211
      %p213 = scmp.eq.s32.totalorder %s35, 0
      %p214 = por %p212, %p213
      %s216 = sadd.s32 %s215, 1
      %p219 = scmp.eq.s32.totalorder %s29, 1
      %p220 = scmp.ne.s32.totalorder %s215, %s217
      %p221 = scmp.eq.s32.totalorder %s29, 0
      %p222 = por %p220, %p221
      %p223 = scmp.ne.s32.totalorder %s215, %s217
      %p224 = scmp.eq.s32.totalorder %s34, 1
      %p225 = por %p223, %p224
      %p226 = scmp.ne.s32.totalorder %s217, %s218
      %p227 = scmp.eq.s32.totalorder %s34, 0
      %p228 = por %p226, %p227
      %p229 = scmp.ne.s32.totalorder %s217, %s218
      %p230 = scmp.eq.s32.totalorder %s35, 1
      %p231 = por %p229, %p230
      %p233 = scmp.ne.s32.totalorder %s218, %s232
      %p234 = scmp.eq.s32.totalorder %s35, 0
      %p235 = por %p233, %p234
      %s237 = sadd.s32 %s236, 1
      %p240 = scmp.eq.s32.totalorder %s29, 1
      %p241 = scmp.ne.s32.totalorder %s236, %s238
      %p242 = scmp.eq.s32.totalorder %s29, 0
      %p243 = por %p241, %p242
      %p244 = scmp.ne.s32.totalorder %s236, %s238
      %p245 = scmp.eq.s32.totalorder %s34, 1
      %p246 = por %p244, %p245
      %p247 = scmp.ne.s32.totalorder %s238, %s239
      %p248 = scmp.eq.s32.totalorder %s34, 0
      %p249 = por %p247, %p248
      %p250 = scmp.ne.s32.totalorder %s238, %s239
      %p251 = scmp.eq.s32.totalorder %s35, 1
      %p252 = por %p250, %p251
      %p254 = scmp.ne.s32.totalorder %s239, %s253
      %p255 = scmp.eq.s32.totalorder %s35, 0
      %p256 = por %p254, %p255
      %s258 = sadd.s32 %s257, 1
      %p261 = scmp.eq.s32.totalorder %s29, 1
      %p262 = scmp.ne.s32.totalorder %s257, %s259
      %p263 = scmp.eq.s32.totalorder %s29, 0
      %p264 = por %p262, %p263
      %p265 = scmp.ne.s32.totalorder %s257, %s259
      %p266 = scmp.eq.s32.totalorder %s34, 1
      %p267 = por %p265, %p266
      %p268 = scmp.ne.s32.totalorder %s259, %s260
      %p269 = scmp.eq.s32.totalorder %s34, 0
      %p270 = por %p268, %p269
      %p271 = scmp.ne.s32.totalorder %s259, %s260
      %p272 = scmp.eq.s32.totalorder %s35, 1
      %p273 = por %p271, %p272
      %p275 = scmp.ne.s32.totalorder %s260, %s274
      %p276 = scmp.eq.s32.totalorder %s35, 0
      %p277 = por %p275, %p276
      %s279 = sadd.s32 %s278, 1
      %p282 = scmp.eq.s32.totalorder %s29, 1
      %p283 = scmp.ne.s32.totalorder %s278, %s280
      %p284 = scmp.eq.s32.totalorder %s29, 0
      %p285 = por %p283, %p284
      %p286 = scmp.ne.s32.totalorder %s278, %s280
      %p287 = scmp.eq.s32.totalorder %s34, 1
      %p288 = por %p286, %p287
      %p289 = scmp.ne.s32.totalorder %s280, %s281
      %p290 = scmp.eq.s32.totalorder %s34, 0
      %p291 = por %p289, %p290
      %p292 = scmp.ne.s32.totalorder %s280, %s281
      %p293 = scmp.eq.s32.totalorder %s35, 1
      %p294 = por %p292, %p293
      %p296 = scmp.ne.s32.totalorder %s281, %s295
      %p297 = scmp.eq.s32.totalorder %s35, 0
      %p298 = por %p296, %p297
      %s300 = sadd.s32 %s299, 1
      %p303 = scmp.eq.s32.totalorder %s29, 1
      %p304 = scmp.ne.s32.totalorder %s299, %s301
      %p305 = scmp.eq.s32.totalorder %s29, 0
      %p306 = por %p304, %p305
      %p307 = scmp.ne.s32.totalorder %s299, %s301
      %p308 = scmp.eq.s32.totalorder %s34, 1
      %p309 = por %p307, %p308
      %p310 = scmp.ne.s32.totalorder %s301, %s302
      %p311 = scmp.eq.s32.totalorder %s34, 0
      %p312 = por %p310, %p311
      %p313 = scmp.ne.s32.totalorder %s301, %s302
      %p314 = scmp.eq.s32.totalorder %s35, 1
      %p315 = por %p313, %p314
      %p317 = scmp.ne.s32.totalorder %s302, %s316
      %p318 = scmp.eq.s32.totalorder %s35, 0
      %p319 = por %p317, %p318
      %s321 = sadd.s32 %s320, 1
      %p324 = scmp.eq.s32.totalorder %s29, 1
      %p325 = scmp.ne.s32.totalorder %s320, %s322
      %p326 = scmp.eq.s32.totalorder %s29, 0
      %p327 = por %p325, %p326
      %p328 = scmp.ne.s32.totalorder %s320, %s322
      %p329 = scmp.eq.s32.totalorder %s34, 1
      %p330 = por %p328, %p329
      %p331 = scmp.ne.s32.totalorder %s322, %s323
      %p332 = scmp.eq.s32.totalorder %s34, 0
      %p333 = por %p331, %p332
      %p334 = scmp.ne.s32.totalorder %s322, %s323
      %p335 = scmp.eq.s32.totalorder %s35, 1
      %p336 = por %p334, %p335
      %p338 = scmp.ne.s32.totalorder %s323, %s337
      %p339 = scmp.eq.s32.totalorder %s35, 0
      %p340 = por %p338, %p339
      %s342 = sadd.s32 %s341, 1
      %p345 = scmp.eq.s32.totalorder %s29, 1
      %p346 = scmp.ne.s32.totalorder %s341, %s343
      %p347 = scmp.eq.s32.totalorder %s29, 0
      %p348 = por %p346, %p347
      %p349 = scmp.ne.s32.totalorder %s341, %s343
      %p350 = scmp.eq.s32.totalorder %s34, 1
      %p351 = por %p349, %p350
      %p352 = scmp.ne.s32.totalorder %s343, %s344
      %p353 = scmp.eq.s32.totalorder %s34, 0
      %p354 = por %p352, %p353
      %p355 = scmp.ne.s32.totalorder %s343, %s344
      %p356 = scmp.eq.s32.totalorder %s35, 1
      %p357 = por %p355, %p356
      %p359 = scmp.ne.s32.totalorder %s344, %s358
      %p360 = scmp.eq.s32.totalorder %s35, 0
      %p361 = por %p359, %p360
      %s363 = sadd.s32 %s362, 1
      %p366 = scmp.eq.s32.totalorder %s29, 1
      %p367 = scmp.ne.s32.totalorder %s362, %s364
      %p368 = scmp.eq.s32.totalorder %s29, 0
      %p369 = por %p367, %p368
      %p370 = scmp.ne.s32.totalorder %s362, %s364
      %p371 = scmp.eq.s32.totalorder %s34, 1
      %p372 = por %p370, %p371
      %p373 = scmp.ne.s32.totalorder %s364, %s365
      %p374 = scmp.eq.s32.totalorder %s34, 0
      %p375 = por %p373, %p374
      %p376 = scmp.ne.s32.totalorder %s364, %s365
      %p377 = scmp.eq.s32.totalorder %s35, 1
      %p378 = por %p376, %p377
      %p380 = scmp.ne.s32.totalorder %s365, %s379
      %p381 = scmp.eq.s32.totalorder %s35, 0
      %p382 = por %p380, %p381
      %s384 = sadd.s32 %s383, 1
      %p387 = scmp.eq.s32.totalorder %s29, 1
      %p388 = scmp.ne.s32.totalorder %s383, %s385
      %p389 = scmp.eq.s32.totalorder %s29, 0
      %p390 = por %p388, %p389
      %p391 = scmp.ne.s32.totalorder %s383, %s385
      %p392 = scmp.eq.s32.totalorder %s34, 1
      %p393 = por %p391, %p392
      %p394 = scmp.ne.s32.totalorder %s385, %s386
      %p395 = scmp.eq.s32.totalorder %s34, 0
      %p396 = por %p394, %p395
      %p397 = scmp.ne.s32.totalorder %s385, %s386
      %p398 = scmp.eq.s32.totalorder %s35, 1
      %p399 = por %p397, %p398
      %p401 = scmp.ne.s32.totalorder %s386, %s400
      %p402 = scmp.eq.s32.totalorder %s35, 0
      %p403 = por %p401, %p402
      %s405 = sadd.s32 %s404, 1
      %p408 = scmp.eq.s32.totalorder %s29, 1
      %p409 = scmp.ne.s32.totalorder %s404, %s406
      %p410 = scmp.eq.s32.totalorder %s29, 0
      %p411 = por %p409, %p410
      %p412 = scmp.ne.s32.totalorder %s404, %s406
      %p413 = scmp.eq.s32.totalorder %s34, 1
      %p414 = por %p412, %p413
      %p415 = scmp.ne.s32.totalorder %s406, %s407
      %p416 = scmp.eq.s32.totalorder %s34, 0
      %p417 = por %p415, %p416
      %p418 = scmp.ne.s32.totalorder %s406, %s407
      %p419 = scmp.eq.s32.totalorder %s35, 1
      %p420 = por %p418, %p419
      %p422 = scmp.ne.s32.totalorder %s407, %s421
      %p423 = scmp.eq.s32.totalorder %s35, 0
      %p424 = por %p422, %p423
      %s426 = sadd.s32 %s425, 1
      %p429 = scmp.eq.s32.totalorder %s29, 1
      %p430 = scmp.ne.s32.totalorder %s425, %s427
      %p431 = scmp.eq.s32.totalorder %s29, 0
      %p432 = por %p430, %p431
      %p433 = scmp.ne.s32.totalorder %s425, %s427
      %p434 = scmp.eq.s32.totalorder %s34, 1
      %p435 = por %p433, %p434
      %p436 = scmp.ne.s32.totalorder %s427, %s428
      %p437 = scmp.eq.s32.totalorder %s34, 0
      %p438 = por %p436, %p437
      %p439 = scmp.ne.s32.totalorder %s427, %s428
      %p440 = scmp.eq.s32.totalorder %s35, 1
      %p441 = por %p439, %p440
      %p443 = scmp.ne.s32.totalorder %s428, %s442
      %p444 = scmp.eq.s32.totalorder %s35, 0
      %p445 = por %p443, %p444
      %s447 = sadd.s32 %s446, 1
      %p450 = scmp.eq.s32.totalorder %s29, 1
      %p451 = scmp.ne.s32.totalorder %s446, %s448
      %p452 = scmp.eq.s32.totalorder %s29, 0
      %p453 = por %p451, %p452
      %p454 = scmp.ne.s32.totalorder %s446, %s448
      %p455 = scmp.eq.s32.totalorder %s34, 1
      %p456 = por %p454, %p455
      %p457 = scmp.ne.s32.totalorder %s448, %s449
      %p458 = scmp.eq.s32.totalorder %s34, 0
      %p459 = por %p457, %p458
      %p460 = scmp.ne.s32.totalorder %s448, %s449
      %p461 = scmp.eq.s32.totalorder %s35, 1
      %p462 = por %p460, %p461
      %p464 = scmp.ne.s32.totalorder %s449, %s463
      %p465 = scmp.eq.s32.totalorder %s35, 0
      %p466 = por %p464, %p465
      %s467 = ssub.s32 %s29, %s36
      %p468 = scmp.eq.s32.totalorder %s467, 0
      %s470 = sadd.s32 %s469, 1
      %s471 = scalar_select %p468, %s469, %s470
      %p474 = pneg %p468
      %p475 = scmp.eq.s32.totalorder %s29, 1
      %p476 = por %p474, %p475
      %p477 = scmp.ne.s32.totalorder %s469, %s472
      %p478 = scmp.eq.s32.totalorder %s29, 0
      %p479 = por %p477, %p478
      %p480 = scmp.ne.s32.totalorder %s469, %s472
      %p481 = scmp.eq.s32.totalorder %s34, 1
      %p482 = por %p480, %p481
      %p483 = scmp.ne.s32.totalorder %s472, %s473
      %p484 = scmp.eq.s32.totalorder %s34, 0
      %p485 = por %p483, %p484
      %p486 = scmp.ne.s32.totalorder %s472, %s473
      %p487 = scmp.eq.s32.totalorder %s35, 1
      %p488 = por %p486, %p487
      %p490 = scmp.ne.s32.totalorder %s473, %s489
      %p491 = scmp.eq.s32.totalorder %s35, 0
      %p492 = por %p490, %p491
      %p493 = scmp.le.s32.totalorder 1, %s29
      %p494 = scmp.lt.s32.totalorder %s29, 3
      %p495 = pnand %p493, %p494
      %p496 = pneg %p495
      // Predicated region
      $region9: #{bert_text_classification_forward.1} parent=5 // pred_check
        _
      $region10: #{bert_text_classification_forward.1} parent=5 // pred_check_branch
        %498 = sbr.rel (%p495) target = $region12
      $region11: #{bert_text_classification_forward.1} parent=5 // pred_region
        %s499 = ssub.s32 %s29, 1
        // Predicated region
        $region13: #{bert_text_classification_forward.1} parent=11 // pred_check
          %p500 = pneg %p102
        $region14: #{bert_text_classification_forward.1} parent=11 // pred_check_branch
          %502 = sbr.rel (%p500) target = $region16
        $region15: #{bert_text_classification_forward.1} parent=11 // pred_region
          _
        $region16: #{bert_text_classification_forward.1} parent=11 // pred_fallthru
          _
        // Predicated region
        $region17: #{bert_text_classification_forward.1} parent=11 // pred_check
          %p503 = pneg %p123
        $region18: #{bert_text_classification_forward.1} parent=11 // pred_check_branch
          %505 = sbr.rel (%p503) target = $region20
        $region19: #{bert_text_classification_forward.1} parent=11 // pred_region
          _
        $region20: #{bert_text_classification_forward.1} parent=11 // pred_fallthru
          _
        // Predicated region
        $region21: #{bert_text_classification_forward.1} parent=11 // pred_check
          %p506 = pneg %p144
        $region22: #{bert_text_classification_forward.1} parent=11 // pred_check_branch
          %508 = sbr.rel (%p506) target = $region24
        $region23: #{bert_text_classification_forward.1} parent=11 // pred_region
          _
        $region24: #{bert_text_classification_forward.1} parent=11 // pred_fallthru
          _
        // Predicated region
        $region25: #{bert_text_classification_forward.1} parent=11 // pred_check
          %p509 = pneg %p165
        $region26: #{bert_text_classification_forward.1} parent=11 // pred_check_branch
          %511 = sbr.rel (%p509) target = $region28
        $region27: #{bert_text_classification_forward.1} parent=11 // pred_region
          _
        $region28: #{bert_text_classification_forward.1} parent=11 // pred_fallthru
          _
        // Predicated region
        $region29: #{bert_text_classification_forward.1} parent=11 // pred_check
          %p512 = pneg %p186
        $region30: #{bert_text_classification_forward.1} parent=11 // pred_check_branch
          %514 = sbr.rel (%p512) target = $region32
        $region31: #{bert_text_classification_forward.1} parent=11 // pred_region
          _
        $region32: #{bert_text_classification_forward.1} parent=11 // pred_fallthru
          _
        // Predicated region
        $region33: #{bert_text_classification_forward.1} parent=11 // pred_check
          %p515 = pneg %p207
        $region34: #{bert_text_classification_forward.1} parent=11 // pred_check_branch
          %517 = sbr.rel (%p515) target = $region36
        $region35: #{bert_text_classification_forward.1} parent=11 // pred_region
          _
        $region36: #{bert_text_classification_forward.1} parent=11 // pred_fallthru
          _
        // Predicated region
        $region37: #{bert_text_classification_forward.1} parent=11 // pred_check
          %p518 = pneg %p228
        $region38: #{bert_text_classification_forward.1} parent=11 // pred_check_branch
          %520 = sbr.rel (%p518) target = $region40
        $region39: #{bert_text_classification_forward.1} parent=11 // pred_region
          _
        $region40: #{bert_text_classification_forward.1} parent=11 // pred_fallthru
          _
        // Predicated region
        $region41: #{bert_text_classification_forward.1} parent=11 // pred_check
          %p521 = pneg %p249
        $region42: #{bert_text_classification_forward.1} parent=11 // pred_check_branch
          %523 = sbr.rel (%p521) target = $region44
        $region43: #{bert_text_classification_forward.1} parent=11 // pred_region
          _
        $region44: #{bert_text_classification_forward.1} parent=11 // pred_fallthru
          _
        // Predicated region
        $region45: #{bert_text_classification_forward.1} parent=11 // pred_check
          %p524 = pneg %p270
        $region46: #{bert_text_classification_forward.1} parent=11 // pred_check_branch
          %526 = sbr.rel (%p524) target = $region48
        $region47: #{bert_text_classification_forward.1} parent=11 // pred_region
          _
        $region48: #{bert_text_classification_forward.1} parent=11 // pred_fallthru
          _
        // Predicated region
        $region49: #{bert_text_classification_forward.1} parent=11 // pred_check
          %p527 = pneg %p291
        $region50: #{bert_text_classification_forward.1} parent=11 // pred_check_branch
          %529 = sbr.rel (%p527) target = $region52
        $region51: #{bert_text_classification_forward.1} parent=11 // pred_region
          _
        $region52: #{bert_text_classification_forward.1} parent=11 // pred_fallthru
          _
        // Predicated region
        $region53: #{bert_text_classification_forward.1} parent=11 // pred_check
          %p530 = pneg %p312
        $region54: #{bert_text_classification_forward.1} parent=11 // pred_check_branch
          %532 = sbr.rel (%p530) target = $region56
        $region55: #{bert_text_classification_forward.1} parent=11 // pred_region
          _
        $region56: #{bert_text_classification_forward.1} parent=11 // pred_fallthru
          _
        // Predicated region
        $region57: #{bert_text_classification_forward.1} parent=11 // pred_check
          %p533 = pneg %p333
        $region58: #{bert_text_classification_forward.1} parent=11 // pred_check_branch
          %535 = sbr.rel (%p533) target = $region60
        $region59: #{bert_text_classification_forward.1} parent=11 // pred_region
          _
        $region60: #{bert_text_classification_forward.1} parent=11 // pred_fallthru
          _
        // Predicated region
        $region61: #{bert_text_classification_forward.1} parent=11 // pred_check
          %p536 = pneg %p354
        $region62: #{bert_text_classification_forward.1} parent=11 // pred_check_branch
          %538 = sbr.rel (%p536) target = $region64
        $region63: #{bert_text_classification_forward.1} parent=11 // pred_region
          _
        $region64: #{bert_text_classification_forward.1} parent=11 // pred_fallthru
          _
        // Predicated region
        $region65: #{bert_text_classification_forward.1} parent=11 // pred_check
          %p539 = pneg %p375
        $region66: #{bert_text_classification_forward.1} parent=11 // pred_check_branch
          %541 = sbr.rel (%p539) target = $region68
        $region67: #{bert_text_classification_forward.1} parent=11 // pred_region
          _
        $region68: #{bert_text_classification_forward.1} parent=11 // pred_fallthru
          _
        // Predicated region
        $region69: #{bert_text_classification_forward.1} parent=11 // pred_check
          %p542 = pneg %p396
        $region70: #{bert_text_classification_forward.1} parent=11 // pred_check_branch
          %544 = sbr.rel (%p542) target = $region72
        $region71: #{bert_text_classification_forward.1} parent=11 // pred_region
          _
        $region72: #{bert_text_classification_forward.1} parent=11 // pred_fallthru
          _
        // Predicated region
        $region73: #{bert_text_classification_forward.1} parent=11 // pred_check
          %p545 = pneg %p417
        $region74: #{bert_text_classification_forward.1} parent=11 // pred_check_branch
          %547 = sbr.rel (%p545) target = $region76
        $region75: #{bert_text_classification_forward.1} parent=11 // pred_region
          _
        $region76: #{bert_text_classification_forward.1} parent=11 // pred_fallthru
          _
        // Predicated region
        $region77: #{bert_text_classification_forward.1} parent=11 // pred_check
          %p548 = pneg %p438
        $region78: #{bert_text_classification_forward.1} parent=11 // pred_check_branch
          %550 = sbr.rel (%p548) target = $region80
        $region79: #{bert_text_classification_forward.1} parent=11 // pred_region
          _
        $region80: #{bert_text_classification_forward.1} parent=11 // pred_fallthru
          _
        // Predicated region
        $region81: #{bert_text_classification_forward.1} parent=11 // pred_check
          %p551 = pneg %p459
        $region82: #{bert_text_classification_forward.1} parent=11 // pred_check_branch
          %553 = sbr.rel (%p551) target = $region84
        $region83: #{bert_text_classification_forward.1} parent=11 // pred_region
          _
        $region84: #{bert_text_classification_forward.1} parent=11 // pred_fallthru
          _
      $region12: #{bert_text_classification_forward.1} parent=5 // pred_fallthru
        _
      %p554 = scmp.lt.s32.totalorder %s29, 2
      // Predicated region
      $region85: #{bert_text_classification_forward.1} parent=5 // pred_check
        %p555 = pneg %p554
      $region86: #{bert_text_classification_forward.1} parent=5 // pred_check_branch
        %557 = sbr.rel (%p555) target = $region88
      $region87: #{bert_text_classification_forward.1} parent=5 // pred_region
        // Predicated region
        $region89: #{bert_text_classification_forward.1} parent=87 // pred_check
          %p558 = pneg %p49
        $region90: #{bert_text_classification_forward.1} parent=87 // pred_check_branch
          %560 = sbr.rel (%p558) target = $region92
        $region91: #{bert_text_classification_forward.1} parent=87 // pred_region
          %p561 = scmp.lt.s32.totalorder %s29, 1
          %s562 = scalar_select %p561, %s29, 1
          %s563 = smul.addr %s562, 8
          %s564 = scalar_lea.vmem %s0, %s563
        $region92: #{bert_text_classification_forward.1} parent=87 // pred_fallthru
          _
        // Predicated region
        $region93: #{bert_text_classification_forward.1} parent=87 // pred_check
          %p565 = pneg %p75
        $region94: #{bert_text_classification_forward.1} parent=87 // pred_check_branch
          %567 = sbr.rel (%p565) target = $region96
        $region95: #{bert_text_classification_forward.1} parent=87 // pred_region
          %p568 = scmp.lt.s32.totalorder %s29, 1
          %s569 = scalar_select %p568, %s29, 1
          %s570 = scalar_lea.vmem %s1, %s569
        $region96: #{bert_text_classification_forward.1} parent=87 // pred_fallthru
          _
      $region88: #{bert_text_classification_forward.1} parent=5 // pred_fallthru
        _
      %p571 = scmp.le.s32.totalorder 1, %s29
      %p572 = scmp.lt.s32.totalorder %s29, 3
      %p573 = pnand %p571, %p572
      %p574 = pneg %p573
      // Predicated region
      $region97: #{bert_text_classification_forward.1} parent=5 // pred_check
        _
      $region98: #{bert_text_classification_forward.1} parent=5 // pred_check_branch
        %576 = sbr.rel (%p573) target = $region100
      $region99: #{bert_text_classification_forward.1} parent=5 // pred_region
        %s577 = ssub.s32 %s29, 1
        %p578 = scmp.lt.s32.totalorder %s34, 1
        %s579 = scalar_select %p578, %s34, 1
        %s580 = smul.addr %s579, 8
        %s581 = scalar_lea.vmem %s0, %s580
        %p582 = pneg %p55
        %p583 = pneg %p52
        %p584 = scmp.lt.s32.totalorder %s34, 1
        %s585 = scalar_select %p584, %s34, 1
        %s586 = scalar_lea.vmem %s1, %s585
        %p587 = pneg %p81
        %p588 = pneg %p78
        %p589 = pneg %p102
        %p590 = pneg %p99
        %p591 = pneg %p123
        %p592 = pneg %p120
        %p593 = pneg %p144
        %p594 = pneg %p141
        %p595 = pneg %p165
        %p596 = pneg %p162
        %p597 = pneg %p186
        %p598 = pneg %p183
        %p599 = pneg %p207
        %p600 = pneg %p204
        %p601 = pneg %p228
        %p602 = pneg %p225
        %p603 = pneg %p249
        %p604 = pneg %p246
        %p605 = pneg %p270
        %p606 = pneg %p267
        %p607 = pneg %p291
        %p608 = pneg %p288
        %p609 = pneg %p312
        %p610 = pneg %p309
        %p611 = pneg %p333
        %p612 = pneg %p330
        %p613 = pneg %p354
        %p614 = pneg %p351
        %p615 = pneg %p375
        %p616 = pneg %p372
        %p617 = pneg %p396
        %p618 = pneg %p393
        %p619 = pneg %p417
        %p620 = pneg %p414
        %p621 = pneg %p438
        %p622 = pneg %p435
        %p623 = pneg %p459
        %p624 = pneg %p456
        %p625 = pneg %p485
        %p626 = pneg %p482
        %s627 = sand.u32 %s472, 1
        %s628 = scalar_lea.sflag [#allocation3], %s627
        %s629 = sand.u32 %s472, 1
        %s630 = scalar_lea.vmem [#allocation2], %s629
        %p631 = scmp.lt.s32.totalorder %s34, 1
        %s632 = scalar_select %p631, %s34, 1
        %s633 = smul.addr %s632, 8
        %s634 = scalar_lea.vmem %s0, %s633
        %p635 = scmp.lt.s32.totalorder %s34, 1
        %s636 = scalar_select %p635, %s34, 1
        %s637 = scalar_lea.vmem %s1, %s636
        %v639 = vld [vmem:[%s637] sm:$0x1]
        %v640 = vld [vmem:[%s634] sm:$0xff]
        %v641 = vld [vmem:[%s2] sm:$0x1]
        %v642 = vld [vmem:[%s3] sm:$0x1]
        %vm643 = vcmask 261120
        %v644 = vsel %vm643, %v640, 0.0
        %645 = vadd.xlane.f32.xlu0 %v644
        %v646 = vpop.xlane.xlu0 %645
        %v647 = vrcp.pop 32.0
        %v648 = vmul.f32 %v646, %v647
        %v649 = vsub.f32 %v640, %v648
        %v650 = vmul.f32 %v649, %v649
        %v651 = vsel %vm643, %v650, 0.0
        %652 = vadd.xlane.f32.xlu0 %v651
        %v653 = vpop.xlane.xlu0 %652
        %v654 = vmul.f32 %v653, %v647
        %v655 = vadd.f32 %v654, 1e-12
        %v656 = vrsqrt.pop %v655
        %v657 = vmul.f32 %v649, %v656
        %v659 = vlaneseq
        %v660 = vshrl.u32 %v659, 7
        %v661 = vsub.s32 0, %v660
        %v662 = vrot.slane %v641, %v661
        %v664 = vmul.f32 %v657, %v662
        %v666 = vlaneseq
        %v667 = vshrl.u32 %v666, 7
        %v668 = vsub.s32 0, %v667
        %v669 = vrot.slane %v642, %v668
        %v671 = vadd.f32 %v664, %v669
        %v672 = vpack.c.bf16 %v671, %v671
        %v673 = vld [vmem:[%s4] sm:$0xf]
        %v674 = vld [vmem:[%s4 + $0x4] sm:$0xf]
        %v675 = vld [vmem:[%s4 + $0x8] sm:$0xf]
        %v676 = vld [vmem:[%s4 + $0xc] sm:$0xf]
        %v677 = vld [vmem:[%s5] sm:$0x1]
        %v679 = vlaneseq
        %v680 = vshrl.u32 %v679, 7
        %v681 = vsub.s32 0, %v680
        %v682 = vrot.slane %v677, %v681
        %v688 = vunpack.c.l.b16 %v673
        %v689 = vunpack.c.l.b16 %v674
        %v690 = vunpack.c.l.b16 %v675
        %v691 = vunpack.c.l.b16 %v676
        %v692 = vpack.c.b16 %v689, %v688
        %v693 = vpack.c.b16 %v691, %v690
        %v697 = vsel %vm643, %v672, 0
        %699 = vmatprep.subr.bf16.mxu0 0
        %700 = vmatpush1.bf16.msra.mxu0 0
        %701 = vmatprep.subr.bf16.mxu0 0
        %702 = vmatpush1.bf16.msra.mxu0 0
        %703 = vmatprep.subr.bf16.mxu0 0
        %704 = vmatpush1.bf16.msra.mxu0 0
        %705 = vmatprep.subr.bf16.mxu0 0
        %706 = vmatpush1.bf16.msra.mxu0 0
        %707 = vmatprep.subr.bf16.mxu0 0
        %708 = vmatpush1.bf16.msra.mxu0 0
        %709 = vmatprep.subr.bf16.mxu0 0
        %710 = vmatpush1.bf16.msra.mxu0 0
        %711 = vmatprep.subr.bf16.mxu0 0
        %712 = vmatpush1.bf16.msra.mxu0 %v693
        %713 = vmatprep.subr.bf16.mxu0 0
        %714 = vmatpush1.bf16.msra.mxu0 %v692
        %715 = vmatprep.subr.bf16.mxu0 0
        %716 = vmatpush2.bf16.msra.mxu0 0
        %717 = vmatprep.subr.bf16.mxu0 0
        %718 = vmatpush2.bf16.msra.mxu0 0
        %719 = vmatprep.subr.bf16.mxu0 0
        %720 = vmatpush2.bf16.msra.mxu0 0
        %721 = vmatprep.subr.bf16.mxu0 0
        %722 = vmatpush2.bf16.msra.mxu0 0
        %723 = vmatprep.subr.bf16.mxu0 0
        %724 = vmatpush2.bf16.msra.mxu0 0
        %725 = vmatprep.subr.bf16.mxu0 0
        %726 = vmatpush2.bf16.msra.mxu0 0
        %727 = vmatprep.subr.bf16.mxu0 0
        %728 = vmatpush2.bf16.msra.mxu0 0
        %729 = vmatprep.subr.bf16.mxu0 0
        %730 = vmatpush2.bf16.msra.mxu0 0
        %731 = vmatprep.mubr.bf16.mxu0 0
        %732 = vmatmul.mubr.bf16.gmra.mxu0 %v697
        %v733 = vpop.f32.mrf.mxu0
        %v734 = vadd.f32 %v682, %v733
        %v735 = vpop.f32.mrf.mxu0
        %v736 = vpop.f32.mrf.mxu0
        %v737 = vpop.f32.mrf.mxu0
        %738 = vdwg.mxu0
        %v739 = vpack.c.bf16 %v734, %v734
        %741 = vrot.lane.b32.xlu0 %v739, 96
        %v742 = vpop.permute.xlu0 %741
        %vm743 = vcmask 64512
        %v745 = vsel %vm743, %v739, 0
        %v748 = vsel %vm743, %v742, 0
        %750 = vmatprep.subr.bf16.mxu0 0
        %751 = vmatpush1.bf16.xpose.msra.mxu0 0
        %752 = vmatprep.subr.bf16.mxu0 0
        %753 = vmatpush1.bf16.xpose.msra.mxu0 0
        %754 = vmatprep.subr.bf16.mxu0 0
        %755 = vmatpush1.bf16.xpose.msra.mxu0 0
        %756 = vmatprep.subr.bf16.mxu0 0
        %757 = vmatpush1.bf16.xpose.msra.mxu0 0
        %758 = vmatprep.subr.bf16.mxu0 0
        %759 = vmatpush1.bf16.xpose.msra.mxu0 0
        %760 = vmatprep.subr.bf16.mxu0 0
        %761 = vmatpush1.bf16.xpose.msra.mxu0 0
        %762 = vmatprep.subr.bf16.mxu0 0
        %763 = vmatpush1.bf16.xpose.msra.mxu0 0
        %764 = vmatprep.subr.bf16.mxu0 0
        %765 = vmatpush1.bf16.xpose.msra.mxu0 %v748
        %766 = vmatprep.subr.bf16.mxu0 0
        %767 = vmatpush2.bf16.xpose.msra.mxu0 0
        %768 = vmatprep.subr.bf16.mxu0 0
        %769 = vmatpush2.bf16.xpose.msra.mxu0 0
        %770 = vmatprep.subr.bf16.mxu0 0
        %771 = vmatpush2.bf16.xpose.msra.mxu0 0
        %772 = vmatprep.subr.bf16.mxu0 0
        %773 = vmatpush2.bf16.xpose.msra.mxu0 0
        %774 = vmatprep.subr.bf16.mxu0 0
        %775 = vmatpush2.bf16.xpose.msra.mxu0 0
        %776 = vmatprep.subr.bf16.mxu0 0
        %777 = vmatpush2.bf16.xpose.msra.mxu0 0
        %778 = vmatprep.subr.bf16.mxu0 0
        %779 = vmatpush2.bf16.xpose.msra.mxu0 0
        %780 = vmatprep.subr.bf16.mxu0 0
        %781 = vmatpush2.bf16.xpose.msra.mxu0 0
        %782 = vmatprep.mubr.bf16.mxu0 0
        %783 = vmatmul.mubr.bf16.gmra.mxu0 %v745
        %v784 = vpop.f32.mrf.mxu0
        %v785 = vadd.f32 0.0, %v784
        %v786 = vpop.f32.mrf.mxu0
        %v787 = vpop.f32.mrf.mxu0
        %v788 = vpop.f32.mrf.mxu0
        %789 = vdwg.mxu0
        %v790 = vmul.f32 %v785, 0.35355338
        %v792 = vlaneseq
        %v793 = vshrl.u32 %v792, 7
        %v794 = vsub.s32 0, %v793
        %v795 = vrot.slane %v639, %v794
        %v797 = vadd.f32 %v790, %v795
        %v798 = vsel %vm743, %v797, -inf
        %799 = vmax.xlane.f32.xlu0 %v798
        %v800 = vpop.xlane.xlu0 %799
        %v801 = vsub.f32 %v797, %v800
        %v802 = vmul.f32 %v801, 1.442695
        %v803 = vpow.pop %v802
        %v804 = vsel %vm743, %v803, 0.0
        %805 = vadd.xlane.f32.xlu0 %v804
        %v806 = vpop.xlane.xlu0 %805
        %v807 = vrcp.pop %v806
        %v808 = vmul.f32 %v803, %v807
        %v809 = vpack.c.bf16 %v808, %v808
        %810 = vrot.lane.b32.xlu0 %v739, 64
        %v811 = vpop.permute.xlu0 %810
        %v813 = vsel %vm743, %v809, 0
        %vm815 = vcmask 1043456
        %v817 = vsel %vm815, %v811, 0
        %819 = vmatprep.subr.bf16.mxu0 0
        %820 = vmatpush1.bf16.msra.mxu0 0
        %821 = vmatprep.subr.bf16.mxu0 0
        %822 = vmatpush1.bf16.msra.mxu0 0
        %823 = vmatprep.subr.bf16.mxu0 0
        %824 = vmatpush1.bf16.msra.mxu0 0
        %825 = vmatprep.subr.bf16.mxu0 0
        %826 = vmatpush1.bf16.msra.mxu0 0
        %827 = vmatprep.subr.bf16.mxu0 0
        %828 = vmatpush1.bf16.msra.mxu0 0
        %829 = vmatprep.subr.bf16.mxu0 0
        %830 = vmatpush1.bf16.msra.mxu0 0
        %831 = vmatprep.subr.bf16.mxu0 0
        %832 = vmatpush1.bf16.msra.mxu0 0
        %833 = vmatprep.subr.bf16.mxu0 0
        %834 = vmatpush1.bf16.msra.mxu0 %v817
        %835 = vmatprep.subr.bf16.mxu0 0
        %836 = vmatpush2.bf16.msra.mxu0 0
        %837 = vmatprep.subr.bf16.mxu0 0
        %838 = vmatpush2.bf16.msra.mxu0 0
        %839 = vmatprep.subr.bf16.mxu0 0
        %840 = vmatpush2.bf16.msra.mxu0 0
        %841 = vmatprep.subr.bf16.mxu0 0
        %842 = vmatpush2.bf16.msra.mxu0 0
        %843 = vmatprep.subr.bf16.mxu0 0
        %844 = vmatpush2.bf16.msra.mxu0 0
        %845 = vmatprep.subr.bf16.mxu0 0
        %846 = vmatpush2.bf16.msra.mxu0 0
        %847 = vmatprep.subr.bf16.mxu0 0
        %848 = vmatpush2.bf16.msra.mxu0 0
        %849 = vmatprep.subr.bf16.mxu0 0
        %850 = vmatpush2.bf16.msra.mxu0 0
        %851 = vmatprep.mubr.bf16.mxu0 0
        %852 = vmatmul.mubr.bf16.gmra.mxu0 %v813
        %v853 = vpop.f32.mrf.mxu0
        %v854 = vadd.f32 0.0, %v853
        %v855 = vpop.f32.mrf.mxu0
        %v856 = vpop.f32.mrf.mxu0
        %v857 = vpop.f32.mrf.mxu0
        %858 = vdwg.mxu0
        %v859 = vpack.c.bf16 %v854, %v854
        %v860 = vld [vmem:[%s6] sm:$0xf]
        %861 = vrot.lane.b32.xlu0 %v739, 120
        %v862 = vpop.permute.xlu0 %861
        %863 = vrot.lane.b32.xlu0 %v739, 88
        %v864 = vpop.permute.xlu0 %863
        %v866 = vsel %vm743, %v862, 0
        %v869 = vsel %vm743, %v864, 0
        %871 = vmatprep.subr.bf16.mxu0 0
        %872 = vmatpush1.bf16.xpose.msra.mxu0 0
        %873 = vmatprep.subr.bf16.mxu0 0
        %874 = vmatpush1.bf16.xpose.msra.mxu0 0
        %875 = vmatprep.subr.bf16.mxu0 0
        %876 = vmatpush1.bf16.xpose.msra.mxu0 0
        %877 = vmatprep.subr.bf16.mxu0 0
        %878 = vmatpush1.bf16.xpose.msra.mxu0 0
        %879 = vmatprep.subr.bf16.mxu0 0
        %880 = vmatpush1.bf16.xpose.msra.mxu0 0
        %881 = vmatprep.subr.bf16.mxu0 0
        %882 = vmatpush1.bf16.xpose.msra.mxu0 0
        %883 = vmatprep.subr.bf16.mxu0 0
        %884 = vmatpush1.bf16.xpose.msra.mxu0 0
        %885 = vmatprep.subr.bf16.mxu0 0
        %886 = vmatpush1.bf16.xpose.msra.mxu0 %v869
        %887 = vmatprep.subr.bf16.mxu0 0
        %888 = vmatpush2.bf16.xpose.msra.mxu0 0
        %889 = vmatprep.subr.bf16.mxu0 0
        %890 = vmatpush2.bf16.xpose.msra.mxu0 0
        %891 = vmatprep.subr.bf16.mxu0 0
        %892 = vmatpush2.bf16.xpose.msra.mxu0 0
        %893 = vmatprep.subr.bf16.mxu0 0
        %894 = vmatpush2.bf16.xpose.msra.mxu0 0
        %895 = vmatprep.subr.bf16.mxu0 0
        %896 = vmatpush2.bf16.xpose.msra.mxu0 0
        %897 = vmatprep.subr.bf16.mxu0 0
        %898 = vmatpush2.bf16.xpose.msra.mxu0 0
        %899 = vmatprep.subr.bf16.mxu0 0
        %900 = vmatpush2.bf16.xpose.msra.mxu0 0
        %901 = vmatprep.subr.bf16.mxu0 0
        %902 = vmatpush2.bf16.xpose.msra.mxu0 0
        %903 = vmatprep.mubr.bf16.mxu0 0
        %904 = vmatmul.mubr.bf16.gmra.mxu0 %v866
        %v905 = vpop.f32.mrf.mxu0
        %v906 = vadd.f32 0.0, %v905
        %v907 = vpop.f32.mrf.mxu0
        %v908 = vpop.f32.mrf.mxu0
        %v909 = vpop.f32.mrf.mxu0
        %910 = vdwg.mxu0
        %v911 = vmul.f32 %v906, 0.35355338
        %v912 = vadd.f32 %v911, %v795
        %v913 = vsel %vm743, %v912, -inf
        %914 = vmax.xlane.f32.xlu0 %v913
        %v915 = vpop.xlane.xlu0 %914
        %v916 = vsub.f32 %v912, %v915
        %v917 = vmul.f32 %v916, 1.442695
        %v918 = vpow.pop %v917
        %v919 = vsel %vm743, %v918, 0.0
        %920 = vadd.xlane.f32.xlu0 %v919
        %v921 = vpop.xlane.xlu0 %920
        %v922 = vrcp.pop %v921
        %v923 = vmul.f32 %v918, %v922
        %v924 = vpack.c.bf16 %v923, %v923
        %925 = vrot.lane.b32.xlu0 %v739, 56
        %v926 = vpop.permute.xlu0 %925
        %v928 = vsel %vm743, %v924, 0
        %v931 = vsel %vm815, %v926, 0
        %933 = vmatprep.subr.bf16.mxu0 0
        %934 = vmatpush1.bf16.msra.mxu0 0
        %935 = vmatprep.subr.bf16.mxu0 0
        %936 = vmatpush1.bf16.msra.mxu0 0
        %937 = vmatprep.subr.bf16.mxu0 0
        %938 = vmatpush1.bf16.msra.mxu0 0
        %939 = vmatprep.subr.bf16.mxu0 0
        %940 = vmatpush1.bf16.msra.mxu0 0
        %941 = vmatprep.subr.bf16.mxu0 0
        %942 = vmatpush1.bf16.msra.mxu0 0
        %943 = vmatprep.subr.bf16.mxu0 0
        %944 = vmatpush1.bf16.msra.mxu0 0
        %945 = vmatprep.subr.bf16.mxu0 0
        %946 = vmatpush1.bf16.msra.mxu0 0
        %947 = vmatprep.subr.bf16.mxu0 0
        %948 = vmatpush1.bf16.msra.mxu0 %v931
        %949 = vmatprep.subr.bf16.mxu0 0
        %950 = vmatpush2.bf16.msra.mxu0 0
        %951 = vmatprep.subr.bf16.mxu0 0
        %952 = vmatpush2.bf16.msra.mxu0 0
        %953 = vmatprep.subr.bf16.mxu0 0
        %954 = vmatpush2.bf16.msra.mxu0 0
        %955 = vmatprep.subr.bf16.mxu0 0
        %956 = vmatpush2.bf16.msra.mxu0 0
        %957 = vmatprep.subr.bf16.mxu0 0
        %958 = vmatpush2.bf16.msra.mxu0 0
        %959 = vmatprep.subr.bf16.mxu0 0
        %960 = vmatpush2.bf16.msra.mxu0 0
        %961 = vmatprep.subr.bf16.mxu0 0
        %962 = vmatpush2.bf16.msra.mxu0 0
        %963 = vmatprep.subr.bf16.mxu0 0
        %964 = vmatpush2.bf16.msra.mxu0 0
        %965 = vmatprep.mubr.bf16.mxu0 0
        %966 = vmatmul.mubr.bf16.gmra.mxu0 %v928
        %v967 = vpop.f32.mrf.mxu0
        %v968 = vadd.f32 0.0, %v967
        %v969 = vpop.f32.mrf.mxu0
        %v970 = vpop.f32.mrf.mxu0
        %v971 = vpop.f32.mrf.mxu0
        %972 = vdwg.mxu0
        %v973 = vpack.c.bf16 %v968, %v968
        %s974 = scalar_lea.vmem %s6, 4
        %v975 = vld [vmem:[%s974] sm:$0xf]
        %v977 = vsel %vm743, %v973, 0
        %v980 = vsel %vm815, %v975, 0
        %982 = vmatprep.subr.bf16.mxu0 0
        %983 = vmatpush1.bf16.msra.mxu0 0
        %984 = vmatprep.subr.bf16.mxu0 0
        %985 = vmatpush1.bf16.msra.mxu0 0
        %986 = vmatprep.subr.bf16.mxu0 0
        %987 = vmatpush1.bf16.msra.mxu0 0
        %988 = vmatprep.subr.bf16.mxu0 0
        %989 = vmatpush1.bf16.msra.mxu0 0
        %990 = vmatprep.subr.bf16.mxu0 0
        %991 = vmatpush1.bf16.msra.mxu0 0
        %992 = vmatprep.subr.bf16.mxu0 0
        %993 = vmatpush1.bf16.msra.mxu0 0
        %994 = vmatprep.subr.bf16.mxu0 0
        %995 = vmatpush1.bf16.msra.mxu0 0
        %996 = vmatprep.subr.bf16.mxu0 0
        %997 = vmatpush1.bf16.msra.mxu0 %v980
        %998 = vmatprep.subr.bf16.mxu0 0
        %999 = vmatpush2.bf16.msra.mxu0 0
        %1000 = vmatprep.subr.bf16.mxu0 0
        %1001 = vmatpush2.bf16.msra.mxu0 0
        %1002 = vmatprep.subr.bf16.mxu0 0
        %1003 = vmatpush2.bf16.msra.mxu0 0
        %1004 = vmatprep.subr.bf16.mxu0 0
        %1005 = vmatpush2.bf16.msra.mxu0 0
        %1006 = vmatprep.subr.bf16.mxu0 0
        %1007 = vmatpush2.bf16.msra.mxu0 0
        %1008 = vmatprep.subr.bf16.mxu0 0
        %1009 = vmatpush2.bf16.msra.mxu0 0
        %1010 = vmatprep.subr.bf16.mxu0 0
        %1011 = vmatpush2.bf16.msra.mxu0 0
        %1012 = vmatprep.subr.bf16.mxu0 0
        %1013 = vmatpush2.bf16.msra.mxu0 0
        %1014 = vmatprep.mubr.bf16.mxu0 0
        %1015 = vmatmul.mubr.bf16.gmra.mxu0 %v977
        %v1016 = vpop.f32.mrf.mxu0
        %v1017 = vadd.f32 0.0, %v1016
        %v1018 = vpop.f32.mrf.mxu0
        %v1019 = vpop.f32.mrf.mxu0
        %v1020 = vpop.f32.mrf.mxu0
        %1021 = vdwg.mxu0
        %v1023 = vsel %vm743, %v859, 0
        %v1026 = vsel %vm815, %v860, 0
        %1028 = vmatprep.subr.bf16.mxu0 0
        %1029 = vmatpush1.bf16.msra.mxu0 0
        %1030 = vmatprep.subr.bf16.mxu0 0
        %1031 = vmatpush1.bf16.msra.mxu0 0
        %1032 = vmatprep.subr.bf16.mxu0 0
        %1033 = vmatpush1.bf16.msra.mxu0 0
        %1034 = vmatprep.subr.bf16.mxu0 0
        %1035 = vmatpush1.bf16.msra.mxu0 0
        %1036 = vmatprep.subr.bf16.mxu0 0
        %1037 = vmatpush1.bf16.msra.mxu0 0
        %1038 = vmatprep.subr.bf16.mxu0 0
        %1039 = vmatpush1.bf16.msra.mxu0 0
        %1040 = vmatprep.subr.bf16.mxu0 0
        %1041 = vmatpush1.bf16.msra.mxu0 0
        %1042 = vmatprep.subr.bf16.mxu0 0
        %1043 = vmatpush1.bf16.msra.mxu0 %v1026
        %1044 = vmatprep.subr.bf16.mxu0 0
        %1045 = vmatpush2.bf16.msra.mxu0 0
        %1046 = vmatprep.subr.bf16.mxu0 0
        %1047 = vmatpush2.bf16.msra.mxu0 0
        %1048 = vmatprep.subr.bf16.mxu0 0
        %1049 = vmatpush2.bf16.msra.mxu0 0
        %1050 = vmatprep.subr.bf16.mxu0 0
        %1051 = vmatpush2.bf16.msra.mxu0 0
        %1052 = vmatprep.subr.bf16.mxu0 0
        %1053 = vmatpush2.bf16.msra.mxu0 0
        %1054 = vmatprep.subr.bf16.mxu0 0
        %1055 = vmatpush2.bf16.msra.mxu0 0
        %1056 = vmatprep.subr.bf16.mxu0 0
        %1057 = vmatpush2.bf16.msra.mxu0 0
        %1058 = vmatprep.subr.bf16.mxu0 0
        %1059 = vmatpush2.bf16.msra.mxu0 0
        %1060 = vmatprep.mubr.bf16.mxu0 0
        %1061 = vmatmul.mubr.bf16.gmra.mxu0 %v1023
        %v1062 = vpop.f32.mrf.mxu0
        %v1063 = vadd.f32 %v1017, %v1062
        %v1064 = vpop.f32.mrf.mxu0
        %v1065 = vpop.f32.mrf.mxu0
        %v1066 = vpop.f32.mrf.mxu0
        %1067 = vdwg.mxu0
        %1068 = vrot.lane.b32.xlu0 %v739, 112
        %v1069 = vpop.permute.xlu0 %1068
        %1070 = vrot.lane.b32.xlu0 %v739, 80
        %v1071 = vpop.permute.xlu0 %1070
        %v1073 = vsel %vm743, %v1069, 0
        %v1076 = vsel %vm743, %v1071, 0
        %1078 = vmatprep.subr.bf16.mxu0 0
        %1079 = vmatpush1.bf16.xpose.msra.mxu0 0
        %1080 = vmatprep.subr.bf16.mxu0 0
        %1081 = vmatpush1.bf16.xpose.msra.mxu0 0
        %1082 = vmatprep.subr.bf16.mxu0 0
        %1083 = vmatpush1.bf16.xpose.msra.mxu0 0
        %1084 = vmatprep.subr.bf16.mxu0 0
        %1085 = vmatpush1.bf16.xpose.msra.mxu0 0
        %1086 = vmatprep.subr.bf16.mxu0 0
        %1087 = vmatpush1.bf16.xpose.msra.mxu0 0
        %1088 = vmatprep.subr.bf16.mxu0 0
        %1089 = vmatpush1.bf16.xpose.msra.mxu0 0
        %1090 = vmatprep.subr.bf16.mxu0 0
        %1091 = vmatpush1.bf16.xpose.msra.mxu0 0
        %1092 = vmatprep.subr.bf16.mxu0 0
        %1093 = vmatpush1.bf16.xpose.msra.mxu0 %v1076
        %1094 = vmatprep.subr.bf16.mxu0 0
        %1095 = vmatpush2.bf16.xpose.msra.mxu0 0
        %1096 = vmatprep.subr.bf16.mxu0 0
        %1097 = vmatpush2.bf16.xpose.msra.mxu0 0
        %1098 = vmatprep.subr.bf16.mxu0 0
        %1099 = vmatpush2.bf16.xpose.msra.mxu0 0
        %1100 = vmatprep.subr.bf16.mxu0 0
        %1101 = vmatpush2.bf16.xpose.msra.mxu0 0
        %1102 = vmatprep.subr.bf16.mxu0 0
        %1103 = vmatpush2.bf16.xpose.msra.mxu0 0
        %1104 = vmatprep.subr.bf16.mxu0 0
        %1105 = vmatpush2.bf16.xpose.msra.mxu0 0
        %1106 = vmatprep.subr.bf16.mxu0 0
        %1107 = vmatpush2.bf16.xpose.msra.mxu0 0
        %1108 = vmatprep.subr.bf16.mxu0 0
        %1109 = vmatpush2.bf16.xpose.msra.mxu0 0
        %1110 = vmatprep.mubr.bf16.mxu0 0
        %1111 = vmatmul.mubr.bf16.gmra.mxu0 %v1073
        %v1112 = vpop.f32.mrf.mxu0
        %v1113 = vadd.f32 0.0, %v1112
        %v1114 = vpop.f32.mrf.mxu0
        %v1115 = vpop.f32.mrf.mxu0
        %v1116 = vpop.f32.mrf.mxu0
        %1117 = vdwg.mxu0
        %v1118 = vmul.f32 %v1113, 0.35355338
        %v1119 = vadd.f32 %v1118, %v795
        %v1120 = vsel %vm743, %v1119, -inf
        %1121 = vmax.xlane.f32.xlu0 %v1120
        %v1122 = vpop.xlane.xlu0 %1121
        %v1123 = vsub.f32 %v1119, %v1122
        %v1124 = vmul.f32 %v1123, 1.442695
        %v1125 = vpow.pop %v1124
        %v1126 = vsel %vm743, %v1125, 0.0
        %1127 = vadd.xlane.f32.xlu0 %v1126
        %v1128 = vpop.xlane.xlu0 %1127
        %v1129 = vrcp.pop %v1128
        %v1130 = vmul.f32 %v1125, %v1129
        %v1131 = vpack.c.bf16 %v1130, %v1130
        %1132 = vrot.lane.b32.xlu0 %v739, 48
        %v1133 = vpop.permute.xlu0 %1132
        %v1135 = vsel %vm743, %v1131, 0
        %v1138 = vsel %vm815, %v1133, 0
        %1140 = vmatprep.subr.bf16.mxu0 0
        %1141 = vmatpush1.bf16.msra.mxu0 0
        %1142 = vmatprep.subr.bf16.mxu0 0
        %1143 = vmatpush1.bf16.msra.mxu0 0
        %1144 = vmatprep.subr.bf16.mxu0 0
        %1145 = vmatpush1.bf16.msra.mxu0 0
        %1146 = vmatprep.subr.bf16.mxu0 0
        %1147 = vmatpush1.bf16.msra.mxu0 0
        %1148 = vmatprep.subr.bf16.mxu0 0
        %1149 = vmatpush1.bf16.msra.mxu0 0
        %1150 = vmatprep.subr.bf16.mxu0 0
        %1151 = vmatpush1.bf16.msra.mxu0 0
        %1152 = vmatprep.subr.bf16.mxu0 0
        %1153 = vmatpush1.bf16.msra.mxu0 0
        %1154 = vmatprep.subr.bf16.mxu0 0
        %1155 = vmatpush1.bf16.msra.mxu0 %v1138
        %1156 = vmatprep.subr.bf16.mxu0 0
        %1157 = vmatpush2.bf16.msra.mxu0 0
        %1158 = vmatprep.subr.bf16.mxu0 0
        %1159 = vmatpush2.bf16.msra.mxu0 0
        %1160 = vmatprep.subr.bf16.mxu0 0
        %1161 = vmatpush2.bf16.msra.mxu0 0
        %1162 = vmatprep.subr.bf16.mxu0 0
        %1163 = vmatpush2.bf16.msra.mxu0 0
        %1164 = vmatprep.subr.bf16.mxu0 0
        %1165 = vmatpush2.bf16.msra.mxu0 0
        %1166 = vmatprep.subr.bf16.mxu0 0
        %1167 = vmatpush2.bf16.msra.mxu0 0
        %1168 = vmatprep.subr.bf16.mxu0 0
        %1169 = vmatpush2.bf16.msra.mxu0 0
        %1170 = vmatprep.subr.bf16.mxu0 0
        %1171 = vmatpush2.bf16.msra.mxu0 0
        %1172 = vmatprep.mubr.bf16.mxu0 0
        %1173 = vmatmul.mubr.bf16.gmra.mxu0 %v1135
        %v1174 = vpop.f32.mrf.mxu0
        %v1175 = vadd.f32 0.0, %v1174
        %v1176 = vpop.f32.mrf.mxu0
        %v1177 = vpop.f32.mrf.mxu0
        %v1178 = vpop.f32.mrf.mxu0
        %1179 = vdwg.mxu0
        %v1180 = vpack.c.bf16 %v1175, %v1175
        %s1181 = scalar_lea.vmem %s6, 8
        %v1182 = vld [vmem:[%s1181] sm:$0xf]
        %v1184 = vsel %vm743, %v1180, 0
        %v1187 = vsel %vm815, %v1182, 0
        %1189 = vmatprep.subr.bf16.mxu0 0
        %1190 = vmatpush1.bf16.msra.mxu0 0
        %1191 = vmatprep.subr.bf16.mxu0 0
        %1192 = vmatpush1.bf16.msra.mxu0 0
        %1193 = vmatprep.subr.bf16.mxu0 0
        %1194 = vmatpush1.bf16.msra.mxu0 0
        %1195 = vmatprep.subr.bf16.mxu0 0
        %1196 = vmatpush1.bf16.msra.mxu0 0
        %1197 = vmatprep.subr.bf16.mxu0 0
        %1198 = vmatpush1.bf16.msra.mxu0 0
        %1199 = vmatprep.subr.bf16.mxu0 0
        %1200 = vmatpush1.bf16.msra.mxu0 0
        %1201 = vmatprep.subr.bf16.mxu0 0
        %1202 = vmatpush1.bf16.msra.mxu0 0
        %1203 = vmatprep.subr.bf16.mxu0 0
        %1204 = vmatpush1.bf16.msra.mxu0 %v1187
        %1205 = vmatprep.subr.bf16.mxu0 0
        %1206 = vmatpush2.bf16.msra.mxu0 0
        %1207 = vmatprep.subr.bf16.mxu0 0
        %1208 = vmatpush2.bf16.msra.mxu0 0
        %1209 = vmatprep.subr.bf16.mxu0 0
        %1210 = vmatpush2.bf16.msra.mxu0 0
        %1211 = vmatprep.subr.bf16.mxu0 0
        %1212 = vmatpush2.bf16.msra.mxu0 0
        %1213 = vmatprep.subr.bf16.mxu0 0
        %1214 = vmatpush2.bf16.msra.mxu0 0
        %1215 = vmatprep.subr.bf16.mxu0 0
        %1216 = vmatpush2.bf16.msra.mxu0 0
        %1217 = vmatprep.subr.bf16.mxu0 0
        %1218 = vmatpush2.bf16.msra.mxu0 0
        %1219 = vmatprep.subr.bf16.mxu0 0
        %1220 = vmatpush2.bf16.msra.mxu0 0
        %1221 = vmatprep.mubr.bf16.mxu0 0
        %1222 = vmatmul.mubr.bf16.gmra.mxu0 %v1184
        %v1223 = vpop.f32.mrf.mxu0
        %v1224 = vadd.f32 0.0, %v1223
        %v1225 = vpop.f32.mrf.mxu0
        %v1226 = vpop.f32.mrf.mxu0
        %v1227 = vpop.f32.mrf.mxu0
        %1228 = vdwg.mxu0
        %v1229 = vadd.f32 %v1063, %v1224
        %1230 = vrot.lane.b32.xlu0 %v739, 104
        %v1231 = vpop.permute.xlu0 %1230
        %1232 = vrot.lane.b32.xlu0 %v739, 72
        %v1233 = vpop.permute.xlu0 %1232
        %v1235 = vsel %vm743, %v1231, 0
        %v1238 = vsel %vm743, %v1233, 0
        %1240 = vmatprep.subr.bf16.mxu0 0
        %1241 = vmatpush1.bf16.xpose.msra.mxu0 0
        %1242 = vmatprep.subr.bf16.mxu0 0
        %1243 = vmatpush1.bf16.xpose.msra.mxu0 0
        %1244 = vmatprep.subr.bf16.mxu0 0
        %1245 = vmatpush1.bf16.xpose.msra.mxu0 0
        %1246 = vmatprep.subr.bf16.mxu0 0
        %1247 = vmatpush1.bf16.xpose.msra.mxu0 0
        %1248 = vmatprep.subr.bf16.mxu0 0
        %1249 = vmatpush1.bf16.xpose.msra.mxu0 0
        %1250 = vmatprep.subr.bf16.mxu0 0
        %1251 = vmatpush1.bf16.xpose.msra.mxu0 0
        %1252 = vmatprep.subr.bf16.mxu0 0
        %1253 = vmatpush1.bf16.xpose.msra.mxu0 0
        %1254 = vmatprep.subr.bf16.mxu0 0
        %1255 = vmatpush1.bf16.xpose.msra.mxu0 %v1238
        %1256 = vmatprep.subr.bf16.mxu0 0
        %1257 = vmatpush2.bf16.xpose.msra.mxu0 0
        %1258 = vmatprep.subr.bf16.mxu0 0
        %1259 = vmatpush2.bf16.xpose.msra.mxu0 0
        %1260 = vmatprep.subr.bf16.mxu0 0
        %1261 = vmatpush2.bf16.xpose.msra.mxu0 0
        %1262 = vmatprep.subr.bf16.mxu0 0
        %1263 = vmatpush2.bf16.xpose.msra.mxu0 0
        %1264 = vmatprep.subr.bf16.mxu0 0
        %1265 = vmatpush2.bf16.xpose.msra.mxu0 0
        %1266 = vmatprep.subr.bf16.mxu0 0
        %1267 = vmatpush2.bf16.xpose.msra.mxu0 0
        %1268 = vmatprep.subr.bf16.mxu0 0
        %1269 = vmatpush2.bf16.xpose.msra.mxu0 0
        %1270 = vmatprep.subr.bf16.mxu0 0
        %1271 = vmatpush2.bf16.xpose.msra.mxu0 0
        %1272 = vmatprep.mubr.bf16.mxu0 0
        %1273 = vmatmul.mubr.bf16.gmra.mxu0 %v1235
        %v1274 = vpop.f32.mrf.mxu0
        %v1275 = vadd.f32 0.0, %v1274
        %v1276 = vpop.f32.mrf.mxu0
        %v1277 = vpop.f32.mrf.mxu0
        %v1278 = vpop.f32.mrf.mxu0
        %1279 = vdwg.mxu0
        %v1280 = vmul.f32 %v1275, 0.35355338
        %v1281 = vadd.f32 %v1280, %v795
        %v1282 = vsel %vm743, %v1281, -inf
        %1283 = vmax.xlane.f32.xlu0 %v1282
        %v1284 = vpop.xlane.xlu0 %1283
        %v1285 = vsub.f32 %v1281, %v1284
        %v1286 = vmul.f32 %v1285, 1.442695
        %v1287 = vpow.pop %v1286
        %v1288 = vsel %vm743, %v1287, 0.0
        %1289 = vadd.xlane.f32.xlu0 %v1288
        %v1290 = vpop.xlane.xlu0 %1289
        %v1291 = vrcp.pop %v1290
        %v1292 = vmul.f32 %v1287, %v1291
        %v1293 = vpack.c.bf16 %v1292, %v1292
        %1294 = vrot.lane.b32.xlu0 %v739, 40
        %v1295 = vpop.permute.xlu0 %1294
        %v1297 = vsel %vm743, %v1293, 0
        %v1300 = vsel %vm815, %v1295, 0
        %1302 = vmatprep.subr.bf16.mxu0 0
        %1303 = vmatpush1.bf16.msra.mxu0 0
        %1304 = vmatprep.subr.bf16.mxu0 0
        %1305 = vmatpush1.bf16.msra.mxu0 0
        %1306 = vmatprep.subr.bf16.mxu0 0
        %1307 = vmatpush1.bf16.msra.mxu0 0
        %1308 = vmatprep.subr.bf16.mxu0 0
        %1309 = vmatpush1.bf16.msra.mxu0 0
        %1310 = vmatprep.subr.bf16.mxu0 0
        %1311 = vmatpush1.bf16.msra.mxu0 0
        %1312 = vmatprep.subr.bf16.mxu0 0
        %1313 = vmatpush1.bf16.msra.mxu0 0
        %1314 = vmatprep.subr.bf16.mxu0 0
        %1315 = vmatpush1.bf16.msra.mxu0 0
        %1316 = vmatprep.subr.bf16.mxu0 0
        %1317 = vmatpush1.bf16.msra.mxu0 %v1300
        %1318 = vmatprep.subr.bf16.mxu0 0
        %1319 = vmatpush2.bf16.msra.mxu0 0
        %1320 = vmatprep.subr.bf16.mxu0 0
        %1321 = vmatpush2.bf16.msra.mxu0 0
        %1322 = vmatprep.subr.bf16.mxu0 0
        %1323 = vmatpush2.bf16.msra.mxu0 0
        %1324 = vmatprep.subr.bf16.mxu0 0
        %1325 = vmatpush2.bf16.msra.mxu0 0
        %1326 = vmatprep.subr.bf16.mxu0 0
        %1327 = vmatpush2.bf16.msra.mxu0 0
        %1328 = vmatprep.subr.bf16.mxu0 0
        %1329 = vmatpush2.bf16.msra.mxu0 0
        %1330 = vmatprep.subr.bf16.mxu0 0
        %1331 = vmatpush2.bf16.msra.mxu0 0
        %1332 = vmatprep.subr.bf16.mxu0 0
        %1333 = vmatpush2.bf16.msra.mxu0 0
        %1334 = vmatprep.mubr.bf16.mxu0 0
        %1335 = vmatmul.mubr.bf16.gmra.mxu0 %v1297
        %v1336 = vpop.f32.mrf.mxu0
        %v1337 = vadd.f32 0.0, %v1336
        %v1338 = vpop.f32.mrf.mxu0
        %v1339 = vpop.f32.mrf.mxu0
        %v1340 = vpop.f32.mrf.mxu0
        %1341 = vdwg.mxu0
        %v1342 = vpack.c.bf16 %v1337, %v1337
        %s1343 = scalar_lea.vmem %s6, 12
        %v1344 = vld [vmem:[%s1343] sm:$0xf]
        %v1346 = vsel %vm743, %v1342, 0
        %v1349 = vsel %vm815, %v1344, 0
        %1351 = vmatprep.subr.bf16.mxu0 0
        %1352 = vmatpush1.bf16.msra.mxu0 0
        %1353 = vmatprep.subr.bf16.mxu0 0
        %1354 = vmatpush1.bf16.msra.mxu0 0
        %1355 = vmatprep.subr.bf16.mxu0 0
        %1356 = vmatpush1.bf16.msra.mxu0 0
        %1357 = vmatprep.subr.bf16.mxu0 0
        %1358 = vmatpush1.bf16.msra.mxu0 0
        %1359 = vmatprep.subr.bf16.mxu0 0
        %1360 = vmatpush1.bf16.msra.mxu0 0
        %1361 = vmatprep.subr.bf16.mxu0 0
        %1362 = vmatpush1.bf16.msra.mxu0 0
        %1363 = vmatprep.subr.bf16.mxu0 0
        %1364 = vmatpush1.bf16.msra.mxu0 0
        %1365 = vmatprep.subr.bf16.mxu0 0
        %1366 = vmatpush1.bf16.msra.mxu0 %v1349
        %1367 = vmatprep.subr.bf16.mxu0 0
        %1368 = vmatpush2.bf16.msra.mxu0 0
        %1369 = vmatprep.subr.bf16.mxu0 0
        %1370 = vmatpush2.bf16.msra.mxu0 0
        %1371 = vmatprep.subr.bf16.mxu0 0
        %1372 = vmatpush2.bf16.msra.mxu0 0
        %1373 = vmatprep.subr.bf16.mxu0 0
        %1374 = vmatpush2.bf16.msra.mxu0 0
        %1375 = vmatprep.subr.bf16.mxu0 0
        %1376 = vmatpush2.bf16.msra.mxu0 0
        %1377 = vmatprep.subr.bf16.mxu0 0
        %1378 = vmatpush2.bf16.msra.mxu0 0
        %1379 = vmatprep.subr.bf16.mxu0 0
        %1380 = vmatpush2.bf16.msra.mxu0 0
        %1381 = vmatprep.subr.bf16.mxu0 0
        %1382 = vmatpush2.bf16.msra.mxu0 0
        %1383 = vmatprep.mubr.bf16.mxu0 0
        %1384 = vmatmul.mubr.bf16.gmra.mxu0 %v1346
        %v1385 = vpop.f32.mrf.mxu0
        %v1386 = vadd.f32 0.0, %v1385
        %v1387 = vpop.f32.mrf.mxu0
        %v1388 = vpop.f32.mrf.mxu0
        %v1389 = vpop.f32.mrf.mxu0
        %1390 = vdwg.mxu0
        %v1391 = vadd.f32 %v1229, %v1386
        %v1392 = vld [vmem:[%s7] sm:$0x1]
        %v1394 = vlaneseq
        %v1395 = vshrl.u32 %v1394, 7
        %v1396 = vsub.s32 0, %v1395
        %v1397 = vrot.slane %v1392, %v1396
        %v1399 = vadd.f32 %v1391, %v1397
        %v1400 = vadd.f32 %v1399, %v671
        %v1401 = vld [vmem:[%s8] sm:$0x1]
        %v1402 = vld [vmem:[%s9] sm:$0x1]
        %v1403 = vsel %vm643, %v1400, 0.0
        %1404 = vadd.xlane.f32.xlu0 %v1403
        %v1405 = vpop.xlane.xlu0 %1404
        %v1406 = vmul.f32 %v1405, %v647
        %v1407 = vsub.f32 %v1400, %v1406
        %v1408 = vmul.f32 %v1407, %v1407
        %v1409 = vsel %vm643, %v1408, 0.0
        %1410 = vadd.xlane.f32.xlu0 %v1409
        %v1411 = vpop.xlane.xlu0 %1410
        %v1412 = vmul.f32 %v1411, %v647
        %v1413 = vadd.f32 %v1412, 1e-12
        %v1414 = vrsqrt.pop %v1413
        %v1415 = vmul.f32 %v1407, %v1414
        %v1417 = vlaneseq
        %v1418 = vshrl.u32 %v1417, 7
        %v1419 = vsub.s32 0, %v1418
        %v1420 = vrot.slane %v1401, %v1419
        %v1422 = vmul.f32 %v1415, %v1420
        %v1424 = vlaneseq
        %v1425 = vshrl.u32 %v1424, 7
        %v1426 = vsub.s32 0, %v1425
        %v1427 = vrot.slane %v1402, %v1426
        %v1429 = vadd.f32 %v1422, %v1427
        %v1430 = vpack.c.bf16 %v1429, %v1429
        %v1431 = vld [vmem:[%s10] sm:$0xf]
        %v1432 = vld [vmem:[%s10 + $0x4] sm:$0xf]
        %v1433 = vld [vmem:[%s10 + $0x8] sm:$0xf]
        %v1434 = vld [vmem:[%s10 + $0xc] sm:$0xf]
        %v1435 = vld [vmem:[%s11] sm:$0x1]
        %v1437 = vlaneseq
        %v1438 = vshrl.u32 %v1437, 7
        %v1439 = vsub.s32 0, %v1438
        %v1440 = vrot.slane %v1435, %v1439
        %v1446 = vunpack.c.l.b16 %v1431
        %v1447 = vunpack.c.l.b16 %v1432
        %v1448 = vunpack.c.l.b16 %v1433
        %v1449 = vunpack.c.l.b16 %v1434
        %v1450 = vpack.c.b16 %v1447, %v1446
        %v1451 = vpack.c.b16 %v1449, %v1448
        %v1455 = vsel %vm643, %v1430, 0
        %1457 = vmatprep.subr.bf16.mxu0 0
        %1458 = vmatpush1.bf16.msra.mxu0 0
        %1459 = vmatprep.subr.bf16.mxu0 0
        %1460 = vmatpush1.bf16.msra.mxu0 0
        %1461 = vmatprep.subr.bf16.mxu0 0
        %1462 = vmatpush1.bf16.msra.mxu0 0
        %1463 = vmatprep.subr.bf16.mxu0 0
        %1464 = vmatpush1.bf16.msra.mxu0 0
        %1465 = vmatprep.subr.bf16.mxu0 0
        %1466 = vmatpush1.bf16.msra.mxu0 0
        %1467 = vmatprep.subr.bf16.mxu0 0
        %1468 = vmatpush1.bf16.msra.mxu0 0
        %1469 = vmatprep.subr.bf16.mxu0 0
        %1470 = vmatpush1.bf16.msra.mxu0 %v1451
        %1471 = vmatprep.subr.bf16.mxu0 0
        %1472 = vmatpush1.bf16.msra.mxu0 %v1450
        %1473 = vmatprep.subr.bf16.mxu0 0
        %1474 = vmatpush2.bf16.msra.mxu0 0
        %1475 = vmatprep.subr.bf16.mxu0 0
        %1476 = vmatpush2.bf16.msra.mxu0 0
        %1477 = vmatprep.subr.bf16.mxu0 0
        %1478 = vmatpush2.bf16.msra.mxu0 0
        %1479 = vmatprep.subr.bf16.mxu0 0
        %1480 = vmatpush2.bf16.msra.mxu0 0
        %1481 = vmatprep.subr.bf16.mxu0 0
        %1482 = vmatpush2.bf16.msra.mxu0 0
        %1483 = vmatprep.subr.bf16.mxu0 0
        %1484 = vmatpush2.bf16.msra.mxu0 0
        %1485 = vmatprep.subr.bf16.mxu0 0
        %1486 = vmatpush2.bf16.msra.mxu0 0
        %1487 = vmatprep.subr.bf16.mxu0 0
        %1488 = vmatpush2.bf16.msra.mxu0 0
        %1489 = vmatprep.mubr.bf16.mxu0 0
        %1490 = vmatmul.mubr.bf16.gmra.mxu0 %v1455
        %v1491 = vpop.f32.mrf.mxu0
        %v1492 = vadd.f32 %v1440, %v1491
        %v1493 = vpop.f32.mrf.mxu0
        %v1494 = vpop.f32.mrf.mxu0
        %v1495 = vpop.f32.mrf.mxu0
        %1496 = vdwg.mxu0
        %v1497 = vmul.f32 %v1492, %v1492
        %v1498 = vmul.f32 %v1492, %v1497
        %v1499 = vmul.f32 %v1498, 0.044715
        %v1500 = vadd.f32 %v1492, %v1499
        %v1501 = vmul.f32 %v1500, 0.7978846
        %v1502 = vtanh.pop %v1501
        %v1503 = vadd.f32 %v1502, 1.0
        %v1504 = vmul.f32 %v1503, 0.5
        %v1505 = vmul.f32 %v1492, %v1504
        %v1506 = vpack.c.bf16 %v1505, %v1505
        %v1507 = vld [vmem:[%s12] sm:$0xf]
        %v1508 = vld [vmem:[%s12 + $0x4] sm:$0xf]
        %v1509 = vld [vmem:[%s12 + $0x8] sm:$0xf]
        %v1510 = vld [vmem:[%s12 + $0xc] sm:$0xf]
        %v1511 = vld [vmem:[%s12 + $0x10] sm:$0xf]
        %v1512 = vld [vmem:[%s12 + $0x14] sm:$0xf]
        %v1513 = vld [vmem:[%s12 + $0x18] sm:$0xf]
        %v1514 = vld [vmem:[%s12 + $0x1c] sm:$0xf]
        %v1515 = vld [vmem:[%s13] sm:$0x1]
        %v1517 = vlaneseq
        %v1518 = vshrl.u32 %v1517, 7
        %v1519 = vsub.s32 0, %v1518
        %v1520 = vrot.slane %v1515, %v1519
        %v1530 = vunpack.c.l.b16 %v1507
        %v1531 = vunpack.c.l.b16 %v1508
        %v1532 = vunpack.c.l.b16 %v1509
        %v1533 = vunpack.c.l.b16 %v1510
        %v1534 = vunpack.c.l.b16 %v1511
        %v1535 = vunpack.c.l.b16 %v1512
        %v1536 = vunpack.c.l.b16 %v1513
        %v1537 = vunpack.c.l.b16 %v1514
        %v1538 = vpack.c.b16 %v1531, %v1530
        %v1539 = vpack.c.b16 %v1533, %v1532
        %v1540 = vpack.c.b16 %v1535, %v1534
        %v1541 = vpack.c.b16 %v1537, %v1536
        %vm1546 = vcmask 523264
        %v1548 = vsel %vm1546, %v1506, 0
        %1550 = vmatprep.subr.bf16.mxu0 0
        %1551 = vmatpush1.bf16.msra.mxu0 0
        %1552 = vmatprep.subr.bf16.mxu0 0
        %1553 = vmatpush1.bf16.msra.mxu0 0
        %1554 = vmatprep.subr.bf16.mxu0 0
        %1555 = vmatpush1.bf16.msra.mxu0 0
        %1556 = vmatprep.subr.bf16.mxu0 0
        %1557 = vmatpush1.bf16.msra.mxu0 0
        %1558 = vmatprep.subr.bf16.mxu0 0
        %1559 = vmatpush1.bf16.msra.mxu0 %v1541
        %1560 = vmatprep.subr.bf16.mxu0 0
        %1561 = vmatpush1.bf16.msra.mxu0 %v1540
        %1562 = vmatprep.subr.bf16.mxu0 0
        %1563 = vmatpush1.bf16.msra.mxu0 %v1539
        %1564 = vmatprep.subr.bf16.mxu0 0
        %1565 = vmatpush1.bf16.msra.mxu0 %v1538
        %1566 = vmatprep.subr.bf16.mxu0 0
        %1567 = vmatpush2.bf16.msra.mxu0 0
        %1568 = vmatprep.subr.bf16.mxu0 0
        %1569 = vmatpush2.bf16.msra.mxu0 0
        %1570 = vmatprep.subr.bf16.mxu0 0
        %1571 = vmatpush2.bf16.msra.mxu0 0
        %1572 = vmatprep.subr.bf16.mxu0 0
        %1573 = vmatpush2.bf16.msra.mxu0 0
        %1574 = vmatprep.subr.bf16.mxu0 0
        %1575 = vmatpush2.bf16.msra.mxu0 0
        %1576 = vmatprep.subr.bf16.mxu0 0
        %1577 = vmatpush2.bf16.msra.mxu0 0
        %1578 = vmatprep.subr.bf16.mxu0 0
        %1579 = vmatpush2.bf16.msra.mxu0 0
        %1580 = vmatprep.subr.bf16.mxu0 0
        %1581 = vmatpush2.bf16.msra.mxu0 0
        %1582 = vmatprep.mubr.bf16.mxu0 0
        %1583 = vmatmul.mubr.bf16.gmra.mxu0 %v1548
        %v1584 = vpop.f32.mrf.mxu0
        %v1585 = vadd.f32 %v1520, %v1584
        %v1586 = vpop.f32.mrf.mxu0
        %v1587 = vpop.f32.mrf.mxu0
        %v1588 = vpop.f32.mrf.mxu0
        %1589 = vdwg.mxu0
        %v1590 = vadd.f32 %v1585, %v1429
        %v1591 = vld [vmem:[%s14] sm:$0x1]
        %v1592 = vld [vmem:[%s15] sm:$0x1]
        %v1593 = vsel %vm643, %v1590, 0.0
        %1594 = vadd.xlane.f32.xlu0 %v1593
        %v1595 = vpop.xlane.xlu0 %1594
        %v1596 = vmul.f32 %v1595, %v647
        %v1597 = vsub.f32 %v1590, %v1596
        %v1598 = vmul.f32 %v1597, %v1597
        %v1599 = vsel %vm643, %v1598, 0.0
        %1600 = vadd.xlane.f32.xlu0 %v1599
        %v1601 = vpop.xlane.xlu0 %1600
        %v1602 = vmul.f32 %v1601, %v647
        %v1603 = vadd.f32 %v1602, 1e-12
        %v1604 = vrsqrt.pop %v1603
        %v1605 = vmul.f32 %v1597, %v1604
        %v1607 = vlaneseq
        %v1608 = vshrl.u32 %v1607, 7
        %v1609 = vsub.s32 0, %v1608
        %v1610 = vrot.slane %v1591, %v1609
        %v1612 = vmul.f32 %v1605, %v1610
        %v1614 = vlaneseq
        %v1615 = vshrl.u32 %v1614, 7
        %v1616 = vsub.s32 0, %v1615
        %v1617 = vrot.slane %v1592, %v1616
        %v1619 = vadd.f32 %v1612, %v1617
        %v1620 = vpack.c.bf16 %v1619, %v1619
        %s1621 = scalar_lea.vmem %s4, 16
        %v1622 = vld [vmem:[%s1621] sm:$0xf]
        %v1623 = vld [vmem:[%s1621 + $0x4] sm:$0xf]
        %v1624 = vld [vmem:[%s1621 + $0x8] sm:$0xf]
        %v1625 = vld [vmem:[%s1621 + $0xc] sm:$0xf]
        %s1626 = scalar_lea.vmem %s5, 1
        %v1627 = vld [vmem:[%s1626] sm:$0x1]
        %v1629 = vlaneseq
        %v1630 = vshrl.u32 %v1629, 7
        %v1631 = vsub.s32 0, %v1630
        %v1632 = vrot.slane %v1627, %v1631
        %v1638 = vunpack.c.l.b16 %v1622
        %v1639 = vunpack.c.l.b16 %v1623
        %v1640 = vunpack.c.l.b16 %v1624
        %v1641 = vunpack.c.l.b16 %v1625
        %v1642 = vpack.c.b16 %v1639, %v1638
        %v1643 = vpack.c.b16 %v1641, %v1640
        %v1647 = vsel %vm643, %v1620, 0
        %1649 = vmatprep.subr.bf16.mxu0 0
        %1650 = vmatpush1.bf16.msra.mxu0 0
        %1651 = vmatprep.subr.bf16.mxu0 0
        %1652 = vmatpush1.bf16.msra.mxu0 0
        %1653 = vmatprep.subr.bf16.mxu0 0
        %1654 = vmatpush1.bf16.msra.mxu0 0
        %1655 = vmatprep.subr.bf16.mxu0 0
        %1656 = vmatpush1.bf16.msra.mxu0 0
        %1657 = vmatprep.subr.bf16.mxu0 0
        %1658 = vmatpush1.bf16.msra.mxu0 0
        %1659 = vmatprep.subr.bf16.mxu0 0
        %1660 = vmatpush1.bf16.msra.mxu0 0
        %1661 = vmatprep.subr.bf16.mxu0 0
        %1662 = vmatpush1.bf16.msra.mxu0 %v1643
        %1663 = vmatprep.subr.bf16.mxu0 0
        %1664 = vmatpush1.bf16.msra.mxu0 %v1642
        %1665 = vmatprep.subr.bf16.mxu0 0
        %1666 = vmatpush2.bf16.msra.mxu0 0
        %1667 = vmatprep.subr.bf16.mxu0 0
        %1668 = vmatpush2.bf16.msra.mxu0 0
        %1669 = vmatprep.subr.bf16.mxu0 0
        %1670 = vmatpush2.bf16.msra.mxu0 0
        %1671 = vmatprep.subr.bf16.mxu0 0
        %1672 = vmatpush2.bf16.msra.mxu0 0
        %1673 = vmatprep.subr.bf16.mxu0 0
        %1674 = vmatpush2.bf16.msra.mxu0 0
        %1675 = vmatprep.subr.bf16.mxu0 0
        %1676 = vmatpush2.bf16.msra.mxu0 0
        %1677 = vmatprep.subr.bf16.mxu0 0
        %1678 = vmatpush2.bf16.msra.mxu0 0
        %1679 = vmatprep.subr.bf16.mxu0 0
        %1680 = vmatpush2.bf16.msra.mxu0 0
        %1681 = vmatprep.mubr.bf16.mxu0 0
        %1682 = vmatmul.mubr.bf16.gmra.mxu0 %v1647
        %v1683 = vpop.f32.mrf.mxu0
        %v1684 = vadd.f32 %v1632, %v1683
        %v1685 = vpop.f32.mrf.mxu0
        %v1686 = vpop.f32.mrf.mxu0
        %v1687 = vpop.f32.mrf.mxu0
        %1688 = vdwg.mxu0
        %v1689 = vpack.c.bf16 %v1684, %v1684
        %1691 = vrot.lane.b32.xlu0 %v1689, 96
        %v1692 = vpop.permute.xlu0 %1691
        %v1694 = vsel %vm743, %v1689, 0
        %v1697 = vsel %vm743, %v1692, 0
        %1699 = vmatprep.subr.bf16.mxu0 0
        %1700 = vmatpush1.bf16.xpose.msra.mxu0 0
        %1701 = vmatprep.subr.bf16.mxu0 0
        %1702 = vmatpush1.bf16.xpose.msra.mxu0 0
        %1703 = vmatprep.subr.bf16.mxu0 0
        %1704 = vmatpush1.bf16.xpose.msra.mxu0 0
        %1705 = vmatprep.subr.bf16.mxu0 0
        %1706 = vmatpush1.bf16.xpose.msra.mxu0 0
        %1707 = vmatprep.subr.bf16.mxu0 0
        %1708 = vmatpush1.bf16.xpose.msra.mxu0 0
        %1709 = vmatprep.subr.bf16.mxu0 0
        %1710 = vmatpush1.bf16.xpose.msra.mxu0 0
        %1711 = vmatprep.subr.bf16.mxu0 0
        %1712 = vmatpush1.bf16.xpose.msra.mxu0 0
        %1713 = vmatprep.subr.bf16.mxu0 0
        %1714 = vmatpush1.bf16.xpose.msra.mxu0 %v1697
        %1715 = vmatprep.subr.bf16.mxu0 0
        %1716 = vmatpush2.bf16.xpose.msra.mxu0 0
        %1717 = vmatprep.subr.bf16.mxu0 0
        %1718 = vmatpush2.bf16.xpose.msra.mxu0 0
        %1719 = vmatprep.subr.bf16.mxu0 0
        %1720 = vmatpush2.bf16.xpose.msra.mxu0 0
        %1721 = vmatprep.subr.bf16.mxu0 0
        %1722 = vmatpush2.bf16.xpose.msra.mxu0 0
        %1723 = vmatprep.subr.bf16.mxu0 0
        %1724 = vmatpush2.bf16.xpose.msra.mxu0 0
        %1725 = vmatprep.subr.bf16.mxu0 0
        %1726 = vmatpush2.bf16.xpose.msra.mxu0 0
        %1727 = vmatprep.subr.bf16.mxu0 0
        %1728 = vmatpush2.bf16.xpose.msra.mxu0 0
        %1729 = vmatprep.subr.bf16.mxu0 0
        %1730 = vmatpush2.bf16.xpose.msra.mxu0 0
        %1731 = vmatprep.mubr.bf16.mxu0 0
        %1732 = vmatmul.mubr.bf16.gmra.mxu0 %v1694
        %v1733 = vpop.f32.mrf.mxu0
        %v1734 = vadd.f32 0.0, %v1733
        %v1735 = vpop.f32.mrf.mxu0
        %v1736 = vpop.f32.mrf.mxu0
        %v1737 = vpop.f32.mrf.mxu0
        %1738 = vdwg.mxu0
        %v1739 = vmul.f32 %v1734, 0.35355338
        %v1740 = vadd.f32 %v1739, %v795
        %v1741 = vsel %vm743, %v1740, -inf
        %1742 = vmax.xlane.f32.xlu0 %v1741
        %v1743 = vpop.xlane.xlu0 %1742
        %v1744 = vsub.f32 %v1740, %v1743
        %v1745 = vmul.f32 %v1744, 1.442695
        %v1746 = vpow.pop %v1745
        %v1747 = vsel %vm743, %v1746, 0.0
        %1748 = vadd.xlane.f32.xlu0 %v1747
        %v1749 = vpop.xlane.xlu0 %1748
        %v1750 = vrcp.pop %v1749
        %v1751 = vmul.f32 %v1746, %v1750
        %v1752 = vpack.c.bf16 %v1751, %v1751
        %1753 = vrot.lane.b32.xlu0 %v1689, 64
        %v1754 = vpop.permute.xlu0 %1753
        %v1756 = vsel %vm743, %v1752, 0
        %v1759 = vsel %vm815, %v1754, 0
        %1761 = vmatprep.subr.bf16.mxu0 0
        %1762 = vmatpush1.bf16.msra.mxu0 0
        %1763 = vmatprep.subr.bf16.mxu0 0
        %1764 = vmatpush1.bf16.msra.mxu0 0
        %1765 = vmatprep.subr.bf16.mxu0 0
        %1766 = vmatpush1.bf16.msra.mxu0 0
        %1767 = vmatprep.subr.bf16.mxu0 0
        %1768 = vmatpush1.bf16.msra.mxu0 0
        %1769 = vmatprep.subr.bf16.mxu0 0
        %1770 = vmatpush1.bf16.msra.mxu0 0
        %1771 = vmatprep.subr.bf16.mxu0 0
        %1772 = vmatpush1.bf16.msra.mxu0 0
        %1773 = vmatprep.subr.bf16.mxu0 0
        %1774 = vmatpush1.bf16.msra.mxu0 0
        %1775 = vmatprep.subr.bf16.mxu0 0
        %1776 = vmatpush1.bf16.msra.mxu0 %v1759
        %1777 = vmatprep.subr.bf16.mxu0 0
        %1778 = vmatpush2.bf16.msra.mxu0 0
        %1779 = vmatprep.subr.bf16.mxu0 0
        %1780 = vmatpush2.bf16.msra.mxu0 0
        %1781 = vmatprep.subr.bf16.mxu0 0
        %1782 = vmatpush2.bf16.msra.mxu0 0
        %1783 = vmatprep.subr.bf16.mxu0 0
        %1784 = vmatpush2.bf16.msra.mxu0 0
        %1785 = vmatprep.subr.bf16.mxu0 0
        %1786 = vmatpush2.bf16.msra.mxu0 0
        %1787 = vmatprep.subr.bf16.mxu0 0
        %1788 = vmatpush2.bf16.msra.mxu0 0
        %1789 = vmatprep.subr.bf16.mxu0 0
        %1790 = vmatpush2.bf16.msra.mxu0 0
        %1791 = vmatprep.subr.bf16.mxu0 0
        %1792 = vmatpush2.bf16.msra.mxu0 0
        %1793 = vmatprep.mubr.bf16.mxu0 0
        %1794 = vmatmul.mubr.bf16.gmra.mxu0 %v1756
        %v1795 = vpop.f32.mrf.mxu0
        %v1796 = vadd.f32 0.0, %v1795
        %v1797 = vpop.f32.mrf.mxu0
        %v1798 = vpop.f32.mrf.mxu0
        %v1799 = vpop.f32.mrf.mxu0
        %1800 = vdwg.mxu0
        %v1801 = vpack.c.bf16 %v1796, %v1796
        %s1802 = scalar_lea.vmem %s6, 16
        %v1803 = vld [vmem:[%s1802] sm:$0xf]
        %1804 = vrot.lane.b32.xlu0 %v1689, 120
        %v1805 = vpop.permute.xlu0 %1804
        %1806 = vrot.lane.b32.xlu0 %v1689, 88
        %v1807 = vpop.permute.xlu0 %1806
        %v1809 = vsel %vm743, %v1805, 0
        %v1812 = vsel %vm743, %v1807, 0
        %1814 = vmatprep.subr.bf16.mxu0 0
        %1815 = vmatpush1.bf16.xpose.msra.mxu0 0
        %1816 = vmatprep.subr.bf16.mxu0 0
        %1817 = vmatpush1.bf16.xpose.msra.mxu0 0
        %1818 = vmatprep.subr.bf16.mxu0 0
        %1819 = vmatpush1.bf16.xpose.msra.mxu0 0
        %1820 = vmatprep.subr.bf16.mxu0 0
        %1821 = vmatpush1.bf16.xpose.msra.mxu0 0
        %1822 = vmatprep.subr.bf16.mxu0 0
        %1823 = vmatpush1.bf16.xpose.msra.mxu0 0
        %1824 = vmatprep.subr.bf16.mxu0 0
        %1825 = vmatpush1.bf16.xpose.msra.mxu0 0
        %1826 = vmatprep.subr.bf16.mxu0 0
        %1827 = vmatpush1.bf16.xpose.msra.mxu0 0
        %1828 = vmatprep.subr.bf16.mxu0 0
        %1829 = vmatpush1.bf16.xpose.msra.mxu0 %v1812
        %1830 = vmatprep.subr.bf16.mxu0 0
        %1831 = vmatpush2.bf16.xpose.msra.mxu0 0
        %1832 = vmatprep.subr.bf16.mxu0 0
        %1833 = vmatpush2.bf16.xpose.msra.mxu0 0
        %1834 = vmatprep.subr.bf16.mxu0 0
        %1835 = vmatpush2.bf16.xpose.msra.mxu0 0
        %1836 = vmatprep.subr.bf16.mxu0 0
        %1837 = vmatpush2.bf16.xpose.msra.mxu0 0
        %1838 = vmatprep.subr.bf16.mxu0 0
        %1839 = vmatpush2.bf16.xpose.msra.mxu0 0
        %1840 = vmatprep.subr.bf16.mxu0 0
        %1841 = vmatpush2.bf16.xpose.msra.mxu0 0
        %1842 = vmatprep.subr.bf16.mxu0 0
        %1843 = vmatpush2.bf16.xpose.msra.mxu0 0
        %1844 = vmatprep.subr.bf16.mxu0 0
        %1845 = vmatpush2.bf16.xpose.msra.mxu0 0
        %1846 = vmatprep.mubr.bf16.mxu0 0
        %1847 = vmatmul.mubr.bf16.gmra.mxu0 %v1809
        %v1848 = vpop.f32.mrf.mxu0
        %v1849 = vadd.f32 0.0, %v1848
        %v1850 = vpop.f32.mrf.mxu0
        %v1851 = vpop.f32.mrf.mxu0
        %v1852 = vpop.f32.mrf.mxu0
        %1853 = vdwg.mxu0
        %v1854 = vmul.f32 %v1849, 0.35355338
        %v1855 = vadd.f32 %v1854, %v795
        %v1856 = vsel %vm743, %v1855, -inf
        %1857 = vmax.xlane.f32.xlu0 %v1856
        %v1858 = vpop.xlane.xlu0 %1857
        %v1859 = vsub.f32 %v1855, %v1858
        %v1860 = vmul.f32 %v1859, 1.442695
        %v1861 = vpow.pop %v1860
        %v1862 = vsel %vm743, %v1861, 0.0
        %1863 = vadd.xlane.f32.xlu0 %v1862
        %v1864 = vpop.xlane.xlu0 %1863
        %v1865 = vrcp.pop %v1864
        %v1866 = vmul.f32 %v1861, %v1865
        %v1867 = vpack.c.bf16 %v1866, %v1866
        %1868 = vrot.lane.b32.xlu0 %v1689, 56
        %v1869 = vpop.permute.xlu0 %1868
        %v1871 = vsel %vm743, %v1867, 0
        %v1874 = vsel %vm815, %v1869, 0
        %1876 = vmatprep.subr.bf16.mxu0 0
        %1877 = vmatpush1.bf16.msra.mxu0 0
        %1878 = vmatprep.subr.bf16.mxu0 0
        %1879 = vmatpush1.bf16.msra.mxu0 0
        %1880 = vmatprep.subr.bf16.mxu0 0
        %1881 = vmatpush1.bf16.msra.mxu0 0
        %1882 = vmatprep.subr.bf16.mxu0 0
        %1883 = vmatpush1.bf16.msra.mxu0 0
        %1884 = vmatprep.subr.bf16.mxu0 0
        %1885 = vmatpush1.bf16.msra.mxu0 0
        %1886 = vmatprep.subr.bf16.mxu0 0
        %1887 = vmatpush1.bf16.msra.mxu0 0
        %1888 = vmatprep.subr.bf16.mxu0 0
        %1889 = vmatpush1.bf16.msra.mxu0 0
        %1890 = vmatprep.subr.bf16.mxu0 0
        %1891 = vmatpush1.bf16.msra.mxu0 %v1874
        %1892 = vmatprep.subr.bf16.mxu0 0
        %1893 = vmatpush2.bf16.msra.mxu0 0
        %1894 = vmatprep.subr.bf16.mxu0 0
        %1895 = vmatpush2.bf16.msra.mxu0 0
        %1896 = vmatprep.subr.bf16.mxu0 0
        %1897 = vmatpush2.bf16.msra.mxu0 0
        %1898 = vmatprep.subr.bf16.mxu0 0
        %1899 = vmatpush2.bf16.msra.mxu0 0
        %1900 = vmatprep.subr.bf16.mxu0 0
        %1901 = vmatpush2.bf16.msra.mxu0 0
        %1902 = vmatprep.subr.bf16.mxu0 0
        %1903 = vmatpush2.bf16.msra.mxu0 0
        %1904 = vmatprep.subr.bf16.mxu0 0
        %1905 = vmatpush2.bf16.msra.mxu0 0
        %1906 = vmatprep.subr.bf16.mxu0 0
        %1907 = vmatpush2.bf16.msra.mxu0 0
        %1908 = vmatprep.mubr.bf16.mxu0 0
        %1909 = vmatmul.mubr.bf16.gmra.mxu0 %v1871
        %v1910 = vpop.f32.mrf.mxu0
        %v1911 = vadd.f32 0.0, %v1910
        %v1912 = vpop.f32.mrf.mxu0
        %v1913 = vpop.f32.mrf.mxu0
        %v1914 = vpop.f32.mrf.mxu0
        %1915 = vdwg.mxu0
        %v1916 = vpack.c.bf16 %v1911, %v1911
        %s1917 = scalar_lea.vmem %s6, 20
        %v1918 = vld [vmem:[%s1917] sm:$0xf]
        %v1920 = vsel %vm743, %v1916, 0
        %v1923 = vsel %vm815, %v1918, 0
        %1925 = vmatprep.subr.bf16.mxu0 0
        %1926 = vmatpush1.bf16.msra.mxu0 0
        %1927 = vmatprep.subr.bf16.mxu0 0
        %1928 = vmatpush1.bf16.msra.mxu0 0
        %1929 = vmatprep.subr.bf16.mxu0 0
        %1930 = vmatpush1.bf16.msra.mxu0 0
        %1931 = vmatprep.subr.bf16.mxu0 0
        %1932 = vmatpush1.bf16.msra.mxu0 0
        %1933 = vmatprep.subr.bf16.mxu0 0
        %1934 = vmatpush1.bf16.msra.mxu0 0
        %1935 = vmatprep.subr.bf16.mxu0 0
        %1936 = vmatpush1.bf16.msra.mxu0 0
        %1937 = vmatprep.subr.bf16.mxu0 0
        %1938 = vmatpush1.bf16.msra.mxu0 0
        %1939 = vmatprep.subr.bf16.mxu0 0
        %1940 = vmatpush1.bf16.msra.mxu0 %v1923
        %1941 = vmatprep.subr.bf16.mxu0 0
        %1942 = vmatpush2.bf16.msra.mxu0 0
        %1943 = vmatprep.subr.bf16.mxu0 0
        %1944 = vmatpush2.bf16.msra.mxu0 0
        %1945 = vmatprep.subr.bf16.mxu0 0
        %1946 = vmatpush2.bf16.msra.mxu0 0
        %1947 = vmatprep.subr.bf16.mxu0 0
        %1948 = vmatpush2.bf16.msra.mxu0 0
        %1949 = vmatprep.subr.bf16.mxu0 0
        %1950 = vmatpush2.bf16.msra.mxu0 0
        %1951 = vmatprep.subr.bf16.mxu0 0
        %1952 = vmatpush2.bf16.msra.mxu0 0
        %1953 = vmatprep.subr.bf16.mxu0 0
        %1954 = vmatpush2.bf16.msra.mxu0 0
        %1955 = vmatprep.subr.bf16.mxu0 0
        %1956 = vmatpush2.bf16.msra.mxu0 0
        %1957 = vmatprep.mubr.bf16.mxu0 0
        %1958 = vmatmul.mubr.bf16.gmra.mxu0 %v1920
        %v1959 = vpop.f32.mrf.mxu0
        %v1960 = vadd.f32 0.0, %v1959
        %v1961 = vpop.f32.mrf.mxu0
        %v1962 = vpop.f32.mrf.mxu0
        %v1963 = vpop.f32.mrf.mxu0
        %1964 = vdwg.mxu0
        %v1966 = vsel %vm743, %v1801, 0
        %v1969 = vsel %vm815, %v1803, 0
        %1971 = vmatprep.subr.bf16.mxu0 0
        %1972 = vmatpush1.bf16.msra.mxu0 0
        %1973 = vmatprep.subr.bf16.mxu0 0
        %1974 = vmatpush1.bf16.msra.mxu0 0
        %1975 = vmatprep.subr.bf16.mxu0 0
        %1976 = vmatpush1.bf16.msra.mxu0 0
        %1977 = vmatprep.subr.bf16.mxu0 0
        %1978 = vmatpush1.bf16.msra.mxu0 0
        %1979 = vmatprep.subr.bf16.mxu0 0
        %1980 = vmatpush1.bf16.msra.mxu0 0
        %1981 = vmatprep.subr.bf16.mxu0 0
        %1982 = vmatpush1.bf16.msra.mxu0 0
        %1983 = vmatprep.subr.bf16.mxu0 0
        %1984 = vmatpush1.bf16.msra.mxu0 0
        %1985 = vmatprep.subr.bf16.mxu0 0
        %1986 = vmatpush1.bf16.msra.mxu0 %v1969
        %1987 = vmatprep.subr.bf16.mxu0 0
        %1988 = vmatpush2.bf16.msra.mxu0 0
        %1989 = vmatprep.subr.bf16.mxu0 0
        %1990 = vmatpush2.bf16.msra.mxu0 0
        %1991 = vmatprep.subr.bf16.mxu0 0
        %1992 = vmatpush2.bf16.msra.mxu0 0
        %1993 = vmatprep.subr.bf16.mxu0 0
        %1994 = vmatpush2.bf16.msra.mxu0 0
        %1995 = vmatprep.subr.bf16.mxu0 0
        %1996 = vmatpush2.bf16.msra.mxu0 0
        %1997 = vmatprep.subr.bf16.mxu0 0
        %1998 = vmatpush2.bf16.msra.mxu0 0
        %1999 = vmatprep.subr.bf16.mxu0 0
        %2000 = vmatpush2.bf16.msra.mxu0 0
        %2001 = vmatprep.subr.bf16.mxu0 0
        %2002 = vmatpush2.bf16.msra.mxu0 0
        %2003 = vmatprep.mubr.bf16.mxu0 0
        %2004 = vmatmul.mubr.bf16.gmra.mxu0 %v1966
        %v2005 = vpop.f32.mrf.mxu0
        %v2006 = vadd.f32 %v1960, %v2005
        %v2007 = vpop.f32.mrf.mxu0
        %v2008 = vpop.f32.mrf.mxu0
        %v2009 = vpop.f32.mrf.mxu0
        %2010 = vdwg.mxu0
        %2011 = vrot.lane.b32.xlu0 %v1689, 112
        %v2012 = vpop.permute.xlu0 %2011
        %2013 = vrot.lane.b32.xlu0 %v1689, 80
        %v2014 = vpop.permute.xlu0 %2013
        %v2016 = vsel %vm743, %v2012, 0
        %v2019 = vsel %vm743, %v2014, 0
        %2021 = vmatprep.subr.bf16.mxu0 0
        %2022 = vmatpush1.bf16.xpose.msra.mxu0 0
        %2023 = vmatprep.subr.bf16.mxu0 0
        %2024 = vmatpush1.bf16.xpose.msra.mxu0 0
        %2025 = vmatprep.subr.bf16.mxu0 0
        %2026 = vmatpush1.bf16.xpose.msra.mxu0 0
        %2027 = vmatprep.subr.bf16.mxu0 0
        %2028 = vmatpush1.bf16.xpose.msra.mxu0 0
        %2029 = vmatprep.subr.bf16.mxu0 0
        %2030 = vmatpush1.bf16.xpose.msra.mxu0 0
        %2031 = vmatprep.subr.bf16.mxu0 0
        %2032 = vmatpush1.bf16.xpose.msra.mxu0 0
        %2033 = vmatprep.subr.bf16.mxu0 0
        %2034 = vmatpush1.bf16.xpose.msra.mxu0 0
        %2035 = vmatprep.subr.bf16.mxu0 0
        %2036 = vmatpush1.bf16.xpose.msra.mxu0 %v2019
        %2037 = vmatprep.subr.bf16.mxu0 0
        %2038 = vmatpush2.bf16.xpose.msra.mxu0 0
        %2039 = vmatprep.subr.bf16.mxu0 0
        %2040 = vmatpush2.bf16.xpose.msra.mxu0 0
        %2041 = vmatprep.subr.bf16.mxu0 0
        %2042 = vmatpush2.bf16.xpose.msra.mxu0 0
        %2043 = vmatprep.subr.bf16.mxu0 0
        %2044 = vmatpush2.bf16.xpose.msra.mxu0 0
        %2045 = vmatprep.subr.bf16.mxu0 0
        %2046 = vmatpush2.bf16.xpose.msra.mxu0 0
        %2047 = vmatprep.subr.bf16.mxu0 0
        %2048 = vmatpush2.bf16.xpose.msra.mxu0 0
        %2049 = vmatprep.subr.bf16.mxu0 0
        %2050 = vmatpush2.bf16.xpose.msra.mxu0 0
        %2051 = vmatprep.subr.bf16.mxu0 0
        %2052 = vmatpush2.bf16.xpose.msra.mxu0 0
        %2053 = vmatprep.mubr.bf16.mxu0 0
        %2054 = vmatmul.mubr.bf16.gmra.mxu0 %v2016
        %v2055 = vpop.f32.mrf.mxu0
        %v2056 = vadd.f32 0.0, %v2055
        %v2057 = vpop.f32.mrf.mxu0
        %v2058 = vpop.f32.mrf.mxu0
        %v2059 = vpop.f32.mrf.mxu0
        %2060 = vdwg.mxu0
        %v2061 = vmul.f32 %v2056, 0.35355338
        %v2062 = vadd.f32 %v2061, %v795
        %v2063 = vsel %vm743, %v2062, -inf
        %2064 = vmax.xlane.f32.xlu0 %v2063
        %v2065 = vpop.xlane.xlu0 %2064
        %v2066 = vsub.f32 %v2062, %v2065
        %v2067 = vmul.f32 %v2066, 1.442695
        %v2068 = vpow.pop %v2067
        %v2069 = vsel %vm743, %v2068, 0.0
        %2070 = vadd.xlane.f32.xlu0 %v2069
        %v2071 = vpop.xlane.xlu0 %2070
        %v2072 = vrcp.pop %v2071
        %v2073 = vmul.f32 %v2068, %v2072
        %v2074 = vpack.c.bf16 %v2073, %v2073
        %2075 = vrot.lane.b32.xlu0 %v1689, 48
        %v2076 = vpop.permute.xlu0 %2075
        %v2078 = vsel %vm743, %v2074, 0
        %v2081 = vsel %vm815, %v2076, 0
        %2083 = vmatprep.subr.bf16.mxu0 0
        %2084 = vmatpush1.bf16.msra.mxu0 0
        %2085 = vmatprep.subr.bf16.mxu0 0
        %2086 = vmatpush1.bf16.msra.mxu0 0
        %2087 = vmatprep.subr.bf16.mxu0 0
        %2088 = vmatpush1.bf16.msra.mxu0 0
        %2089 = vmatprep.subr.bf16.mxu0 0
        %2090 = vmatpush1.bf16.msra.mxu0 0
        %2091 = vmatprep.subr.bf16.mxu0 0
        %2092 = vmatpush1.bf16.msra.mxu0 0
        %2093 = vmatprep.subr.bf16.mxu0 0
        %2094 = vmatpush1.bf16.msra.mxu0 0
        %2095 = vmatprep.subr.bf16.mxu0 0
        %2096 = vmatpush1.bf16.msra.mxu0 0
        %2097 = vmatprep.subr.bf16.mxu0 0
        %2098 = vmatpush1.bf16.msra.mxu0 %v2081
        %2099 = vmatprep.subr.bf16.mxu0 0
        %2100 = vmatpush2.bf16.msra.mxu0 0
        %2101 = vmatprep.subr.bf16.mxu0 0
        %2102 = vmatpush2.bf16.msra.mxu0 0
        %2103 = vmatprep.subr.bf16.mxu0 0
        %2104 = vmatpush2.bf16.msra.mxu0 0
        %2105 = vmatprep.subr.bf16.mxu0 0
        %2106 = vmatpush2.bf16.msra.mxu0 0
        %2107 = vmatprep.subr.bf16.mxu0 0
        %2108 = vmatpush2.bf16.msra.mxu0 0
        %2109 = vmatprep.subr.bf16.mxu0 0
        %2110 = vmatpush2.bf16.msra.mxu0 0
        %2111 = vmatprep.subr.bf16.mxu0 0
        %2112 = vmatpush2.bf16.msra.mxu0 0
        %2113 = vmatprep.subr.bf16.mxu0 0
        %2114 = vmatpush2.bf16.msra.mxu0 0
        %2115 = vmatprep.mubr.bf16.mxu0 0
        %2116 = vmatmul.mubr.bf16.gmra.mxu0 %v2078
        %v2117 = vpop.f32.mrf.mxu0
        %v2118 = vadd.f32 0.0, %v2117
        %v2119 = vpop.f32.mrf.mxu0
        %v2120 = vpop.f32.mrf.mxu0
        %v2121 = vpop.f32.mrf.mxu0
        %2122 = vdwg.mxu0
        %v2123 = vpack.c.bf16 %v2118, %v2118
        %s2124 = scalar_lea.vmem %s6, 24
        %v2125 = vld [vmem:[%s2124] sm:$0xf]
        %v2127 = vsel %vm743, %v2123, 0
        %v2130 = vsel %vm815, %v2125, 0
        %2132 = vmatprep.subr.bf16.mxu0 0
        %2133 = vmatpush1.bf16.msra.mxu0 0
        %2134 = vmatprep.subr.bf16.mxu0 0
        %2135 = vmatpush1.bf16.msra.mxu0 0
        %2136 = vmatprep.subr.bf16.mxu0 0
        %2137 = vmatpush1.bf16.msra.mxu0 0
        %2138 = vmatprep.subr.bf16.mxu0 0
        %2139 = vmatpush1.bf16.msra.mxu0 0
        %2140 = vmatprep.subr.bf16.mxu0 0
        %2141 = vmatpush1.bf16.msra.mxu0 0
        %2142 = vmatprep.subr.bf16.mxu0 0
        %2143 = vmatpush1.bf16.msra.mxu0 0
        %2144 = vmatprep.subr.bf16.mxu0 0
        %2145 = vmatpush1.bf16.msra.mxu0 0
        %2146 = vmatprep.subr.bf16.mxu0 0
        %2147 = vmatpush1.bf16.msra.mxu0 %v2130
        %2148 = vmatprep.subr.bf16.mxu0 0
        %2149 = vmatpush2.bf16.msra.mxu0 0
        %2150 = vmatprep.subr.bf16.mxu0 0
        %2151 = vmatpush2.bf16.msra.mxu0 0
        %2152 = vmatprep.subr.bf16.mxu0 0
        %2153 = vmatpush2.bf16.msra.mxu0 0
        %2154 = vmatprep.subr.bf16.mxu0 0
        %2155 = vmatpush2.bf16.msra.mxu0 0
        %2156 = vmatprep.subr.bf16.mxu0 0
        %2157 = vmatpush2.bf16.msra.mxu0 0
        %2158 = vmatprep.subr.bf16.mxu0 0
        %2159 = vmatpush2.bf16.msra.mxu0 0
        %2160 = vmatprep.subr.bf16.mxu0 0
        %2161 = vmatpush2.bf16.msra.mxu0 0
        %2162 = vmatprep.subr.bf16.mxu0 0
        %2163 = vmatpush2.bf16.msra.mxu0 0
        %2164 = vmatprep.mubr.bf16.mxu0 0
        %2165 = vmatmul.mubr.bf16.gmra.mxu0 %v2127
        %v2166 = vpop.f32.mrf.mxu0
        %v2167 = vadd.f32 0.0, %v2166
        %v2168 = vpop.f32.mrf.mxu0
        %v2169 = vpop.f32.mrf.mxu0
        %v2170 = vpop.f32.mrf.mxu0
        %2171 = vdwg.mxu0
        %v2172 = vadd.f32 %v2006, %v2167
        %2173 = vrot.lane.b32.xlu0 %v1689, 104
        %v2174 = vpop.permute.xlu0 %2173
        %2175 = vrot.lane.b32.xlu0 %v1689, 72
        %v2176 = vpop.permute.xlu0 %2175
        %v2178 = vsel %vm743, %v2174, 0
        %v2181 = vsel %vm743, %v2176, 0
        %2183 = vmatprep.subr.bf16.mxu0 0
        %2184 = vmatpush1.bf16.xpose.msra.mxu0 0
        %2185 = vmatprep.subr.bf16.mxu0 0
        %2186 = vmatpush1.bf16.xpose.msra.mxu0 0
        %2187 = vmatprep.subr.bf16.mxu0 0
        %2188 = vmatpush1.bf16.xpose.msra.mxu0 0
        %2189 = vmatprep.subr.bf16.mxu0 0
        %2190 = vmatpush1.bf16.xpose.msra.mxu0 0
        %2191 = vmatprep.subr.bf16.mxu0 0
        %2192 = vmatpush1.bf16.xpose.msra.mxu0 0
        %2193 = vmatprep.subr.bf16.mxu0 0
        %2194 = vmatpush1.bf16.xpose.msra.mxu0 0
        %2195 = vmatprep.subr.bf16.mxu0 0
        %2196 = vmatpush1.bf16.xpose.msra.mxu0 0
        %2197 = vmatprep.subr.bf16.mxu0 0
        %2198 = vmatpush1.bf16.xpose.msra.mxu0 %v2181
        %2199 = vmatprep.subr.bf16.mxu0 0
        %2200 = vmatpush2.bf16.xpose.msra.mxu0 0
        %2201 = vmatprep.subr.bf16.mxu0 0
        %2202 = vmatpush2.bf16.xpose.msra.mxu0 0
        %2203 = vmatprep.subr.bf16.mxu0 0
        %2204 = vmatpush2.bf16.xpose.msra.mxu0 0
        %2205 = vmatprep.subr.bf16.mxu0 0
        %2206 = vmatpush2.bf16.xpose.msra.mxu0 0
        %2207 = vmatprep.subr.bf16.mxu0 0
        %2208 = vmatpush2.bf16.xpose.msra.mxu0 0
        %2209 = vmatprep.subr.bf16.mxu0 0
        %2210 = vmatpush2.bf16.xpose.msra.mxu0 0
        %2211 = vmatprep.subr.bf16.mxu0 0
        %2212 = vmatpush2.bf16.xpose.msra.mxu0 0
        %2213 = vmatprep.subr.bf16.mxu0 0
        %2214 = vmatpush2.bf16.xpose.msra.mxu0 0
        %2215 = vmatprep.mubr.bf16.mxu0 0
        %2216 = vmatmul.mubr.bf16.gmra.mxu0 %v2178
        %v2217 = vpop.f32.mrf.mxu0
        %v2218 = vadd.f32 0.0, %v2217
        %v2219 = vpop.f32.mrf.mxu0
        %v2220 = vpop.f32.mrf.mxu0
        %v2221 = vpop.f32.mrf.mxu0
        %2222 = vdwg.mxu0
        %v2223 = vmul.f32 %v2218, 0.35355338
        %v2224 = vadd.f32 %v2223, %v795
        %v2225 = vsel %vm743, %v2224, -inf
        %2226 = vmax.xlane.f32.xlu0 %v2225
        %v2227 = vpop.xlane.xlu0 %2226
        %v2228 = vsub.f32 %v2224, %v2227
        %v2229 = vmul.f32 %v2228, 1.442695
        %v2230 = vpow.pop %v2229
        %v2231 = vsel %vm743, %v2230, 0.0
        %2232 = vadd.xlane.f32.xlu0 %v2231
        %v2233 = vpop.xlane.xlu0 %2232
        %v2234 = vrcp.pop %v2233
        %v2235 = vmul.f32 %v2230, %v2234
        %v2236 = vpack.c.bf16 %v2235, %v2235
        %2237 = vrot.lane.b32.xlu0 %v1689, 40
        %v2238 = vpop.permute.xlu0 %2237
        %v2240 = vsel %vm743, %v2236, 0
        %v2243 = vsel %vm815, %v2238, 0
        %2245 = vmatprep.subr.bf16.mxu0 0
        %2246 = vmatpush1.bf16.msra.mxu0 0
        %2247 = vmatprep.subr.bf16.mxu0 0
        %2248 = vmatpush1.bf16.msra.mxu0 0
        %2249 = vmatprep.subr.bf16.mxu0 0
        %2250 = vmatpush1.bf16.msra.mxu0 0
        %2251 = vmatprep.subr.bf16.mxu0 0
        %2252 = vmatpush1.bf16.msra.mxu0 0
        %2253 = vmatprep.subr.bf16.mxu0 0
        %2254 = vmatpush1.bf16.msra.mxu0 0
        %2255 = vmatprep.subr.bf16.mxu0 0
        %2256 = vmatpush1.bf16.msra.mxu0 0
        %2257 = vmatprep.subr.bf16.mxu0 0
        %2258 = vmatpush1.bf16.msra.mxu0 0
        %2259 = vmatprep.subr.bf16.mxu0 0
        %2260 = vmatpush1.bf16.msra.mxu0 %v2243
        %2261 = vmatprep.subr.bf16.mxu0 0
        %2262 = vmatpush2.bf16.msra.mxu0 0
        %2263 = vmatprep.subr.bf16.mxu0 0
        %2264 = vmatpush2.bf16.msra.mxu0 0
        %2265 = vmatprep.subr.bf16.mxu0 0
        %2266 = vmatpush2.bf16.msra.mxu0 0
        %2267 = vmatprep.subr.bf16.mxu0 0
        %2268 = vmatpush2.bf16.msra.mxu0 0
        %2269 = vmatprep.subr.bf16.mxu0 0
        %2270 = vmatpush2.bf16.msra.mxu0 0
        %2271 = vmatprep.subr.bf16.mxu0 0
        %2272 = vmatpush2.bf16.msra.mxu0 0
        %2273 = vmatprep.subr.bf16.mxu0 0
        %2274 = vmatpush2.bf16.msra.mxu0 0
        %2275 = vmatprep.subr.bf16.mxu0 0
        %2276 = vmatpush2.bf16.msra.mxu0 0
        %2277 = vmatprep.mubr.bf16.mxu0 0
        %2278 = vmatmul.mubr.bf16.gmra.mxu0 %v2240
        %v2279 = vpop.f32.mrf.mxu0
        %v2280 = vadd.f32 0.0, %v2279
        %v2281 = vpop.f32.mrf.mxu0
        %v2282 = vpop.f32.mrf.mxu0
        %v2283 = vpop.f32.mrf.mxu0
        %2284 = vdwg.mxu0
        %v2285 = vpack.c.bf16 %v2280, %v2280
        %s2286 = scalar_lea.vmem %s6, 28
        %v2287 = vld [vmem:[%s2286] sm:$0xf]
        %v2289 = vsel %vm743, %v2285, 0
        %v2292 = vsel %vm815, %v2287, 0
        %2294 = vmatprep.subr.bf16.mxu0 0
        %2295 = vmatpush1.bf16.msra.mxu0 0
        %2296 = vmatprep.subr.bf16.mxu0 0
        %2297 = vmatpush1.bf16.msra.mxu0 0
        %2298 = vmatprep.subr.bf16.mxu0 0
        %2299 = vmatpush1.bf16.msra.mxu0 0
        %2300 = vmatprep.subr.bf16.mxu0 0
        %2301 = vmatpush1.bf16.msra.mxu0 0
        %2302 = vmatprep.subr.bf16.mxu0 0
        %2303 = vmatpush1.bf16.msra.mxu0 0
        %2304 = vmatprep.subr.bf16.mxu0 0
        %2305 = vmatpush1.bf16.msra.mxu0 0
        %2306 = vmatprep.subr.bf16.mxu0 0
        %2307 = vmatpush1.bf16.msra.mxu0 0
        %2308 = vmatprep.subr.bf16.mxu0 0
        %2309 = vmatpush1.bf16.msra.mxu0 %v2292
        %2310 = vmatprep.subr.bf16.mxu0 0
        %2311 = vmatpush2.bf16.msra.mxu0 0
        %2312 = vmatprep.subr.bf16.mxu0 0
        %2313 = vmatpush2.bf16.msra.mxu0 0
        %2314 = vmatprep.subr.bf16.mxu0 0
        %2315 = vmatpush2.bf16.msra.mxu0 0
        %2316 = vmatprep.subr.bf16.mxu0 0
        %2317 = vmatpush2.bf16.msra.mxu0 0
        %2318 = vmatprep.subr.bf16.mxu0 0
        %2319 = vmatpush2.bf16.msra.mxu0 0
        %2320 = vmatprep.subr.bf16.mxu0 0
        %2321 = vmatpush2.bf16.msra.mxu0 0
        %2322 = vmatprep.subr.bf16.mxu0 0
        %2323 = vmatpush2.bf16.msra.mxu0 0
        %2324 = vmatprep.subr.bf16.mxu0 0
        %2325 = vmatpush2.bf16.msra.mxu0 0
        %2326 = vmatprep.mubr.bf16.mxu0 0
        %2327 = vmatmul.mubr.bf16.gmra.mxu0 %v2289
        %v2328 = vpop.f32.mrf.mxu0
        %v2329 = vadd.f32 0.0, %v2328
        %v2330 = vpop.f32.mrf.mxu0
        %v2331 = vpop.f32.mrf.mxu0
        %v2332 = vpop.f32.mrf.mxu0
        %2333 = vdwg.mxu0
        %v2334 = vadd.f32 %v2172, %v2329
        %s2335 = scalar_lea.vmem %s7, 1
        %v2336 = vld [vmem:[%s2335] sm:$0x1]
        %v2338 = vlaneseq
        %v2339 = vshrl.u32 %v2338, 7
        %v2340 = vsub.s32 0, %v2339
        %v2341 = vrot.slane %v2336, %v2340
        %v2343 = vadd.f32 %v2334, %v2341
        %v2344 = vadd.f32 %v2343, %v1619
        %s2345 = scalar_lea.vmem %s8, 1
        %v2346 = vld [vmem:[%s2345] sm:$0x1]
        %s2347 = scalar_lea.vmem %s9, 1
        %v2348 = vld [vmem:[%s2347] sm:$0x1]
        %v2349 = vsel %vm643, %v2344, 0.0
        %2350 = vadd.xlane.f32.xlu0 %v2349
        %v2351 = vpop.xlane.xlu0 %2350
        %v2352 = vmul.f32 %v2351, %v647
        %v2353 = vsub.f32 %v2344, %v2352
        %v2354 = vmul.f32 %v2353, %v2353
        %v2355 = vsel %vm643, %v2354, 0.0
        %2356 = vadd.xlane.f32.xlu0 %v2355
        %v2357 = vpop.xlane.xlu0 %2356
        %v2358 = vmul.f32 %v2357, %v647
        %v2359 = vadd.f32 %v2358, 1e-12
        %v2360 = vrsqrt.pop %v2359
        %v2361 = vmul.f32 %v2353, %v2360
        %v2363 = vlaneseq
        %v2364 = vshrl.u32 %v2363, 7
        %v2365 = vsub.s32 0, %v2364
        %v2366 = vrot.slane %v2346, %v2365
        %v2368 = vmul.f32 %v2361, %v2366
        %v2370 = vlaneseq
        %v2371 = vshrl.u32 %v2370, 7
        %v2372 = vsub.s32 0, %v2371
        %v2373 = vrot.slane %v2348, %v2372
        %v2375 = vadd.f32 %v2368, %v2373
        %v2376 = vpack.c.bf16 %v2375, %v2375
        %s2377 = scalar_lea.vmem %s10, 16
        %v2378 = vld [vmem:[%s2377] sm:$0xf]
        %v2379 = vld [vmem:[%s2377 + $0x4] sm:$0xf]
        %v2380 = vld [vmem:[%s2377 + $0x8] sm:$0xf]
        %v2381 = vld [vmem:[%s2377 + $0xc] sm:$0xf]
        %s2382 = scalar_lea.vmem %s11, 1
        %v2383 = vld [vmem:[%s2382] sm:$0x1]
        %v2385 = vlaneseq
        %v2386 = vshrl.u32 %v2385, 7
        %v2387 = vsub.s32 0, %v2386
        %v2388 = vrot.slane %v2383, %v2387
        %v2394 = vunpack.c.l.b16 %v2378
        %v2395 = vunpack.c.l.b16 %v2379
        %v2396 = vunpack.c.l.b16 %v2380
        %v2397 = vunpack.c.l.b16 %v2381
        %v2398 = vpack.c.b16 %v2395, %v2394
        %v2399 = vpack.c.b16 %v2397, %v2396
        %v2403 = vsel %vm643, %v2376, 0
        %2405 = vmatprep.subr.bf16.mxu0 0
        %2406 = vmatpush1.bf16.msra.mxu0 0
        %2407 = vmatprep.subr.bf16.mxu0 0
        %2408 = vmatpush1.bf16.msra.mxu0 0
        %2409 = vmatprep.subr.bf16.mxu0 0
        %2410 = vmatpush1.bf16.msra.mxu0 0
        %2411 = vmatprep.subr.bf16.mxu0 0
        %2412 = vmatpush1.bf16.msra.mxu0 0
        %2413 = vmatprep.subr.bf16.mxu0 0
        %2414 = vmatpush1.bf16.msra.mxu0 0
        %2415 = vmatprep.subr.bf16.mxu0 0
        %2416 = vmatpush1.bf16.msra.mxu0 0
        %2417 = vmatprep.subr.bf16.mxu0 0
        %2418 = vmatpush1.bf16.msra.mxu0 %v2399
        %2419 = vmatprep.subr.bf16.mxu0 0
        %2420 = vmatpush1.bf16.msra.mxu0 %v2398
        %2421 = vmatprep.subr.bf16.mxu0 0
        %2422 = vmatpush2.bf16.msra.mxu0 0
        %2423 = vmatprep.subr.bf16.mxu0 0
        %2424 = vmatpush2.bf16.msra.mxu0 0
        %2425 = vmatprep.subr.bf16.mxu0 0
        %2426 = vmatpush2.bf16.msra.mxu0 0
        %2427 = vmatprep.subr.bf16.mxu0 0
        %2428 = vmatpush2.bf16.msra.mxu0 0
        %2429 = vmatprep.subr.bf16.mxu0 0
        %2430 = vmatpush2.bf16.msra.mxu0 0
        %2431 = vmatprep.subr.bf16.mxu0 0
        %2432 = vmatpush2.bf16.msra.mxu0 0
        %2433 = vmatprep.subr.bf16.mxu0 0
        %2434 = vmatpush2.bf16.msra.mxu0 0
        %2435 = vmatprep.subr.bf16.mxu0 0
        %2436 = vmatpush2.bf16.msra.mxu0 0
        %2437 = vmatprep.mubr.bf16.mxu0 0
        %2438 = vmatmul.mubr.bf16.gmra.mxu0 %v2403
        %v2439 = vpop.f32.mrf.mxu0
        %v2440 = vadd.f32 %v2388, %v2439
        %v2441 = vpop.f32.mrf.mxu0
        %v2442 = vpop.f32.mrf.mxu0
        %v2443 = vpop.f32.mrf.mxu0
        %2444 = vdwg.mxu0
        %v2445 = vmul.f32 %v2440, %v2440
        %v2446 = vmul.f32 %v2440, %v2445
        %v2447 = vmul.f32 %v2446, 0.044715
        %v2448 = vadd.f32 %v2440, %v2447
        %v2449 = vmul.f32 %v2448, 0.7978846
        %v2450 = vtanh.pop %v2449
        %v2451 = vadd.f32 %v2450, 1.0
        %v2452 = vmul.f32 %v2451, 0.5
        %v2453 = vmul.f32 %v2440, %v2452
        %v2454 = vpack.c.bf16 %v2453, %v2453
        %s2455 = scalar_lea.vmem %s12, 32
        %v2456 = vld [vmem:[%s2455] sm:$0xf]
        %v2457 = vld [vmem:[%s2455 + $0x4] sm:$0xf]
        %v2458 = vld [vmem:[%s2455 + $0x8] sm:$0xf]
        %v2459 = vld [vmem:[%s2455 + $0xc] sm:$0xf]
        %v2460 = vld [vmem:[%s2455 + $0x10] sm:$0xf]
        %v2461 = vld [vmem:[%s2455 + $0x14] sm:$0xf]
        %v2462 = vld [vmem:[%s2455 + $0x18] sm:$0xf]
        %v2463 = vld [vmem:[%s2455 + $0x1c] sm:$0xf]
        %s2464 = scalar_lea.vmem %s13, 1
        %v2465 = vld [vmem:[%s2464] sm:$0x1]
        %v2467 = vlaneseq
        %v2468 = vshrl.u32 %v2467, 7
        %v2469 = vsub.s32 0, %v2468
        %v2470 = vrot.slane %v2465, %v2469
        %v2480 = vunpack.c.l.b16 %v2456
        %v2481 = vunpack.c.l.b16 %v2457
        %v2482 = vunpack.c.l.b16 %v2458
        %v2483 = vunpack.c.l.b16 %v2459
        %v2484 = vunpack.c.l.b16 %v2460
        %v2485 = vunpack.c.l.b16 %v2461
        %v2486 = vunpack.c.l.b16 %v2462
        %v2487 = vunpack.c.l.b16 %v2463
        %v2488 = vpack.c.b16 %v2481, %v2480
        %v2489 = vpack.c.b16 %v2483, %v2482
        %v2490 = vpack.c.b16 %v2485, %v2484
        %v2491 = vpack.c.b16 %v2487, %v2486
        %v2497 = vsel %vm1546, %v2454, 0
        %2499 = vmatprep.subr.bf16.mxu0 0
        %2500 = vmatpush1.bf16.msra.mxu0 0
        %2501 = vmatprep.subr.bf16.mxu0 0
        %2502 = vmatpush1.bf16.msra.mxu0 0
        %2503 = vmatprep.subr.bf16.mxu0 0
        %2504 = vmatpush1.bf16.msra.mxu0 0
        %2505 = vmatprep.subr.bf16.mxu0 0
        %2506 = vmatpush1.bf16.msra.mxu0 0
        %2507 = vmatprep.subr.bf16.mxu0 0
        %2508 = vmatpush1.bf16.msra.mxu0 %v2491
        %2509 = vmatprep.subr.bf16.mxu0 0
        %2510 = vmatpush1.bf16.msra.mxu0 %v2490
        %2511 = vmatprep.subr.bf16.mxu0 0
        %2512 = vmatpush1.bf16.msra.mxu0 %v2489
        %2513 = vmatprep.subr.bf16.mxu0 0
        %2514 = vmatpush1.bf16.msra.mxu0 %v2488
        %2515 = vmatprep.subr.bf16.mxu0 0
        %2516 = vmatpush2.bf16.msra.mxu0 0
        %2517 = vmatprep.subr.bf16.mxu0 0
        %2518 = vmatpush2.bf16.msra.mxu0 0
        %2519 = vmatprep.subr.bf16.mxu0 0
        %2520 = vmatpush2.bf16.msra.mxu0 0
        %2521 = vmatprep.subr.bf16.mxu0 0
        %2522 = vmatpush2.bf16.msra.mxu0 0
        %2523 = vmatprep.subr.bf16.mxu0 0
        %2524 = vmatpush2.bf16.msra.mxu0 0
        %2525 = vmatprep.subr.bf16.mxu0 0
        %2526 = vmatpush2.bf16.msra.mxu0 0
        %2527 = vmatprep.subr.bf16.mxu0 0
        %2528 = vmatpush2.bf16.msra.mxu0 0
        %2529 = vmatprep.subr.bf16.mxu0 0
        %2530 = vmatpush2.bf16.msra.mxu0 0
        %2531 = vmatprep.mubr.bf16.mxu0 0
        %2532 = vmatmul.mubr.bf16.gmra.mxu0 %v2497
        %v2533 = vpop.f32.mrf.mxu0
        %v2534 = vadd.f32 %v2470, %v2533
        %v2535 = vpop.f32.mrf.mxu0
        %v2536 = vpop.f32.mrf.mxu0
        %v2537 = vpop.f32.mrf.mxu0
        %2538 = vdwg.mxu0
        %v2539 = vadd.f32 %v2534, %v2375
        %s2540 = scalar_lea.vmem %s14, 1
        %v2541 = vld [vmem:[%s2540] sm:$0x1]
        %s2542 = scalar_lea.vmem %s15, 1
        %v2543 = vld [vmem:[%s2542] sm:$0x1]
        %v2544 = vsel %vm643, %v2539, 0.0
        %2545 = vadd.xlane.f32.xlu0 %v2544
        %v2546 = vpop.xlane.xlu0 %2545
        %v2547 = vmul.f32 %v2546, %v647
        %v2548 = vsub.f32 %v2539, %v2547
        %v2549 = vmul.f32 %v2548, %v2548
        %v2550 = vsel %vm643, %v2549, 0.0
        %2551 = vadd.xlane.f32.xlu0 %v2550
        %v2552 = vpop.xlane.xlu0 %2551
        %v2553 = vmul.f32 %v2552, %v647
        %v2554 = vadd.f32 %v2553, 1e-12
        %v2555 = vrsqrt.pop %v2554
        %v2556 = vmul.f32 %v2548, %v2555
        %v2558 = vlaneseq
        %v2559 = vshrl.u32 %v2558, 7
        %v2560 = vsub.s32 0, %v2559
        %v2561 = vrot.slane %v2541, %v2560
        %v2563 = vmul.f32 %v2556, %v2561
        %v2565 = vlaneseq
        %v2566 = vshrl.u32 %v2565, 7
        %v2567 = vsub.s32 0, %v2566
        %v2568 = vrot.slane %v2543, %v2567
        %v2570 = vadd.f32 %v2563, %v2568
        %v2571 = vpack.c.bf16 %v2570, %v2570
        %v2572 = vld [vmem:[%s16] sm:$0xf]
        %v2573 = vld [vmem:[%s16 + $0x4] sm:$0xf]
        %v2574 = vld [vmem:[%s16 + $0x8] sm:$0xf]
        %v2575 = vld [vmem:[%s16 + $0xc] sm:$0xf]
        %v2576 = vld [vmem:[%s17] sm:$0x1]
        %v2581 = vunpack.c.l.b16 %v2572
        %v2582 = vunpack.c.l.b16 %v2573
        %v2583 = vunpack.c.l.b16 %v2574
        %v2584 = vunpack.c.l.b16 %v2575
        %v2585 = vpack.c.b16 %v2582, %v2581
        %v2586 = vpack.c.b16 %v2584, %v2583
        %v2590 = vsel %vm643, %v2571, 0
        %2592 = vmatprep.subr.bf16.mxu0 0
        %2593 = vmatpush1.bf16.msra.mxu0 0
        %2594 = vmatprep.subr.bf16.mxu0 0
        %2595 = vmatpush1.bf16.msra.mxu0 0
        %2596 = vmatprep.subr.bf16.mxu0 0
        %2597 = vmatpush1.bf16.msra.mxu0 0
        %2598 = vmatprep.subr.bf16.mxu0 0
        %2599 = vmatpush1.bf16.msra.mxu0 0
        %2600 = vmatprep.subr.bf16.mxu0 0
        %2601 = vmatpush1.bf16.msra.mxu0 0
        %2602 = vmatprep.subr.bf16.mxu0 0
        %2603 = vmatpush1.bf16.msra.mxu0 0
        %2604 = vmatprep.subr.bf16.mxu0 0
        %2605 = vmatpush1.bf16.msra.mxu0 %v2586
        %2606 = vmatprep.subr.bf16.mxu0 0
        %2607 = vmatpush1.bf16.msra.mxu0 %v2585
        %2608 = vmatprep.subr.bf16.mxu0 0
        %2609 = vmatpush2.bf16.msra.mxu0 0
        %2610 = vmatprep.subr.bf16.mxu0 0
        %2611 = vmatpush2.bf16.msra.mxu0 0
        %2612 = vmatprep.subr.bf16.mxu0 0
        %2613 = vmatpush2.bf16.msra.mxu0 0
        %2614 = vmatprep.subr.bf16.mxu0 0
        %2615 = vmatpush2.bf16.msra.mxu0 0
        %2616 = vmatprep.subr.bf16.mxu0 0
        %2617 = vmatpush2.bf16.msra.mxu0 0
        %2618 = vmatprep.subr.bf16.mxu0 0
        %2619 = vmatpush2.bf16.msra.mxu0 0
        %2620 = vmatprep.subr.bf16.mxu0 0
        %2621 = vmatpush2.bf16.msra.mxu0 0
        %2622 = vmatprep.subr.bf16.mxu0 0
        %2623 = vmatpush2.bf16.msra.mxu0 0
        %2624 = vmatprep.mubr.bf16.mxu0 0
        %2625 = vmatmul.mubr.bf16.gmra.mxu0 %v2590
        %v2626 = vpop.f32.mrf.mxu0
        %v2627 = vadd.f32 %v2576, %v2626
        %v2628 = vpop.f32.mrf.mxu0
        %v2629 = vpop.f32.mrf.mxu0
        %v2630 = vpop.f32.mrf.mxu0
        %2631 = vdwg.mxu0
        %v2632 = vtanh.pop %v2627
        %v2633 = vpack.c.bf16 %v2632, %v2632
        %v2634 = vld [vmem:[%s18] sm:$0xf]
        %v2635 = vld [vmem:[%s18 + $0x4] sm:$0xf]
        %v2636 = vld [vmem:[%s18 + $0x8] sm:$0xf]
        %v2637 = vld [vmem:[%s18 + $0xc] sm:$0xf]
        %v2638 = vld [vmem:[%s19] sm:$0x1]
        %v2643 = vunpack.c.l.b16 %v2634
        %v2644 = vunpack.c.l.b16 %v2635
        %v2645 = vunpack.c.l.b16 %v2636
        %v2646 = vunpack.c.l.b16 %v2637
        %v2647 = vpack.c.b16 %v2644, %v2643
        %v2648 = vpack.c.b16 %v2646, %v2645
        %v2652 = vsel %vm643, %v2633, 0
        %2654 = vmatprep.subr.bf16.mxu0 0
        %2655 = vmatpush1.bf16.msra.mxu0 0
        %2656 = vmatprep.subr.bf16.mxu0 0
        %2657 = vmatpush1.bf16.msra.mxu0 0
        %2658 = vmatprep.subr.bf16.mxu0 0
        %2659 = vmatpush1.bf16.msra.mxu0 0
        %2660 = vmatprep.subr.bf16.mxu0 0
        %2661 = vmatpush1.bf16.msra.mxu0 0
        %2662 = vmatprep.subr.bf16.mxu0 0
        %2663 = vmatpush1.bf16.msra.mxu0 0
        %2664 = vmatprep.subr.bf16.mxu0 0
        %2665 = vmatpush1.bf16.msra.mxu0 0
        %2666 = vmatprep.subr.bf16.mxu0 0
        %2667 = vmatpush1.bf16.msra.mxu0 %v2648
        %2668 = vmatprep.subr.bf16.mxu0 0
        %2669 = vmatpush1.bf16.msra.mxu0 %v2647
        %2670 = vmatprep.subr.bf16.mxu0 0
        %2671 = vmatpush2.bf16.msra.mxu0 0
        %2672 = vmatprep.subr.bf16.mxu0 0
        %2673 = vmatpush2.bf16.msra.mxu0 0
        %2674 = vmatprep.subr.bf16.mxu0 0
        %2675 = vmatpush2.bf16.msra.mxu0 0
        %2676 = vmatprep.subr.bf16.mxu0 0
        %2677 = vmatpush2.bf16.msra.mxu0 0
        %2678 = vmatprep.subr.bf16.mxu0 0
        %2679 = vmatpush2.bf16.msra.mxu0 0
        %2680 = vmatprep.subr.bf16.mxu0 0
        %2681 = vmatpush2.bf16.msra.mxu0 0
        %2682 = vmatprep.subr.bf16.mxu0 0
        %2683 = vmatpush2.bf16.msra.mxu0 0
        %2684 = vmatprep.subr.bf16.mxu0 0
        %2685 = vmatpush2.bf16.msra.mxu0 0
        %2686 = vmatprep.mubr.bf16.mxu0 0
        %2687 = vmatmul.mubr.bf16.gmra.mxu0 %v2652
        %v2688 = vpop.f32.mrf.mxu0
        %v2689 = vadd.f32 %v2638, %v2688
        %v2690 = vpop.f32.mrf.mxu0
        %v2691 = vpop.f32.mrf.mxu0
        %v2692 = vpop.f32.mrf.mxu0
        %2693 = vdwg.mxu0
        %vm2694 = vcmask 8192
        %2695 = vst.msk [vmem:[%s630] sm:$0x1] %vm2694, %v2689
        %s2696 = sand.u32 %s472, 1
        %s2697 = scalar_lea.sflag [#allocation3], %s2696
        %s2698 = sand.u32 %s472, 1
        %s2699 = scalar_lea.vmem [#allocation2], %s2698
        // Predicated region
        $region101: #{bert_text_classification_forward.1} parent=99 // pred_check
          %p2700 = pneg %p482
        $region102: #{bert_text_classification_forward.1} parent=99 // pred_check_branch
          %2702 = sbr.rel (%p2700) target = $region104
        $region103: #{bert_text_classification_forward.1} parent=99 // pred_region
          %s2704 = ssub.s32 16, 16
          %2705 = vsyncadd %s2697, %s2704
          %s2706 = smul.addr %s34, 16
          %s2707 = scalar_lea.hbm %s20, %s2706
          %s2709 = sshll.u32 %s2699, 4
          %s2710 = int_to_ptr.vmem [resolvable:$true] %s2709
          %2712 = dma.vmem_to_hbm [thread:$0]  %s2710, 16, %s2707, %s2697
        $region104: #{bert_text_classification_forward.1} parent=99 // pred_fallthru
          _
      $region100: #{bert_text_classification_forward.1} parent=5 // pred_fallthru
        _
      %p2713 = scmp.le.s32.totalorder 2, %s29
      // Predicated region
      $region105: #{bert_text_classification_forward.1} parent=5 // pred_check
        %p2714 = pneg %p2713
      $region106: #{bert_text_classification_forward.1} parent=5 // pred_check_branch
        %2716 = sbr.rel (%p2714) target = $region108
      $region107: #{bert_text_classification_forward.1} parent=5 // pred_region
        %s2717 = ssub.s32 %s29, 2
        // Predicated region
        $region109: #{bert_text_classification_forward.1} parent=107 // pred_check
          %p2718 = pneg %p488
        $region110: #{bert_text_classification_forward.1} parent=107 // pred_check_branch
          %2720 = sbr.rel (%p2718) target = $region112
        $region111: #{bert_text_classification_forward.1} parent=107 // pred_region
          %s2721 = sand.u32 %s473, 1
          %s2722 = scalar_lea.sflag [#allocation3], %s2721
          %s2723 = sand.u32 %s473, 1
          %s2724 = scalar_lea.vmem [#allocation2], %s2723
          %2725 = dma.done %s2722, 16
        $region112: #{bert_text_classification_forward.1} parent=107 // pred_fallthru
          _
      $region108: #{bert_text_classification_forward.1} parent=5 // pred_fallthru
        _
    $region6: #{bert_text_classification_forward.1} parent=1 // loop_footer
      %s33 = sadd.s32 1, %s29
    $region7: #{bert_text_classification_forward.1} parent=1 // loop_footer_branch
      %28 = sbr.rel target = $region3
    $region8: #{bert_text_classification_forward.1} parent=1 // loop_exit
      _
    %2726 = vsyncpa [#allocation3], 1
    %s2727 = scalar_lea.sflag [#allocation3], 1
    %2728 = vsyncpa %s2727, 1

</llo_original>
